<compile_context>
chip_gen: v5e
topology: v5e:2x2
jax: 0.10.0
libtpu: 0.0.40
codegen_flags: <defaults>
</compile_context>

<pallas_src>
import functools

import numpy as np
import jax
import jax.numpy as jnp
from jax.experimental import pallas as pl
from jax.experimental.pallas import tpu as pltpu


def _encoder_kernel(x_ref, w_ref, b_ref, out_ref, xpad_ref, patch_ref, *,
                    H, W, negative_slope):
    """One grid step = `Nb` images.

    x_ref:     (Nb, H, W, Cin)      unpadded NHWC input block (VMEM, f32)
    w_ref:     (9*Cin, Cout)        conv taps, row = (dy*3+dx)*Cin + cin (bf16)
    b_ref:     (1, Cout)            bias (f32)
    out_ref:   (Nb, Ho, Wo, Cout)   pooled output block
    xpad_ref:  (Nb, H+2, W+2, Cin)  zero-halo scratch (f32)
    patch_ref: (Nb*H*W, 9*Cin)      im2col scratch (bf16)
    """
    Nb, Ho, Wo, Cout = out_ref.shape
    Cin = x_ref.shape[-1]
    R = Nb * H * W

    # ---- zero-pad halo in VMEM (no padded activation copy in HBM) -----------
    xpad_ref[...] = jnp.zeros(xpad_ref.shape, xpad_ref.dtype)
    xpad_ref[:, pl.ds(1, H), pl.ds(1, W), :] = x_ref[...]

    # ---- im2col-lite: 9 shifted windows -> one (R, 9*Cin) LHS ---------------
    for dy in range(3):
        for dx in range(3):
            t = dy * 3 + dx
            win = xpad_ref[:, pl.ds(dy, H), pl.ds(dx, W), :]        # (Nb, H, W, Cin)
            patch_ref[:, pl.ds(t * Cin, Cin)] = (
                win.reshape(R, Cin).astype(patch_ref.dtype))

    # ---- 3x3 conv = one MXU matmul, bf16 x bf16 -> f32 accumulate -----------
    y = jnp.dot(patch_ref[...], w_ref[...],
                preferred_element_type=jnp.float32)                 # (R, Cout)
    y = y + b_ref[...]                                              # bias
    y = jnp.where(y > 0, y, negative_slope * y)                     # leaky ReLU

    # ---- 2x2 max-pool on the VPU (reshapes keep the lane dim = Cout) --------
    y3 = y.reshape(Nb * H * Wo, 2, Cout)                            # w -> (w0, parity)
    yw = jnp.maximum(y3[:, 0, :], y3[:, 1, :])                      # pool over W
    z = yw.reshape(Nb * Ho, 2, Wo, Cout)                            # h -> (h0, parity)
    pooled = jnp.maximum(z[:, 0, :, :], z[:, 1, :, :])              # pool over H
    out_ref[...] = pooled.reshape(Nb, Ho, Wo, Cout).astype(out_ref.dtype)


def _pick_block_n(N, H, W, Cin, Cout, budget_bytes=8 * 1024 * 1024):
    """Images per grid step: fit a conservative VMEM budget (safe on v7x's
    64 MiB VMEM / 32 MiB default scoped limit) and keep >= 2 grid steps so
    both TensorCores on a v7x chip get work."""
    Ho, Wo = H // 2, W // 2
    per_img = (2 * H * W * Cin * 4            # double-buffered input block
               + 2 * Ho * Wo * Cout * 4       # double-buffered output block
               + (H + 2) * (W + 2) * Cin * 4  # zero-halo scratch
               + H * W * 9 * Cin * 2          # bf16 im2col scratch
               + 2 * H * W * Cout * 4)        # live conv/pool intermediates
    cap = max(1, budget_bytes // per_img)
    if N >= 2:
        cap = min(cap, max(1, N // 2))        # keep >= 2 parallel grid steps
    nb = 1
    for d in range(1, min(cap, N) + 1):       # largest divisor of N <= cap
        if N % d == 0:
            nb = d
    return nb


def encoder_forward(x_nchw, w_oihw, bias, negative_slope=0.1, block_n=None):
    """Pallas equivalent of Encoder.forward. Returns (pooled_NCHW, skip_NCHW)."""
    N, Cin, H, W = x_nchw.shape
    Cout = w_oihw.shape[0]
    assert H % 2 == 0 and W % 2 == 0
    Ho, Wo = H // 2, W // 2

    if block_n is None:
        block_n = _pick_block_n(N, H, W, Cin, Cout)
    assert N % block_n == 0
    grid_n = N // block_n

    # glue: layout conversion + parameter repacking (no padded copy in HBM)
    x_nhwc = jnp.transpose(x_nchw, (0, 2, 3, 1))
    w_mat = (jnp.transpose(w_oihw, (2, 3, 1, 0))          # (kh, kw, Cin, Cout)
             .reshape(9 * Cin, Cout).astype(jnp.bfloat16))
    b2 = bias.reshape(1, Cout).astype(jnp.float32)

    pooled_nhwc = pl.pallas_call(
        functools.partial(_encoder_kernel, H=H, W=W,
                          negative_slope=negative_slope),
        out_shape=jax.ShapeDtypeStruct((N, Ho, Wo, Cout), x_nchw.dtype),
        grid=(grid_n,),
        in_specs=[
            pl.BlockSpec((block_n, H, W, Cin), lambda n: (n, 0, 0, 0)),
            pl.BlockSpec((9 * Cin, Cout), lambda n: (0, 0)),
            pl.BlockSpec((1, Cout), lambda n: (0, 0)),
        ],
        out_specs=pl.BlockSpec((block_n, Ho, Wo, Cout), lambda n: (n, 0, 0, 0)),
        scratch_shapes=[
            pltpu.VMEM((block_n, H + 2, W + 2, Cin), jnp.float32),
            pltpu.VMEM((block_n * H * W, 9 * Cin), jnp.bfloat16),
        ],
        compiler_params=pltpu.CompilerParams(
            dimension_semantics=("parallel",),
            vmem_limit_bytes=32 * 1024 * 1024,
        ),
    )(x_nhwc, w_mat, b2)

    pooled_nchw = jnp.transpose(pooled_nhwc, (0, 3, 1, 2))
    skip = x_nchw                                               # identity
    return pooled_nchw, skip


def _reference(x, w, b, negative_slope=0.1):
    """Pure-JAX f32 reference (NCHW), mirrors the PyTorch forward."""
    y = jax.lax.conv_general_dilated(
        x, w, window_strides=(1, 1), padding=((1, 1), (1, 1)),
        dimension_numbers=("NCHW", "OIHW", "NCHW"),
        precision=jax.lax.Precision.HIGHEST,
    ) + b.reshape(1, -1, 1, 1)
    y = jnp.where(y > 0, y, negative_slope * y)
    pooled = jax.lax.reduce_window(
        y, -jnp.inf, jax.lax.max,
        window_dimensions=(1, 1, 2, 2), window_strides=(1, 1, 2, 2),
        padding="VALID",
    )
    return pooled, x


if __name__ == "__main__":
    # small, deterministic example: batch=2, f_in=4, f_out=8, spatial=16x16
    key = jax.random.PRNGKey(0)
    kx, kw, kb = jax.random.split(key, 3)
    N, f_in, f_out, H, W = 2, 4, 8, 16, 16

    x = jax.random.normal(kx, (N, f_in, H, W), dtype=jnp.float32)
    conv_w = 0.1 * jax.random.normal(kw, (f_out, f_in, 3, 3), dtype=jnp.float32)
    conv_b = 0.1 * jax.random.normal(kb, (f_out,), dtype=jnp.float32)

    pooled, skip = jax.block_until_ready(encoder_forward(x, conv_w, conv_b))

    # sanity check against the pure-JAX f32 reference.  The kernel feeds the
    # MXU bf16 operands (f32 accumulation), so allow bf16-level error.
    ref_pooled, ref_skip = _reference(x, conv_w, conv_b)
    assert pooled.shape == (N, f_out, H // 2, W // 2)
    assert skip.shape == x.shape
    np.testing.assert_allclose(np.asarray(pooled), np.asarray(ref_pooled),
                               rtol=2e-2, atol=5e-3)
    np.testing.assert_array_equal(np.asarray(skip), np.asarray(ref_skip))

    print("KERNEL_OK")
</pallas_src>

<mosaic_0001>
module attributes {stable_mosaic.version = 11 : i64} {
  func.func @_encoder_kernel(%arg0: i32, %arg1: memref<1x16x16x4xf32, #tpu.memory_space<vmem>>, %arg2: memref<36x8xbf16, #tpu.memory_space<vmem>>, %arg3: memref<1x8xf32, #tpu.memory_space<vmem>>, %arg4: memref<1x8x8x8xf32, #tpu.memory_space<vmem>>, %arg5: memref<1x18x18x4xf32, #tpu.memory_space<vmem>>, %arg6: memref<256x36xbf16, #tpu.memory_space<vmem>>) attributes {dimension_semantics = [#tpu.dimension_semantics<parallel>], iteration_bounds = array<i64: 2>, scalar_prefetch = 0 : i64, scratch_operands = 2 : i64, tpu.core_type = #tpu.core_type<tc>, window_params = [{transform_indices = @transform_0, window_bounds = array<i64: 1, 16, 16, 4>}, {pipeline_mode = #tpu.pipeline_mode<synchronous>, transform_indices = @transform_1, window_bounds = array<i64: 36, 8>}, {pipeline_mode = #tpu.pipeline_mode<synchronous>, transform_indices = @transform_2, window_bounds = array<i64: 1, 8>}, {transform_indices = @transform_3, window_bounds = array<i64: 1, 8, 8, 8>}]} {
    %cst = arith.constant 0.000000e+00 : f32
    %0 = vector.broadcast %cst : f32 to vector<1x18x18x4xf32>
    %c0 = arith.constant 0 : index
    %c0_0 = arith.constant 0 : index
    %c0_1 = arith.constant 0 : index
    %c0_2 = arith.constant 0 : index
    %1 = vector.load %arg5[%c0, %c0_0, %c0_1, %c0_2] : memref<1x18x18x4xf32, #tpu.memory_space<vmem>>, vector<1x18x18x4xf32>
    tpu.vector_store %arg5[%c0, %c0_0, %c0_1, %c0_2], %0 {strides = array<i32>} : memref<1x18x18x4xf32, #tpu.memory_space<vmem>>, vector<1x18x18x4xf32>,
    %c0_3 = arith.constant 0 : index
    %c0_4 = arith.constant 0 : index
    %c0_5 = arith.constant 0 : index
    %c0_6 = arith.constant 0 : index
    %2 = vector.load %arg1[%c0_3, %c0_4, %c0_5, %c0_6] : memref<1x16x16x4xf32, #tpu.memory_space<vmem>>, vector<1x16x16x4xf32>
    %c0_7 = arith.constant 0 : index
    %c1 = arith.constant 1 : index
    %c1_8 = arith.constant 1 : index
    %c0_9 = arith.constant 0 : index
    %3 = vector.load %arg5[%c0_7, %c1, %c1_8, %c0_9] : memref<1x18x18x4xf32, #tpu.memory_space<vmem>>, vector<1x16x16x4xf32>
    tpu.vector_store %arg5[%c0_7, %c1, %c1_8, %c0_9], %2 {strides = array<i32>} : memref<1x18x18x4xf32, #tpu.memory_space<vmem>>, vector<1x16x16x4xf32>,
    %c0_10 = arith.constant 0 : index
    %c0_11 = arith.constant 0 : index
    %c0_12 = arith.constant 0 : index
    %c0_13 = arith.constant 0 : index
    %4 = vector.load %arg5[%c0_10, %c0_11, %c0_12, %c0_13] : memref<1x18x18x4xf32, #tpu.memory_space<vmem>>, vector<1x16x16x4xf32>
    %5 = vector.shape_cast %4 : vector<1x16x16x4xf32> to vector<256x4xf32>
    %6 = arith.truncf %5 : vector<256x4xf32> to vector<256x4xbf16>
    %c0_14 = arith.constant 0 : index
    %c0_15 = arith.constant 0 : index
    %7 = vector.load %arg6[%c0_14, %c0_15] : memref<256x36xbf16, #tpu.memory_space<vmem>>, vector<256x4xbf16>
    tpu.vector_store %arg6[%c0_14, %c0_15], %6 {strides = array<i32>} : memref<256x36xbf16, #tpu.memory_space<vmem>>, vector<256x4xbf16>,
    %c0_16 = arith.constant 0 : index
    %c0_17 = arith.constant 0 : index
    %c1_18 = arith.constant 1 : index
    %c0_19 = arith.constant 0 : index
    %8 = vector.load %arg5[%c0_16, %c0_17, %c1_18, %c0_19] : memref<1x18x18x4xf32, #tpu.memory_space<vmem>>, vector<1x16x16x4xf32>
    %9 = vector.shape_cast %8 : vector<1x16x16x4xf32> to vector<256x4xf32>
    %10 = arith.truncf %9 : vector<256x4xf32> to vector<256x4xbf16>
    %c0_20 = arith.constant 0 : index
    %c4 = arith.constant 4 : index
    %11 = vector.load %arg6[%c0_20, %c4] : memref<256x36xbf16, #tpu.memory_space<vmem>>, vector<256x4xbf16>
    tpu.vector_store %arg6[%c0_20, %c4], %10 {strides = array<i32>} : memref<256x36xbf16, #tpu.memory_space<vmem>>, vector<256x4xbf16>,
    %c0_21 = arith.constant 0 : index
    %c0_22 = arith.constant 0 : index
    %c2 = arith.constant 2 : index
    %c0_23 = arith.constant 0 : index
    %12 = vector.load %arg5[%c0_21, %c0_22, %c2, %c0_23] : memref<1x18x18x4xf32, #tpu.memory_space<vmem>>, vector<1x16x16x4xf32>
    %13 = vector.shape_cast %12 : vector<1x16x16x4xf32> to vector<256x4xf32>
    %14 = arith.truncf %13 : vector<256x4xf32> to vector<256x4xbf16>
    %c0_24 = arith.constant 0 : index
    %c8 = arith.constant 8 : index
    %15 = vector.load %arg6[%c0_24, %c8] : memref<256x36xbf16, #tpu.memory_space<vmem>>, vector<256x4xbf16>
    tpu.vector_store %arg6[%c0_24, %c8], %14 {strides = array<i32>} : memref<256x36xbf16, #tpu.memory_space<vmem>>, vector<256x4xbf16>,
    %c0_25 = arith.constant 0 : index
    %c1_26 = arith.constant 1 : index
    %c0_27 = arith.constant 0 : index
    %c0_28 = arith.constant 0 : index
    %16 = vector.load %arg5[%c0_25, %c1_26, %c0_27, %c0_28] : memref<1x18x18x4xf32, #tpu.memory_space<vmem>>, vector<1x16x16x4xf32>
    %17 = vector.shape_cast %16 : vector<1x16x16x4xf32> to vector<256x4xf32>
    %18 = arith.truncf %17 : vector<256x4xf32> to vector<256x4xbf16>
    %c0_29 = arith.constant 0 : index
    %c12 = arith.constant 12 : index
    %19 = vector.load %arg6[%c0_29, %c12] : memref<256x36xbf16, #tpu.memory_space<vmem>>, vector<256x4xbf16>
    tpu.vector_store %arg6[%c0_29, %c12], %18 {strides = array<i32>} : memref<256x36xbf16, #tpu.memory_space<vmem>>, vector<256x4xbf16>,
    %c0_30 = arith.constant 0 : index
    %c1_31 = arith.constant 1 : index
    %c1_32 = arith.constant 1 : index
    %c0_33 = arith.constant 0 : index
    %20 = vector.load %arg5[%c0_30, %c1_31, %c1_32, %c0_33] : memref<1x18x18x4xf32, #tpu.memory_space<vmem>>, vector<1x16x16x4xf32>
    %21 = vector.shape_cast %20 : vector<1x16x16x4xf32> to vector<256x4xf32>
    %22 = arith.truncf %21 : vector<256x4xf32> to vector<256x4xbf16>
    %c0_34 = arith.constant 0 : index
    %c16 = arith.constant 16 : index
    %23 = vector.load %arg6[%c0_34, %c16] : memref<256x36xbf16, #tpu.memory_space<vmem>>, vector<256x4xbf16>
    tpu.vector_store %arg6[%c0_34, %c16], %22 {strides = array<i32>} : memref<256x36xbf16, #tpu.memory_space<vmem>>, vector<256x4xbf16>,
    %c0_35 = arith.constant 0 : index
    %c1_36 = arith.constant 1 : index
    %c2_37 = arith.constant 2 : index
    %c0_38 = arith.constant 0 : index
    %24 = vector.load %arg5[%c0_35, %c1_36, %c2_37, %c0_38] : memref<1x18x18x4xf32, #tpu.memory_space<vmem>>, vector<1x16x16x4xf32>
    %25 = vector.shape_cast %24 : vector<1x16x16x4xf32> to vector<256x4xf32>
    %26 = arith.truncf %25 : vector<256x4xf32> to vector<256x4xbf16>
    %c0_39 = arith.constant 0 : index
    %c20 = arith.constant 20 : index
    %27 = vector.load %arg6[%c0_39, %c20] : memref<256x36xbf16, #tpu.memory_space<vmem>>, vector<256x4xbf16>
    tpu.vector_store %arg6[%c0_39, %c20], %26 {strides = array<i32>} : memref<256x36xbf16, #tpu.memory_space<vmem>>, vector<256x4xbf16>,
    %c0_40 = arith.constant 0 : index
    %c2_41 = arith.constant 2 : index
    %c0_42 = arith.constant 0 : index
    %c0_43 = arith.constant 0 : index
    %28 = vector.load %arg5[%c0_40, %c2_41, %c0_42, %c0_43] : memref<1x18x18x4xf32, #tpu.memory_space<vmem>>, vector<1x16x16x4xf32>
    %29 = vector.shape_cast %28 : vector<1x16x16x4xf32> to vector<256x4xf32>
    %30 = arith.truncf %29 : vector<256x4xf32> to vector<256x4xbf16>
    %c0_44 = arith.constant 0 : index
    %c24 = arith.constant 24 : index
    %31 = vector.load %arg6[%c0_44, %c24] : memref<256x36xbf16, #tpu.memory_space<vmem>>, vector<256x4xbf16>
    tpu.vector_store %arg6[%c0_44, %c24], %30 {strides = array<i32>} : memref<256x36xbf16, #tpu.memory_space<vmem>>, vector<256x4xbf16>,
    %c0_45 = arith.constant 0 : index
    %c2_46 = arith.constant 2 : index
    %c1_47 = arith.constant 1 : index
    %c0_48 = arith.constant 0 : index
    %32 = vector.load %arg5[%c0_45, %c2_46, %c1_47, %c0_48] : memref<1x18x18x4xf32, #tpu.memory_space<vmem>>, vector<1x16x16x4xf32>
    %33 = vector.shape_cast %32 : vector<1x16x16x4xf32> to vector<256x4xf32>
    %34 = arith.truncf %33 : vector<256x4xf32> to vector<256x4xbf16>
    %c0_49 = arith.constant 0 : index
    %c28 = arith.constant 28 : index
    %35 = vector.load %arg6[%c0_49, %c28] : memref<256x36xbf16, #tpu.memory_space<vmem>>, vector<256x4xbf16>
    tpu.vector_store %arg6[%c0_49, %c28], %34 {strides = array<i32>} : memref<256x36xbf16, #tpu.memory_space<vmem>>, vector<256x4xbf16>,
    %c0_50 = arith.constant 0 : index
    %c2_51 = arith.constant 2 : index
    %c2_52 = arith.constant 2 : index
    %c0_53 = arith.constant 0 : index
    %36 = vector.load %arg5[%c0_50, %c2_51, %c2_52, %c0_53] : memref<1x18x18x4xf32, #tpu.memory_space<vmem>>, vector<1x16x16x4xf32>
    %37 = vector.shape_cast %36 : vector<1x16x16x4xf32> to vector<256x4xf32>
    %38 = arith.truncf %37 : vector<256x4xf32> to vector<256x4xbf16>
    %c0_54 = arith.constant 0 : index
    %c32 = arith.constant 32 : index
    %39 = vector.load %arg6[%c0_54, %c32] : memref<256x36xbf16, #tpu.memory_space<vmem>>, vector<256x4xbf16>
    tpu.vector_store %arg6[%c0_54, %c32], %38 {strides = array<i32>} : memref<256x36xbf16, #tpu.memory_space<vmem>>, vector<256x4xbf16>,
    %c0_55 = arith.constant 0 : index
    %c0_56 = arith.constant 0 : index
    %40 = vector.load %arg6[%c0_55, %c0_56] : memref<256x36xbf16, #tpu.memory_space<vmem>>, vector<256x36xbf16>
    %c0_57 = arith.constant 0 : index
    %c0_58 = arith.constant 0 : index
    %41 = vector.load %arg2[%c0_57, %c0_58] : memref<36x8xbf16, #tpu.memory_space<vmem>>, vector<36x8xbf16>
    %cst_59 = arith.constant dense<0.000000e+00> : vector<256x8xf32>
    %42 = tpu.matmul %40, %41, %cst_59 {dimension_numbers = #tpu.dot_dimension_numbers<[1], [0], [0], [1], [0, 0, 1, 1], [], []>} : vector<256x36xbf16>, vector<36x8xbf16>, vector<256x8xf32> -> vector<256x8xf32>
    %c0_60 = arith.constant 0 : index
    %c0_61 = arith.constant 0 : index
    %43 = vector.load %arg3[%c0_60, %c0_61] : memref<1x8xf32, #tpu.memory_space<vmem>>, vector<1x8xf32>
    %44 = vector.broadcast %43 : vector<1x8xf32> to vector<256x8xf32>
    %45 = arith.addf %42, %44 : vector<256x8xf32>
    %cst_62 = arith.constant 0.000000e+00 : f32
    %46 = vector.broadcast %cst_62 : f32 to vector<256x8xf32>
    %47 = arith.cmpf ogt, %45, %46 : vector<256x8xf32>
    %cst_63 = arith.constant 1.000000e-01 : f32
    %48 = vector.broadcast %cst_63 : f32 to vector<256x8xf32>
    %49 = arith.mulf %48, %45 : vector<256x8xf32>
    %50 = arith.select %47, %45, %49 : vector<256x8xi1>, vector<256x8xf32>
    %51 = vector.shape_cast %50 : vector<256x8xf32> to vector<128x2x8xf32>
    %52 = vector.extract_strided_slice %51 {offsets = [0, 0, 0], sizes = [128, 1, 8], strides = [1, 1, 1]} : vector<128x2x8xf32> to vector<128x1x8xf32>
    %53 = vector.shape_cast %52 : vector<128x1x8xf32> to vector<128x8xf32>
    %54 = vector.extract_strided_slice %51 {offsets = [0, 1, 0], sizes = [128, 1, 8], strides = [1, 1, 1]} : vector<128x2x8xf32> to vector<128x1x8xf32>
    %55 = vector.shape_cast %54 : vector<128x1x8xf32> to vector<128x8xf32>
    %56 = arith.maximumf %53, %55 : vector<128x8xf32>
    %57 = vector.shape_cast %56 : vector<128x8xf32> to vector<8x2x8x8xf32>
    %58 = vector.extract_strided_slice %57 {offsets = [0, 0, 0, 0], sizes = [8, 1, 8, 8], strides = [1, 1, 1, 1]} : vector<8x2x8x8xf32> to vector<8x1x8x8xf32>
    %59 = vector.shape_cast %58 : vector<8x1x8x8xf32> to vector<8x8x8xf32>
    %60 = vector.extract_strided_slice %57 {offsets = [0, 1, 0, 0], sizes = [8, 1, 8, 8], strides = [1, 1, 1, 1]} : vector<8x2x8x8xf32> to vector<8x1x8x8xf32>
    %61 = vector.shape_cast %60 : vector<8x1x8x8xf32> to vector<8x8x8xf32>
    %62 = arith.maximumf %59, %61 : vector<8x8x8xf32>
    %63 = vector.shape_cast %62 : vector<8x8x8xf32> to vector<1x8x8x8xf32>
    %c0_64 = arith.constant 0 : index
    %c0_65 = arith.constant 0 : index
    %c0_66 = arith.constant 0 : index
    %c0_67 = arith.constant 0 : index
    %64 = vector.load %arg4[%c0_64, %c0_65, %c0_66, %c0_67] : memref<1x8x8x8xf32, #tpu.memory_space<vmem>>, vector<1x8x8x8xf32>
    tpu.vector_store %arg4[%c0_64, %c0_65, %c0_66, %c0_67], %63 {strides = array<i32>} : memref<1x8x8x8xf32, #tpu.memory_space<vmem>>, vector<1x8x8x8xf32>,
    return
  }
  func.func @transform_0(%arg0: i32) -> (i32, i32, i32, i32) {
    %c0_i32 = arith.constant 0 : i32
    %c0_i32_0 = arith.constant 0 : i32
    %c0_i32_1 = arith.constant 0 : i32
    %c0_i32_2 = arith.constant 0 : i32
    return %arg0, %c0_i32, %c0_i32_0, %c0_i32_1 : i32, i32, i32, i32
  }
  func.func @transform_1(%arg0: i32) -> (i32, i32) {
    %c0_i32 = arith.constant 0 : i32
    %c0_i32_0 = arith.constant 0 : i32
    %c0_i32_1 = arith.constant 0 : i32
    return %c0_i32, %c0_i32_0 : i32, i32
  }
  func.func @transform_2(%arg0: i32) -> (i32, i32) {
    %c0_i32 = arith.constant 0 : i32
    %c0_i32_0 = arith.constant 0 : i32
    %c0_i32_1 = arith.constant 0 : i32
    return %c0_i32, %c0_i32_0 : i32, i32
  }
  func.func @transform_3(%arg0: i32) -> (i32, i32, i32, i32) {
    %c0_i32 = arith.constant 0 : i32
    %c0_i32_0 = arith.constant 0 : i32
    %c0_i32_1 = arith.constant 0 : i32
    %c0_i32_2 = arith.constant 0 : i32
    return %arg0, %c0_i32, %c0_i32_0, %c0_i32_1 : i32, i32, i32, i32
  }
}

</mosaic_0001>

<llo_original>
// kernel: tpu_custom_call.1
$region0: #{tpu_custom_call.1}
  #allocation0 [shape = 'u32[]', space=smem, size = 0x4, offset = 0x4, fixed_abs, tag = 'smem constant byte address 0x4 - core index']
  #allocation1 [shape = 'u32[72,128]{1,0:T(1,128)}', space=vmem, size = 0x9000, scoped, tag = 'internal scratch']
  #allocation2 [shape = 'f32[1,18,18,4]{3,2,1,0:T(8,128)}', space=vmem, size = 0x36000, scoped, tag = 'scratch operand']
  #allocation3 [shape = 'bf16[256,36]{1,0:T(8,128)(2,1)}', space=vmem, size = 0x10000, scoped, tag = 'scratch operand']
  %s0 = inlined_call_operand.vmem [shape: f32[2,16,16,4], index: 0, kind: input, shape index: {}]
  %s1 = inlined_call_operand.vmem [shape: bf16[36,8], index: 1, kind: input, shape index: {}]
  %s2 = inlined_call_operand.vmem [shape: f32[1,8], index: 2, kind: input, shape index: {}]
  %s3 = inlined_call_operand.hbm [shape: f32[2,8,8,8], index: 3, kind: output, shape index: {}]
  %s4 = sld [smem:[#allocation0]]
  $region45: #{tpu_custom_call.1} parent=0
    _
  %s6 = ssub.s32 1, %s4
  %s7 = scalar_select 0, %s6, %s4
  $region1: #{tpu_custom_call.1} parent=0
    #allocation4 [shape = 'u8[65536]{0}', space=vmem, size = 0x10000, scoped, tag = 'output window, operand 0']
    #allocation5 [shape = 's32[2]{0}', space=sflag, size = 0x8, scoped, tag = 'scoped memory for tpu_custom_call.1']
    %8 = vsyncpa [#allocation5], 0
    %s9 = scalar_lea.sflag [#allocation5], 1
    %10 = vsyncpa %s9, 0
    loop: start=0, step=1, limit=4
    $region2: #{tpu_custom_call.1} parent=1 // loop_pre_header
      _
    $region3: #{tpu_custom_call.1} parent=1 // loop_header
      %s12 = sphi 0, %s16
      %p13 = scmp.ge.s32.totalorder %s12, 4
      %s22 = sphi 0, %s24
      %s25 = sphi 0, %s22
      %s26 = sphi 0, %s25
      %s42 = sphi 0, %s26
      %s46 = sphi 0, %s46
      %s48 = sphi 0, %s46
      %s49 = sphi 0, %s48
      %s63 = sphi 0, %s49
      %s67 = sphi 0, %s67
      %s69 = sphi 0, %s67
      %s70 = sphi 0, %s69
      %s84 = sphi 0, %s70
      %s90 = sphi 0, %s92
      %s93 = sphi 0, %s90
      %s94 = sphi 0, %s93
      %s110 = sphi 0, %s94
    $region4: #{tpu_custom_call.1} parent=1 // loop_header_branch
      %15 = sbr.rel (%p13) target = $region8
    $region5: #{tpu_custom_call.1} parent=1 // loop_body
      %s17 = ssub.s32 %s12, 1
      %s18 = ssub.s32 %s12, 2
      %s19 = sadd.s32 %s12, 1
      %s20 = ssub.s32 %s12, %s19
      %p21 = scmp.eq.s32.totalorder %s20, 0
      %s23 = sadd.s32 %s22, 1
      %s24 = scalar_select %p21, %s22, %s23
      %p27 = pneg %p21
      %p28 = scmp.eq.s32.totalorder %s12, 1
      %p29 = por %p27, %p28
      %p30 = scmp.ne.s32.totalorder %s22, %s25
      %p31 = scmp.eq.s32.totalorder %s12, 0
      %p32 = por %p30, %p31
      %p33 = scmp.ne.s32.totalorder %s22, %s25
      %p34 = scmp.eq.s32.totalorder %s17, 1
      %p35 = por %p33, %p34
      %p36 = scmp.ne.s32.totalorder %s25, %s26
      %p37 = scmp.eq.s32.totalorder %s17, 0
      %p38 = por %p36, %p37
      %p39 = scmp.ne.s32.totalorder %s25, %s26
      %p40 = scmp.eq.s32.totalorder %s18, 1
      %p41 = por %p39, %p40
      %p43 = scmp.ne.s32.totalorder %s26, %s42
      %p44 = scmp.eq.s32.totalorder %s18, 0
      %p45 = por %p43, %p44
      %s47 = sadd.s32 %s46, 1
      %p50 = scmp.eq.s32.totalorder %s12, 1
      %p51 = scmp.ne.s32.totalorder %s46, %s48
      %p52 = scmp.eq.s32.totalorder %s12, 0
      %p53 = por %p51, %p52
      %p54 = scmp.ne.s32.totalorder %s46, %s48
      %p55 = scmp.eq.s32.totalorder %s17, 1
      %p56 = por %p54, %p55
      %p57 = scmp.ne.s32.totalorder %s48, %s49
      %p58 = scmp.eq.s32.totalorder %s17, 0
      %p59 = por %p57, %p58
      %p60 = scmp.ne.s32.totalorder %s48, %s49
      %p61 = scmp.eq.s32.totalorder %s18, 1
      %p62 = por %p60, %p61
      %p64 = scmp.ne.s32.totalorder %s49, %s63
      %p65 = scmp.eq.s32.totalorder %s18, 0
      %p66 = por %p64, %p65
      %s68 = sadd.s32 %s67, 1
      %p71 = scmp.eq.s32.totalorder %s12, 1
      %p72 = scmp.ne.s32.totalorder %s67, %s69
      %p73 = scmp.eq.s32.totalorder %s12, 0
      %p74 = por %p72, %p73
      %p75 = scmp.ne.s32.totalorder %s67, %s69
      %p76 = scmp.eq.s32.totalorder %s17, 1
      %p77 = por %p75, %p76
      %p78 = scmp.ne.s32.totalorder %s69, %s70
      %p79 = scmp.eq.s32.totalorder %s17, 0
      %p80 = por %p78, %p79
      %p81 = scmp.ne.s32.totalorder %s69, %s70
      %p82 = scmp.eq.s32.totalorder %s18, 1
      %p83 = por %p81, %p82
      %p85 = scmp.ne.s32.totalorder %s70, %s84
      %p86 = scmp.eq.s32.totalorder %s18, 0
      %p87 = por %p85, %p86
      %s88 = ssub.s32 %s12, %s19
      %p89 = scmp.eq.s32.totalorder %s88, 0
      %s91 = sadd.s32 %s90, 1
      %s92 = scalar_select %p89, %s90, %s91
      %p95 = pneg %p89
      %p96 = scmp.eq.s32.totalorder %s12, 1
      %p97 = por %p95, %p96
      %p98 = scmp.ne.s32.totalorder %s90, %s93
      %p99 = scmp.eq.s32.totalorder %s12, 0
      %p100 = por %p98, %p99
      %p101 = scmp.ne.s32.totalorder %s90, %s93
      %p102 = scmp.eq.s32.totalorder %s17, 1
      %p103 = por %p101, %p102
      %p104 = scmp.ne.s32.totalorder %s93, %s94
      %p105 = scmp.eq.s32.totalorder %s17, 0
      %p106 = por %p104, %p105
      %p107 = scmp.ne.s32.totalorder %s93, %s94
      %p108 = scmp.eq.s32.totalorder %s18, 1
      %p109 = por %p107, %p108
      %p111 = scmp.ne.s32.totalorder %s94, %s110
      %p112 = scmp.eq.s32.totalorder %s18, 0
      %p113 = por %p111, %p112
      %p114 = scmp.le.s32.totalorder 1, %s12
      %p115 = scmp.lt.s32.totalorder %s12, 3
      %p116 = pnand %p114, %p115
      %p117 = pneg %p116
      // Predicated region
      $region9: #{tpu_custom_call.1} parent=5 // pred_check
        _
      $region10: #{tpu_custom_call.1} parent=5 // pred_check_branch
        %119 = sbr.rel (%p116) target = $region12
      $region11: #{tpu_custom_call.1} parent=5 // pred_region
        %s120 = ssub.s32 %s12, 1
        // Predicated region
        $region13: #{tpu_custom_call.1} parent=11 // pred_check
          %p121 = pneg %p59
        $region14: #{tpu_custom_call.1} parent=11 // pred_check_branch
          %123 = sbr.rel (%p121) target = $region16
        $region15: #{tpu_custom_call.1} parent=11 // pred_region
          _
        $region16: #{tpu_custom_call.1} parent=11 // pred_fallthru
          _
        // Predicated region
        $region17: #{tpu_custom_call.1} parent=11 // pred_check
          %p124 = pneg %p80
        $region18: #{tpu_custom_call.1} parent=11 // pred_check_branch
          %126 = sbr.rel (%p124) target = $region20
        $region19: #{tpu_custom_call.1} parent=11 // pred_region
          _
        $region20: #{tpu_custom_call.1} parent=11 // pred_fallthru
          _
      $region12: #{tpu_custom_call.1} parent=5 // pred_fallthru
        _
      %p127 = scmp.lt.s32.totalorder %s12, 2
      // Predicated region
      $region21: #{tpu_custom_call.1} parent=5 // pred_check
        %p128 = pneg %p127
      $region22: #{tpu_custom_call.1} parent=5 // pred_check_branch
        %130 = sbr.rel (%p128) target = $region24
      $region23: #{tpu_custom_call.1} parent=5 // pred_region
        // Predicated region
        $region25: #{tpu_custom_call.1} parent=23 // pred_check
          %p131 = pneg %p32
        $region26: #{tpu_custom_call.1} parent=23 // pred_check_branch
          %133 = sbr.rel (%p131) target = $region28
        $region27: #{tpu_custom_call.1} parent=23 // pred_region
          %p134 = scmp.lt.s32.totalorder %s12, 1
          %s135 = scalar_select %p134, %s12, 1
          %s136 = smul.addr %s135, 32
          %s137 = smul.addr %s136, 8
          %s138 = scalar_lea.vmem %s0, %s137
        $region28: #{tpu_custom_call.1} parent=23 // pred_fallthru
          _
      $region24: #{tpu_custom_call.1} parent=5 // pred_fallthru
        _
      %p139 = scmp.le.s32.totalorder 1, %s12
      %p140 = scmp.lt.s32.totalorder %s12, 3
      %p141 = pnand %p139, %p140
      %p142 = pneg %p141
      // Predicated region
      $region29: #{tpu_custom_call.1} parent=5 // pred_check
        _
      $region30: #{tpu_custom_call.1} parent=5 // pred_check_branch
        %144 = sbr.rel (%p141) target = $region32
      $region31: #{tpu_custom_call.1} parent=5 // pred_region
        %s145 = ssub.s32 %s12, 1
        %p146 = scmp.lt.s32.totalorder %s17, 1
        %s147 = scalar_select %p146, %s17, 1
        %s148 = smul.addr %s147, 32
        %s149 = smul.addr %s148, 8
        %s150 = scalar_lea.vmem %s0, %s149
        %p151 = pneg %p38
        %p152 = pneg %p35
        %p153 = pneg %p59
        %p154 = pneg %p56
        %p155 = pneg %p80
        %p156 = pneg %p77
        %p157 = pneg %p106
        %p158 = pneg %p103
        %s159 = sand.u32 %s93, 1
        %s160 = scalar_lea.sflag [#allocation5], %s159
        %s161 = sand.u32 %s93, 1
        %s162 = smul.addr %s161, 64
        %s163 = scalar_lea.vmem [#allocation4], %s162
        %p164 = scmp.lt.s32.totalorder %s17, 1
        %s165 = scalar_select %p164, %s17, 1
        %s166 = smul.addr %s165, 32
        %s167 = smul.addr %s166, 8
        %s168 = scalar_lea.vmem %s0, %s167
        %vm170 = vcmask 31744
        %171 = vst.msk [vmem:[#allocation2] sm:$0xff] %vm170, 0.0
        %172 = vst.msk [vmem:[#allocation2 + $0x8] sm:$0xff] %vm170, 0.0
        %vm173 = vcmask 25600
        %174 = vst.msk [vmem:[#allocation2 + $0x10] sm:$0x3] %vm173, 0.0
        %175 = vst.msk [vmem:[#allocation2 + $0x18] sm:$0xff] %vm170, 0.0
        %176 = vst.msk [vmem:[#allocation2 + $0x20] sm:$0xff] %vm170, 0.0
        %177 = vst.msk [vmem:[#allocation2 + $0x28] sm:$0x3] %vm173, 0.0
        %178 = vst.msk [vmem:[#allocation2 + $0x30] sm:$0xff] %vm170, 0.0
        %179 = vst.msk [vmem:[#allocation2 + $0x38] sm:$0xff] %vm170, 0.0
        %180 = vst.msk [vmem:[#allocation2 + $0x40] sm:$0x3] %vm173, 0.0
        %181 = vst.msk [vmem:[#allocation2 + $0x48] sm:$0xff] %vm170, 0.0
        %182 = vst.msk [vmem:[#allocation2 + $0x50] sm:$0xff] %vm170, 0.0
        %183 = vst.msk [vmem:[#allocation2 + $0x58] sm:$0x3] %vm173, 0.0
        %184 = vst.msk [vmem:[#allocation2 + $0x60] sm:$0xff] %vm170, 0.0
        %185 = vst.msk [vmem:[#allocation2 + $0x68] sm:$0xff] %vm170, 0.0
        %186 = vst.msk [vmem:[#allocation2 + $0x70] sm:$0x3] %vm173, 0.0
        %187 = vst.msk [vmem:[#allocation2 + $0x78] sm:$0xff] %vm170, 0.0
        %188 = vst.msk [vmem:[#allocation2 + $0x80] sm:$0xff] %vm170, 0.0
        %189 = vst.msk [vmem:[#allocation2 + $0x88] sm:$0x3] %vm173, 0.0
        %190 = vst.msk [vmem:[#allocation2 + $0x90] sm:$0xff] %vm170, 0.0
        %191 = vst.msk [vmem:[#allocation2 + $0x98] sm:$0xff] %vm170, 0.0
        %192 = vst.msk [vmem:[#allocation2 + $0xa0] sm:$0x3] %vm173, 0.0
        %193 = vst.msk [vmem:[#allocation2 + $0xa8] sm:$0xff] %vm170, 0.0
        %194 = vst.msk [vmem:[#allocation2 + $0xb0] sm:$0xff] %vm170, 0.0
        %195 = vst.msk [vmem:[#allocation2 + $0xb8] sm:$0x3] %vm173, 0.0
        %196 = vst.msk [vmem:[#allocation2 + $0xc0] sm:$0xff] %vm170, 0.0
        %197 = vst.msk [vmem:[#allocation2 + $0xc8] sm:$0xff] %vm170, 0.0
        %198 = vst.msk [vmem:[#allocation2 + $0xd0] sm:$0x3] %vm173, 0.0
        %199 = vst.msk [vmem:[#allocation2 + $0xd8] sm:$0xff] %vm170, 0.0
        %200 = vst.msk [vmem:[#allocation2 + $0xe0] sm:$0xff] %vm170, 0.0
        %201 = vst.msk [vmem:[#allocation2 + $0xe8] sm:$0x3] %vm173, 0.0
        %202 = vst.msk [vmem:[#allocation2 + $0xf0] sm:$0xff] %vm170, 0.0
        %203 = vst.msk [vmem:[#allocation2 + $0xf8] sm:$0xff] %vm170, 0.0
        %204 = vst.msk [vmem:[#allocation2 + $0x100] sm:$0x3] %vm173, 0.0
        %205 = vst.msk [vmem:[#allocation2 + $0x108] sm:$0xff] %vm170, 0.0
        %206 = vst.msk [vmem:[#allocation2 + $0x110] sm:$0xff] %vm170, 0.0
        %207 = vst.msk [vmem:[#allocation2 + $0x118] sm:$0x3] %vm173, 0.0
        %208 = vst.msk [vmem:[#allocation2 + $0x120] sm:$0xff] %vm170, 0.0
        %209 = vst.msk [vmem:[#allocation2 + $0x128] sm:$0xff] %vm170, 0.0
        %210 = vst.msk [vmem:[#allocation2 + $0x130] sm:$0x3] %vm173, 0.0
        %211 = vst.msk [vmem:[#allocation2 + $0x138] sm:$0xff] %vm170, 0.0
        %212 = vst.msk [vmem:[#allocation2 + $0x140] sm:$0xff] %vm170, 0.0
        %213 = vst.msk [vmem:[#allocation2 + $0x148] sm:$0x3] %vm173, 0.0
        %214 = vst.msk [vmem:[#allocation2 + $0x150] sm:$0xff] %vm170, 0.0
        %215 = vst.msk [vmem:[#allocation2 + $0x158] sm:$0xff] %vm170, 0.0
        %216 = vst.msk [vmem:[#allocation2 + $0x160] sm:$0x3] %vm173, 0.0
        %217 = vst.msk [vmem:[#allocation2 + $0x168] sm:$0xff] %vm170, 0.0
        %218 = vst.msk [vmem:[#allocation2 + $0x170] sm:$0xff] %vm170, 0.0
        %219 = vst.msk [vmem:[#allocation2 + $0x178] sm:$0x3] %vm173, 0.0
        %220 = vst.msk [vmem:[#allocation2 + $0x180] sm:$0xff] %vm170, 0.0
        %221 = vst.msk [vmem:[#allocation2 + $0x188] sm:$0xff] %vm170, 0.0
        %222 = vst.msk [vmem:[#allocation2 + $0x190] sm:$0x3] %vm173, 0.0
        %223 = vst.msk [vmem:[#allocation2 + $0x198] sm:$0xff] %vm170, 0.0
        %224 = vst.msk [vmem:[#allocation2 + $0x1a0] sm:$0xff] %vm170, 0.0
        %225 = vst.msk [vmem:[#allocation2 + $0x1a8] sm:$0x3] %vm173, 0.0
        %v226 = vld [vmem:[%s168] sm:$0xff]
        %v227 = vld [vmem:[%s168 + $0x8] sm:$0xff]
        %v228 = vld [vmem:[%s168 + $0x10] sm:$0xff]
        %v229 = vld [vmem:[%s168 + $0x18] sm:$0xff]
        %v230 = vld [vmem:[%s168 + $0x20] sm:$0xff]
        %v231 = vld [vmem:[%s168 + $0x28] sm:$0xff]
        %v232 = vld [vmem:[%s168 + $0x30] sm:$0xff]
        %v233 = vld [vmem:[%s168 + $0x38] sm:$0xff]
        %v234 = vld [vmem:[%s168 + $0x40] sm:$0xff]
        %v235 = vld [vmem:[%s168 + $0x48] sm:$0xff]
        %v236 = vld [vmem:[%s168 + $0x50] sm:$0xff]
        %v237 = vld [vmem:[%s168 + $0x58] sm:$0xff]
        %v238 = vld [vmem:[%s168 + $0x60] sm:$0xff]
        %v239 = vld [vmem:[%s168 + $0x68] sm:$0xff]
        %v240 = vld [vmem:[%s168 + $0x70] sm:$0xff]
        %v241 = vld [vmem:[%s168 + $0x78] sm:$0xff]
        %v242 = vld [vmem:[%s168 + $0x80] sm:$0xff]
        %v243 = vld [vmem:[%s168 + $0x88] sm:$0xff]
        %v244 = vld [vmem:[%s168 + $0x90] sm:$0xff]
        %v245 = vld [vmem:[%s168 + $0x98] sm:$0xff]
        %v246 = vld [vmem:[%s168 + $0xa0] sm:$0xff]
        %v247 = vld [vmem:[%s168 + $0xa8] sm:$0xff]
        %v248 = vld [vmem:[%s168 + $0xb0] sm:$0xff]
        %v249 = vld [vmem:[%s168 + $0xb8] sm:$0xff]
        %v250 = vld [vmem:[%s168 + $0xc0] sm:$0xff]
        %v251 = vld [vmem:[%s168 + $0xc8] sm:$0xff]
        %v252 = vld [vmem:[%s168 + $0xd0] sm:$0xff]
        %v253 = vld [vmem:[%s168 + $0xd8] sm:$0xff]
        %v254 = vld [vmem:[%s168 + $0xe0] sm:$0xff]
        %v255 = vld [vmem:[%s168 + $0xe8] sm:$0xff]
        %v256 = vld [vmem:[%s168 + $0xf0] sm:$0xff]
        %v257 = vld [vmem:[%s168 + $0xf8] sm:$0xff]
        %s258 = scalar_lea.vmem [#allocation2], 24
        %259 = vst.msk [vmem:[%s258 + $0x1] sm:$0xff] %vm170, %v226
        %260 = vst.msk [vmem:[%s258 + $0x9] sm:$0xff] %vm170, %v227
        %261 = vst.msk [vmem:[%s258 + $0x19] sm:$0xff] %vm170, %v228
        %262 = vst.msk [vmem:[%s258 + $0x21] sm:$0xff] %vm170, %v229
        %263 = vst.msk [vmem:[%s258 + $0x31] sm:$0xff] %vm170, %v230
        %264 = vst.msk [vmem:[%s258 + $0x39] sm:$0xff] %vm170, %v231
        %265 = vst.msk [vmem:[%s258 + $0x49] sm:$0xff] %vm170, %v232
        %266 = vst.msk [vmem:[%s258 + $0x51] sm:$0xff] %vm170, %v233
        %267 = vst.msk [vmem:[%s258 + $0x61] sm:$0xff] %vm170, %v234
        %268 = vst.msk [vmem:[%s258 + $0x69] sm:$0xff] %vm170, %v235
        %269 = vst.msk [vmem:[%s258 + $0x79] sm:$0xff] %vm170, %v236
        %270 = vst.msk [vmem:[%s258 + $0x81] sm:$0xff] %vm170, %v237
        %271 = vst.msk [vmem:[%s258 + $0x91] sm:$0xff] %vm170, %v238
        %272 = vst.msk [vmem:[%s258 + $0x99] sm:$0xff] %vm170, %v239
        %273 = vst.msk [vmem:[%s258 + $0xa9] sm:$0xff] %vm170, %v240
        %274 = vst.msk [vmem:[%s258 + $0xb1] sm:$0xff] %vm170, %v241
        %275 = vst.msk [vmem:[%s258 + $0xc1] sm:$0xff] %vm170, %v242
        %276 = vst.msk [vmem:[%s258 + $0xc9] sm:$0xff] %vm170, %v243
        %277 = vst.msk [vmem:[%s258 + $0xd9] sm:$0xff] %vm170, %v244
        %278 = vst.msk [vmem:[%s258 + $0xe1] sm:$0xff] %vm170, %v245
        %279 = vst.msk [vmem:[%s258 + $0xf1] sm:$0xff] %vm170, %v246
        %280 = vst.msk [vmem:[%s258 + $0xf9] sm:$0xff] %vm170, %v247
        %281 = vst.msk [vmem:[%s258 + $0x109] sm:$0xff] %vm170, %v248
        %282 = vst.msk [vmem:[%s258 + $0x111] sm:$0xff] %vm170, %v249
        %283 = vst.msk [vmem:[%s258 + $0x121] sm:$0xff] %vm170, %v250
        %284 = vst.msk [vmem:[%s258 + $0x129] sm:$0xff] %vm170, %v251
        %285 = vst.msk [vmem:[%s258 + $0x139] sm:$0xff] %vm170, %v252
        %286 = vst.msk [vmem:[%s258 + $0x141] sm:$0xff] %vm170, %v253
        %287 = vst.msk [vmem:[%s258 + $0x151] sm:$0xff] %vm170, %v254
        %288 = vst.msk [vmem:[%s258 + $0x159] sm:$0xff] %vm170, %v255
        %289 = vst.msk [vmem:[%s258 + $0x169] sm:$0xff] %vm170, %v256
        %290 = vst.msk [vmem:[%s258 + $0x171] sm:$0xff] %vm170, %v257
        %v291 = vld [vmem:[#allocation2] sm:$0xff]
        %v292 = vld [vmem:[#allocation2 + $0x8] sm:$0xff]
        %v293 = vld [vmem:[#allocation2 + $0x18] sm:$0xff]
        %v294 = vld [vmem:[#allocation2 + $0x20] sm:$0xff]
        %v295 = vld [vmem:[#allocation2 + $0x30] sm:$0xff]
        %v296 = vld [vmem:[#allocation2 + $0x38] sm:$0xff]
        %v297 = vld [vmem:[#allocation2 + $0x48] sm:$0xff]
        %v298 = vld [vmem:[#allocation2 + $0x50] sm:$0xff]
        %v299 = vld [vmem:[#allocation2 + $0x60] sm:$0xff]
        %v300 = vld [vmem:[#allocation2 + $0x68] sm:$0xff]
        %v301 = vld [vmem:[#allocation2 + $0x78] sm:$0xff]
        %v302 = vld [vmem:[#allocation2 + $0x80] sm:$0xff]
        %v303 = vld [vmem:[#allocation2 + $0x90] sm:$0xff]
        %v304 = vld [vmem:[#allocation2 + $0x98] sm:$0xff]
        %v305 = vld [vmem:[#allocation2 + $0xa8] sm:$0xff]
        %v306 = vld [vmem:[#allocation2 + $0xb0] sm:$0xff]
        %v307 = vld [vmem:[#allocation2 + $0xc0] sm:$0xff]
        %v308 = vld [vmem:[#allocation2 + $0xc8] sm:$0xff]
        %v309 = vld [vmem:[#allocation2 + $0xd8] sm:$0xff]
        %v310 = vld [vmem:[#allocation2 + $0xe0] sm:$0xff]
        %v311 = vld [vmem:[#allocation2 + $0xf0] sm:$0xff]
        %v312 = vld [vmem:[#allocation2 + $0xf8] sm:$0xff]
        %v313 = vld [vmem:[#allocation2 + $0x108] sm:$0xff]
        %v314 = vld [vmem:[#allocation2 + $0x110] sm:$0xff]
        %v315 = vld [vmem:[#allocation2 + $0x120] sm:$0xff]
        %v316 = vld [vmem:[#allocation2 + $0x128] sm:$0xff]
        %v317 = vld [vmem:[#allocation2 + $0x138] sm:$0xff]
        %v318 = vld [vmem:[#allocation2 + $0x140] sm:$0xff]
        %v319 = vld [vmem:[#allocation2 + $0x150] sm:$0xff]
        %v320 = vld [vmem:[#allocation2 + $0x158] sm:$0xff]
        %v321 = vld [vmem:[#allocation2 + $0x168] sm:$0xff]
        %v322 = vld [vmem:[#allocation2 + $0x170] sm:$0xff]
        %v323 = vpack.c.bf16 %v291, %v291
        %v324 = vpack.c.bf16 %v292, %v292
        %v325 = vpack.c.bf16 %v293, %v293
        %v326 = vpack.c.bf16 %v294, %v294
        %v327 = vpack.c.bf16 %v295, %v295
        %v328 = vpack.c.bf16 %v296, %v296
        %v329 = vpack.c.bf16 %v297, %v297
        %v330 = vpack.c.bf16 %v298, %v298
        %v331 = vpack.c.bf16 %v299, %v299
        %v332 = vpack.c.bf16 %v300, %v300
        %v333 = vpack.c.bf16 %v301, %v301
        %v334 = vpack.c.bf16 %v302, %v302
        %v335 = vpack.c.bf16 %v303, %v303
        %v336 = vpack.c.bf16 %v304, %v304
        %v337 = vpack.c.bf16 %v305, %v305
        %v338 = vpack.c.bf16 %v306, %v306
        %v339 = vpack.c.bf16 %v307, %v307
        %v340 = vpack.c.bf16 %v308, %v308
        %v341 = vpack.c.bf16 %v309, %v309
        %v342 = vpack.c.bf16 %v310, %v310
        %v343 = vpack.c.bf16 %v311, %v311
        %v344 = vpack.c.bf16 %v312, %v312
        %v345 = vpack.c.bf16 %v313, %v313
        %v346 = vpack.c.bf16 %v314, %v314
        %v347 = vpack.c.bf16 %v315, %v315
        %v348 = vpack.c.bf16 %v316, %v316
        %v349 = vpack.c.bf16 %v317, %v317
        %v350 = vpack.c.bf16 %v318, %v318
        %v351 = vpack.c.bf16 %v319, %v319
        %v352 = vpack.c.bf16 %v320, %v320
        %v353 = vpack.c.bf16 %v321, %v321
        %v354 = vpack.c.bf16 %v322, %v322
        %vm355 = vcmask 27648
        %356 = vst.msk [vmem:[#allocation3] sm:$0xf] %vm355, %v323
        %357 = vst.msk [vmem:[#allocation3 + $0x4] sm:$0xf] %vm355, %v324
        %358 = vst.msk [vmem:[#allocation3 + $0x8] sm:$0xf] %vm355, %v325
        %359 = vst.msk [vmem:[#allocation3 + $0xc] sm:$0xf] %vm355, %v326
        %360 = vst.msk [vmem:[#allocation3 + $0x10] sm:$0xf] %vm355, %v327
        %361 = vst.msk [vmem:[#allocation3 + $0x14] sm:$0xf] %vm355, %v328
        %362 = vst.msk [vmem:[#allocation3 + $0x18] sm:$0xf] %vm355, %v329
        %363 = vst.msk [vmem:[#allocation3 + $0x1c] sm:$0xf] %vm355, %v330
        %364 = vst.msk [vmem:[#allocation3 + $0x20] sm:$0xf] %vm355, %v331
        %365 = vst.msk [vmem:[#allocation3 + $0x24] sm:$0xf] %vm355, %v332
        %366 = vst.msk [vmem:[#allocation3 + $0x28] sm:$0xf] %vm355, %v333
        %367 = vst.msk [vmem:[#allocation3 + $0x2c] sm:$0xf] %vm355, %v334
        %368 = vst.msk [vmem:[#allocation3 + $0x30] sm:$0xf] %vm355, %v335
        %369 = vst.msk [vmem:[#allocation3 + $0x34] sm:$0xf] %vm355, %v336
        %370 = vst.msk [vmem:[#allocation3 + $0x38] sm:$0xf] %vm355, %v337
        %371 = vst.msk [vmem:[#allocation3 + $0x3c] sm:$0xf] %vm355, %v338
        %372 = vst.msk [vmem:[#allocation3 + $0x40] sm:$0xf] %vm355, %v339
        %373 = vst.msk [vmem:[#allocation3 + $0x44] sm:$0xf] %vm355, %v340
        %374 = vst.msk [vmem:[#allocation3 + $0x48] sm:$0xf] %vm355, %v341
        %375 = vst.msk [vmem:[#allocation3 + $0x4c] sm:$0xf] %vm355, %v342
        %376 = vst.msk [vmem:[#allocation3 + $0x50] sm:$0xf] %vm355, %v343
        %377 = vst.msk [vmem:[#allocation3 + $0x54] sm:$0xf] %vm355, %v344
        %378 = vst.msk [vmem:[#allocation3 + $0x58] sm:$0xf] %vm355, %v345
        %379 = vst.msk [vmem:[#allocation3 + $0x5c] sm:$0xf] %vm355, %v346
        %380 = vst.msk [vmem:[#allocation3 + $0x60] sm:$0xf] %vm355, %v347
        %381 = vst.msk [vmem:[#allocation3 + $0x64] sm:$0xf] %vm355, %v348
        %382 = vst.msk [vmem:[#allocation3 + $0x68] sm:$0xf] %vm355, %v349
        %383 = vst.msk [vmem:[#allocation3 + $0x6c] sm:$0xf] %vm355, %v350
        %384 = vst.msk [vmem:[#allocation3 + $0x70] sm:$0xf] %vm355, %v351
        %385 = vst.msk [vmem:[#allocation3 + $0x74] sm:$0xf] %vm355, %v352
        %386 = vst.msk [vmem:[#allocation3 + $0x78] sm:$0xf] %vm355, %v353
        %387 = vst.msk [vmem:[#allocation3 + $0x7c] sm:$0xf] %vm355, %v354
        %v388 = vld [vmem:[#allocation2 + $0x1] sm:$0xff]
        %v389 = vld [vmem:[#allocation2 + $0x9] sm:$0xff]
        %v390 = vld [vmem:[#allocation2 + $0x19] sm:$0xff]
        %v391 = vld [vmem:[#allocation2 + $0x21] sm:$0xff]
        %v392 = vld [vmem:[#allocation2 + $0x31] sm:$0xff]
        %v393 = vld [vmem:[#allocation2 + $0x39] sm:$0xff]
        %v394 = vld [vmem:[#allocation2 + $0x49] sm:$0xff]
        %v395 = vld [vmem:[#allocation2 + $0x51] sm:$0xff]
        %v396 = vld [vmem:[#allocation2 + $0x61] sm:$0xff]
        %v397 = vld [vmem:[#allocation2 + $0x69] sm:$0xff]
        %v398 = vld [vmem:[#allocation2 + $0x79] sm:$0xff]
        %v399 = vld [vmem:[#allocation2 + $0x81] sm:$0xff]
        %v400 = vld [vmem:[#allocation2 + $0x91] sm:$0xff]
        %v401 = vld [vmem:[#allocation2 + $0x99] sm:$0xff]
        %v402 = vld [vmem:[#allocation2 + $0xa9] sm:$0xff]
        %v403 = vld [vmem:[#allocation2 + $0xb1] sm:$0xff]
        %v404 = vld [vmem:[#allocation2 + $0xc1] sm:$0xff]
        %v405 = vld [vmem:[#allocation2 + $0xc9] sm:$0xff]
        %v406 = vld [vmem:[#allocation2 + $0xd9] sm:$0xff]
        %v407 = vld [vmem:[#allocation2 + $0xe1] sm:$0xff]
        %v408 = vld [vmem:[#allocation2 + $0xf1] sm:$0xff]
        %v409 = vld [vmem:[#allocation2 + $0xf9] sm:$0xff]
        %v410 = vld [vmem:[#allocation2 + $0x109] sm:$0xff]
        %v411 = vld [vmem:[#allocation2 + $0x111] sm:$0xff]
        %v412 = vld [vmem:[#allocation2 + $0x121] sm:$0xff]
        %v413 = vld [vmem:[#allocation2 + $0x129] sm:$0xff]
        %v414 = vld [vmem:[#allocation2 + $0x139] sm:$0xff]
        %v415 = vld [vmem:[#allocation2 + $0x141] sm:$0xff]
        %v416 = vld [vmem:[#allocation2 + $0x151] sm:$0xff]
        %v417 = vld [vmem:[#allocation2 + $0x159] sm:$0xff]
        %v418 = vld [vmem:[#allocation2 + $0x169] sm:$0xff]
        %v419 = vld [vmem:[#allocation2 + $0x171] sm:$0xff]
        %v420 = vpack.c.bf16 %v388, %v388
        %v421 = vpack.c.bf16 %v389, %v389
        %v422 = vpack.c.bf16 %v390, %v390
        %v423 = vpack.c.bf16 %v391, %v391
        %v424 = vpack.c.bf16 %v392, %v392
        %v425 = vpack.c.bf16 %v393, %v393
        %v426 = vpack.c.bf16 %v394, %v394
        %v427 = vpack.c.bf16 %v395, %v395
        %v428 = vpack.c.bf16 %v396, %v396
        %v429 = vpack.c.bf16 %v397, %v397
        %v430 = vpack.c.bf16 %v398, %v398
        %v431 = vpack.c.bf16 %v399, %v399
        %v432 = vpack.c.bf16 %v400, %v400
        %v433 = vpack.c.bf16 %v401, %v401
        %v434 = vpack.c.bf16 %v402, %v402
        %v435 = vpack.c.bf16 %v403, %v403
        %v436 = vpack.c.bf16 %v404, %v404
        %v437 = vpack.c.bf16 %v405, %v405
        %v438 = vpack.c.bf16 %v406, %v406
        %v439 = vpack.c.bf16 %v407, %v407
        %v440 = vpack.c.bf16 %v408, %v408
        %v441 = vpack.c.bf16 %v409, %v409
        %v442 = vpack.c.bf16 %v410, %v410
        %v443 = vpack.c.bf16 %v411, %v411
        %v444 = vpack.c.bf16 %v412, %v412
        %v445 = vpack.c.bf16 %v413, %v413
        %v446 = vpack.c.bf16 %v414, %v414
        %v447 = vpack.c.bf16 %v415, %v415
        %v448 = vpack.c.bf16 %v416, %v416
        %v449 = vpack.c.bf16 %v417, %v417
        %v450 = vpack.c.bf16 %v418, %v418
        %v451 = vpack.c.bf16 %v419, %v419
        %484 = vrot.lane.b32.xlu0 %v420, 4
        %v485 = vpop.permute.xlu0 %484
        %486 = vrot.lane.b32.xlu0 %v421, 4
        %v487 = vpop.permute.xlu0 %486
        %488 = vrot.lane.b32.xlu0 %v422, 4
        %v489 = vpop.permute.xlu0 %488
        %490 = vrot.lane.b32.xlu0 %v423, 4
        %v491 = vpop.permute.xlu0 %490
        %492 = vrot.lane.b32.xlu0 %v424, 4
        %v493 = vpop.permute.xlu0 %492
        %494 = vrot.lane.b32.xlu0 %v425, 4
        %v495 = vpop.permute.xlu0 %494
        %496 = vrot.lane.b32.xlu0 %v426, 4
        %v497 = vpop.permute.xlu0 %496
        %498 = vrot.lane.b32.xlu0 %v427, 4
        %v499 = vpop.permute.xlu0 %498
        %500 = vrot.lane.b32.xlu0 %v428, 4
        %v501 = vpop.permute.xlu0 %500
        %502 = vrot.lane.b32.xlu0 %v429, 4
        %v503 = vpop.permute.xlu0 %502
        %504 = vrot.lane.b32.xlu0 %v430, 4
        %v505 = vpop.permute.xlu0 %504
        %506 = vrot.lane.b32.xlu0 %v431, 4
        %v507 = vpop.permute.xlu0 %506
        %508 = vrot.lane.b32.xlu0 %v432, 4
        %v509 = vpop.permute.xlu0 %508
        %510 = vrot.lane.b32.xlu0 %v433, 4
        %v511 = vpop.permute.xlu0 %510
        %512 = vrot.lane.b32.xlu0 %v434, 4
        %v513 = vpop.permute.xlu0 %512
        %514 = vrot.lane.b32.xlu0 %v435, 4
        %v515 = vpop.permute.xlu0 %514
        %516 = vrot.lane.b32.xlu0 %v436, 4
        %v517 = vpop.permute.xlu0 %516
        %518 = vrot.lane.b32.xlu0 %v437, 4
        %v519 = vpop.permute.xlu0 %518
        %520 = vrot.lane.b32.xlu0 %v438, 4
        %v521 = vpop.permute.xlu0 %520
        %522 = vrot.lane.b32.xlu0 %v439, 4
        %v523 = vpop.permute.xlu0 %522
        %524 = vrot.lane.b32.xlu0 %v440, 4
        %v525 = vpop.permute.xlu0 %524
        %526 = vrot.lane.b32.xlu0 %v441, 4
        %v527 = vpop.permute.xlu0 %526
        %528 = vrot.lane.b32.xlu0 %v442, 4
        %v529 = vpop.permute.xlu0 %528
        %530 = vrot.lane.b32.xlu0 %v443, 4
        %v531 = vpop.permute.xlu0 %530
        %532 = vrot.lane.b32.xlu0 %v444, 4
        %v533 = vpop.permute.xlu0 %532
        %534 = vrot.lane.b32.xlu0 %v445, 4
        %v535 = vpop.permute.xlu0 %534
        %536 = vrot.lane.b32.xlu0 %v446, 4
        %v537 = vpop.permute.xlu0 %536
        %538 = vrot.lane.b32.xlu0 %v447, 4
        %v539 = vpop.permute.xlu0 %538
        %540 = vrot.lane.b32.xlu0 %v448, 4
        %v541 = vpop.permute.xlu0 %540
        %542 = vrot.lane.b32.xlu0 %v449, 4
        %v543 = vpop.permute.xlu0 %542
        %544 = vrot.lane.b32.xlu0 %v450, 4
        %v545 = vpop.permute.xlu0 %544
        %546 = vrot.lane.b32.xlu0 %v451, 4
        %v547 = vpop.permute.xlu0 %546
        %vm580 = vcmask 60448
        %581 = vst.msk [vmem:[#allocation3] sm:$0xf] %vm580, %v485
        %582 = vst.msk [vmem:[#allocation3 + $0x4] sm:$0xf] %vm580, %v487
        %583 = vst.msk [vmem:[#allocation3 + $0x8] sm:$0xf] %vm580, %v489
        %584 = vst.msk [vmem:[#allocation3 + $0xc] sm:$0xf] %vm580, %v491
        %585 = vst.msk [vmem:[#allocation3 + $0x10] sm:$0xf] %vm580, %v493
        %586 = vst.msk [vmem:[#allocation3 + $0x14] sm:$0xf] %vm580, %v495
        %587 = vst.msk [vmem:[#allocation3 + $0x18] sm:$0xf] %vm580, %v497
        %588 = vst.msk [vmem:[#allocation3 + $0x1c] sm:$0xf] %vm580, %v499
        %589 = vst.msk [vmem:[#allocation3 + $0x20] sm:$0xf] %vm580, %v501
        %590 = vst.msk [vmem:[#allocation3 + $0x24] sm:$0xf] %vm580, %v503
        %591 = vst.msk [vmem:[#allocation3 + $0x28] sm:$0xf] %vm580, %v505
        %592 = vst.msk [vmem:[#allocation3 + $0x2c] sm:$0xf] %vm580, %v507
        %593 = vst.msk [vmem:[#allocation3 + $0x30] sm:$0xf] %vm580, %v509
        %594 = vst.msk [vmem:[#allocation3 + $0x34] sm:$0xf] %vm580, %v511
        %595 = vst.msk [vmem:[#allocation3 + $0x38] sm:$0xf] %vm580, %v513
        %596 = vst.msk [vmem:[#allocation3 + $0x3c] sm:$0xf] %vm580, %v515
        %597 = vst.msk [vmem:[#allocation3 + $0x40] sm:$0xf] %vm580, %v517
        %598 = vst.msk [vmem:[#allocation3 + $0x44] sm:$0xf] %vm580, %v519
        %599 = vst.msk [vmem:[#allocation3 + $0x48] sm:$0xf] %vm580, %v521
        %600 = vst.msk [vmem:[#allocation3 + $0x4c] sm:$0xf] %vm580, %v523
        %601 = vst.msk [vmem:[#allocation3 + $0x50] sm:$0xf] %vm580, %v525
        %602 = vst.msk [vmem:[#allocation3 + $0x54] sm:$0xf] %vm580, %v527
        %603 = vst.msk [vmem:[#allocation3 + $0x58] sm:$0xf] %vm580, %v529
        %604 = vst.msk [vmem:[#allocation3 + $0x5c] sm:$0xf] %vm580, %v531
        %605 = vst.msk [vmem:[#allocation3 + $0x60] sm:$0xf] %vm580, %v533
        %606 = vst.msk [vmem:[#allocation3 + $0x64] sm:$0xf] %vm580, %v535
        %607 = vst.msk [vmem:[#allocation3 + $0x68] sm:$0xf] %vm580, %v537
        %608 = vst.msk [vmem:[#allocation3 + $0x6c] sm:$0xf] %vm580, %v539
        %609 = vst.msk [vmem:[#allocation3 + $0x70] sm:$0xf] %vm580, %v541
        %610 = vst.msk [vmem:[#allocation3 + $0x74] sm:$0xf] %vm580, %v543
        %611 = vst.msk [vmem:[#allocation3 + $0x78] sm:$0xf] %vm580, %v545
        %612 = vst.msk [vmem:[#allocation3 + $0x7c] sm:$0xf] %vm580, %v547
        %v613 = vld [vmem:[#allocation2 + $0x2] sm:$0xff]
        %v614 = vld [vmem:[#allocation2 + $0xa] sm:$0xff]
        %v615 = vld [vmem:[#allocation2 + $0x1a] sm:$0xff]
        %v616 = vld [vmem:[#allocation2 + $0x22] sm:$0xff]
        %v617 = vld [vmem:[#allocation2 + $0x32] sm:$0xff]
        %v618 = vld [vmem:[#allocation2 + $0x3a] sm:$0xff]
        %v619 = vld [vmem:[#allocation2 + $0x4a] sm:$0xff]
        %v620 = vld [vmem:[#allocation2 + $0x52] sm:$0xff]
        %v621 = vld [vmem:[#allocation2 + $0x62] sm:$0xff]
        %v622 = vld [vmem:[#allocation2 + $0x6a] sm:$0xff]
        %v623 = vld [vmem:[#allocation2 + $0x7a] sm:$0xff]
        %v624 = vld [vmem:[#allocation2 + $0x82] sm:$0xff]
        %v625 = vld [vmem:[#allocation2 + $0x92] sm:$0xff]
        %v626 = vld [vmem:[#allocation2 + $0x9a] sm:$0xff]
        %v627 = vld [vmem:[#allocation2 + $0xaa] sm:$0xff]
        %v628 = vld [vmem:[#allocation2 + $0xb2] sm:$0xff]
        %v629 = vld [vmem:[#allocation2 + $0xc2] sm:$0xff]
        %v630 = vld [vmem:[#allocation2 + $0xca] sm:$0xff]
        %v631 = vld [vmem:[#allocation2 + $0xda] sm:$0xff]
        %v632 = vld [vmem:[#allocation2 + $0xe2] sm:$0xff]
        %v633 = vld [vmem:[#allocation2 + $0xf2] sm:$0xff]
        %v634 = vld [vmem:[#allocation2 + $0xfa] sm:$0xff]
        %v635 = vld [vmem:[#allocation2 + $0x10a] sm:$0xff]
        %v636 = vld [vmem:[#allocation2 + $0x112] sm:$0xff]
        %v637 = vld [vmem:[#allocation2 + $0x122] sm:$0xff]
        %v638 = vld [vmem:[#allocation2 + $0x12a] sm:$0xff]
        %v639 = vld [vmem:[#allocation2 + $0x13a] sm:$0xff]
        %v640 = vld [vmem:[#allocation2 + $0x142] sm:$0xff]
        %v641 = vld [vmem:[#allocation2 + $0x152] sm:$0xff]
        %v642 = vld [vmem:[#allocation2 + $0x15a] sm:$0xff]
        %v643 = vld [vmem:[#allocation2 + $0x16a] sm:$0xff]
        %v644 = vld [vmem:[#allocation2 + $0x172] sm:$0xff]
        %v645 = vpack.c.bf16 %v613, %v613
        %v646 = vpack.c.bf16 %v614, %v614
        %v647 = vpack.c.bf16 %v615, %v615
        %v648 = vpack.c.bf16 %v616, %v616
        %v649 = vpack.c.bf16 %v617, %v617
        %v650 = vpack.c.bf16 %v618, %v618
        %v651 = vpack.c.bf16 %v619, %v619
        %v652 = vpack.c.bf16 %v620, %v620
        %v653 = vpack.c.bf16 %v621, %v621
        %v654 = vpack.c.bf16 %v622, %v622
        %v655 = vpack.c.bf16 %v623, %v623
        %v656 = vpack.c.bf16 %v624, %v624
        %v657 = vpack.c.bf16 %v625, %v625
        %v658 = vpack.c.bf16 %v626, %v626
        %v659 = vpack.c.bf16 %v627, %v627
        %v660 = vpack.c.bf16 %v628, %v628
        %v661 = vpack.c.bf16 %v629, %v629
        %v662 = vpack.c.bf16 %v630, %v630
        %v663 = vpack.c.bf16 %v631, %v631
        %v664 = vpack.c.bf16 %v632, %v632
        %v665 = vpack.c.bf16 %v633, %v633
        %v666 = vpack.c.bf16 %v634, %v634
        %v667 = vpack.c.bf16 %v635, %v635
        %v668 = vpack.c.bf16 %v636, %v636
        %v669 = vpack.c.bf16 %v637, %v637
        %v670 = vpack.c.bf16 %v638, %v638
        %v671 = vpack.c.bf16 %v639, %v639
        %v672 = vpack.c.bf16 %v640, %v640
        %v673 = vpack.c.bf16 %v641, %v641
        %v674 = vpack.c.bf16 %v642, %v642
        %v675 = vpack.c.bf16 %v643, %v643
        %v676 = vpack.c.bf16 %v644, %v644
        %709 = vrot.lane.b32.xlu0 %v645, 8
        %v710 = vpop.permute.xlu0 %709
        %711 = vrot.lane.b32.xlu0 %v646, 8
        %v712 = vpop.permute.xlu0 %711
        %713 = vrot.lane.b32.xlu0 %v647, 8
        %v714 = vpop.permute.xlu0 %713
        %715 = vrot.lane.b32.xlu0 %v648, 8
        %v716 = vpop.permute.xlu0 %715
        %717 = vrot.lane.b32.xlu0 %v649, 8
        %v718 = vpop.permute.xlu0 %717
        %719 = vrot.lane.b32.xlu0 %v650, 8
        %v720 = vpop.permute.xlu0 %719
        %721 = vrot.lane.b32.xlu0 %v651, 8
        %v722 = vpop.permute.xlu0 %721
        %723 = vrot.lane.b32.xlu0 %v652, 8
        %v724 = vpop.permute.xlu0 %723
        %725 = vrot.lane.b32.xlu0 %v653, 8
        %v726 = vpop.permute.xlu0 %725
        %727 = vrot.lane.b32.xlu0 %v654, 8
        %v728 = vpop.permute.xlu0 %727
        %729 = vrot.lane.b32.xlu0 %v655, 8
        %v730 = vpop.permute.xlu0 %729
        %731 = vrot.lane.b32.xlu0 %v656, 8
        %v732 = vpop.permute.xlu0 %731
        %733 = vrot.lane.b32.xlu0 %v657, 8
        %v734 = vpop.permute.xlu0 %733
        %735 = vrot.lane.b32.xlu0 %v658, 8
        %v736 = vpop.permute.xlu0 %735
        %737 = vrot.lane.b32.xlu0 %v659, 8
        %v738 = vpop.permute.xlu0 %737
        %739 = vrot.lane.b32.xlu0 %v660, 8
        %v740 = vpop.permute.xlu0 %739
        %741 = vrot.lane.b32.xlu0 %v661, 8
        %v742 = vpop.permute.xlu0 %741
        %743 = vrot.lane.b32.xlu0 %v662, 8
        %v744 = vpop.permute.xlu0 %743
        %745 = vrot.lane.b32.xlu0 %v663, 8
        %v746 = vpop.permute.xlu0 %745
        %747 = vrot.lane.b32.xlu0 %v664, 8
        %v748 = vpop.permute.xlu0 %747
        %749 = vrot.lane.b32.xlu0 %v665, 8
        %v750 = vpop.permute.xlu0 %749
        %751 = vrot.lane.b32.xlu0 %v666, 8
        %v752 = vpop.permute.xlu0 %751
        %753 = vrot.lane.b32.xlu0 %v667, 8
        %v754 = vpop.permute.xlu0 %753
        %755 = vrot.lane.b32.xlu0 %v668, 8
        %v756 = vpop.permute.xlu0 %755
        %757 = vrot.lane.b32.xlu0 %v669, 8
        %v758 = vpop.permute.xlu0 %757
        %759 = vrot.lane.b32.xlu0 %v670, 8
        %v760 = vpop.permute.xlu0 %759
        %761 = vrot.lane.b32.xlu0 %v671, 8
        %v762 = vpop.permute.xlu0 %761
        %763 = vrot.lane.b32.xlu0 %v672, 8
        %v764 = vpop.permute.xlu0 %763
        %765 = vrot.lane.b32.xlu0 %v673, 8
        %v766 = vpop.permute.xlu0 %765
        %767 = vrot.lane.b32.xlu0 %v674, 8
        %v768 = vpop.permute.xlu0 %767
        %769 = vrot.lane.b32.xlu0 %v675, 8
        %v770 = vpop.permute.xlu0 %769
        %771 = vrot.lane.b32.xlu0 %v676, 8
        %v772 = vpop.permute.xlu0 %771
        %vm805 = vcmask 93248
        %806 = vst.msk [vmem:[#allocation3] sm:$0xf] %vm805, %v710
        %807 = vst.msk [vmem:[#allocation3 + $0x4] sm:$0xf] %vm805, %v712
        %808 = vst.msk [vmem:[#allocation3 + $0x8] sm:$0xf] %vm805, %v714
        %809 = vst.msk [vmem:[#allocation3 + $0xc] sm:$0xf] %vm805, %v716
        %810 = vst.msk [vmem:[#allocation3 + $0x10] sm:$0xf] %vm805, %v718
        %811 = vst.msk [vmem:[#allocation3 + $0x14] sm:$0xf] %vm805, %v720
        %812 = vst.msk [vmem:[#allocation3 + $0x18] sm:$0xf] %vm805, %v722
        %813 = vst.msk [vmem:[#allocation3 + $0x1c] sm:$0xf] %vm805, %v724
        %814 = vst.msk [vmem:[#allocation3 + $0x20] sm:$0xf] %vm805, %v726
        %815 = vst.msk [vmem:[#allocation3 + $0x24] sm:$0xf] %vm805, %v728
        %816 = vst.msk [vmem:[#allocation3 + $0x28] sm:$0xf] %vm805, %v730
        %817 = vst.msk [vmem:[#allocation3 + $0x2c] sm:$0xf] %vm805, %v732
        %818 = vst.msk [vmem:[#allocation3 + $0x30] sm:$0xf] %vm805, %v734
        %819 = vst.msk [vmem:[#allocation3 + $0x34] sm:$0xf] %vm805, %v736
        %820 = vst.msk [vmem:[#allocation3 + $0x38] sm:$0xf] %vm805, %v738
        %821 = vst.msk [vmem:[#allocation3 + $0x3c] sm:$0xf] %vm805, %v740
        %822 = vst.msk [vmem:[#allocation3 + $0x40] sm:$0xf] %vm805, %v742
        %823 = vst.msk [vmem:[#allocation3 + $0x44] sm:$0xf] %vm805, %v744
        %824 = vst.msk [vmem:[#allocation3 + $0x48] sm:$0xf] %vm805, %v746
        %825 = vst.msk [vmem:[#allocation3 + $0x4c] sm:$0xf] %vm805, %v748
        %826 = vst.msk [vmem:[#allocation3 + $0x50] sm:$0xf] %vm805, %v750
        %827 = vst.msk [vmem:[#allocation3 + $0x54] sm:$0xf] %vm805, %v752
        %828 = vst.msk [vmem:[#allocation3 + $0x58] sm:$0xf] %vm805, %v754
        %829 = vst.msk [vmem:[#allocation3 + $0x5c] sm:$0xf] %vm805, %v756
        %830 = vst.msk [vmem:[#allocation3 + $0x60] sm:$0xf] %vm805, %v758
        %831 = vst.msk [vmem:[#allocation3 + $0x64] sm:$0xf] %vm805, %v760
        %832 = vst.msk [vmem:[#allocation3 + $0x68] sm:$0xf] %vm805, %v762
        %833 = vst.msk [vmem:[#allocation3 + $0x6c] sm:$0xf] %vm805, %v764
        %834 = vst.msk [vmem:[#allocation3 + $0x70] sm:$0xf] %vm805, %v766
        %835 = vst.msk [vmem:[#allocation3 + $0x74] sm:$0xf] %vm805, %v768
        %836 = vst.msk [vmem:[#allocation3 + $0x78] sm:$0xf] %vm805, %v770
        %837 = vst.msk [vmem:[#allocation3 + $0x7c] sm:$0xf] %vm805, %v772
        %v838 = vld [vmem:[%s258] sm:$0xff]
        %v839 = vld [vmem:[%s258 + $0x8] sm:$0xff]
        %v840 = vld [vmem:[%s258 + $0x18] sm:$0xff]
        %v841 = vld [vmem:[%s258 + $0x20] sm:$0xff]
        %v842 = vld [vmem:[%s258 + $0x30] sm:$0xff]
        %v843 = vld [vmem:[%s258 + $0x38] sm:$0xff]
        %v844 = vld [vmem:[%s258 + $0x48] sm:$0xff]
        %v845 = vld [vmem:[%s258 + $0x50] sm:$0xff]
        %v846 = vld [vmem:[%s258 + $0x60] sm:$0xff]
        %v847 = vld [vmem:[%s258 + $0x68] sm:$0xff]
        %v848 = vld [vmem:[%s258 + $0x78] sm:$0xff]
        %v849 = vld [vmem:[%s258 + $0x80] sm:$0xff]
        %v850 = vld [vmem:[%s258 + $0x90] sm:$0xff]
        %v851 = vld [vmem:[%s258 + $0x98] sm:$0xff]
        %v852 = vld [vmem:[%s258 + $0xa8] sm:$0xff]
        %v853 = vld [vmem:[%s258 + $0xb0] sm:$0xff]
        %v854 = vld [vmem:[%s258 + $0xc0] sm:$0xff]
        %v855 = vld [vmem:[%s258 + $0xc8] sm:$0xff]
        %v856 = vld [vmem:[%s258 + $0xd8] sm:$0xff]
        %v857 = vld [vmem:[%s258 + $0xe0] sm:$0xff]
        %v858 = vld [vmem:[%s258 + $0xf0] sm:$0xff]
        %v859 = vld [vmem:[%s258 + $0xf8] sm:$0xff]
        %v860 = vld [vmem:[%s258 + $0x108] sm:$0xff]
        %v861 = vld [vmem:[%s258 + $0x110] sm:$0xff]
        %v862 = vld [vmem:[%s258 + $0x120] sm:$0xff]
        %v863 = vld [vmem:[%s258 + $0x128] sm:$0xff]
        %v864 = vld [vmem:[%s258 + $0x138] sm:$0xff]
        %v865 = vld [vmem:[%s258 + $0x140] sm:$0xff]
        %v866 = vld [vmem:[%s258 + $0x150] sm:$0xff]
        %v867 = vld [vmem:[%s258 + $0x158] sm:$0xff]
        %v868 = vld [vmem:[%s258 + $0x168] sm:$0xff]
        %v869 = vld [vmem:[%s258 + $0x170] sm:$0xff]
        %v870 = vpack.c.bf16 %v838, %v838
        %v871 = vpack.c.bf16 %v839, %v839
        %v872 = vpack.c.bf16 %v840, %v840
        %v873 = vpack.c.bf16 %v841, %v841
        %v874 = vpack.c.bf16 %v842, %v842
        %v875 = vpack.c.bf16 %v843, %v843
        %v876 = vpack.c.bf16 %v844, %v844
        %v877 = vpack.c.bf16 %v845, %v845
        %v878 = vpack.c.bf16 %v846, %v846
        %v879 = vpack.c.bf16 %v847, %v847
        %v880 = vpack.c.bf16 %v848, %v848
        %v881 = vpack.c.bf16 %v849, %v849
        %v882 = vpack.c.bf16 %v850, %v850
        %v883 = vpack.c.bf16 %v851, %v851
        %v884 = vpack.c.bf16 %v852, %v852
        %v885 = vpack.c.bf16 %v853, %v853
        %v886 = vpack.c.bf16 %v854, %v854
        %v887 = vpack.c.bf16 %v855, %v855
        %v888 = vpack.c.bf16 %v856, %v856
        %v889 = vpack.c.bf16 %v857, %v857
        %v890 = vpack.c.bf16 %v858, %v858
        %v891 = vpack.c.bf16 %v859, %v859
        %v892 = vpack.c.bf16 %v860, %v860
        %v893 = vpack.c.bf16 %v861, %v861
        %v894 = vpack.c.bf16 %v862, %v862
        %v895 = vpack.c.bf16 %v863, %v863
        %v896 = vpack.c.bf16 %v864, %v864
        %v897 = vpack.c.bf16 %v865, %v865
        %v898 = vpack.c.bf16 %v866, %v866
        %v899 = vpack.c.bf16 %v867, %v867
        %v900 = vpack.c.bf16 %v868, %v868
        %v901 = vpack.c.bf16 %v869, %v869
        %934 = vrot.lane.b32.xlu0 %v870, 12
        %v935 = vpop.permute.xlu0 %934
        %936 = vrot.lane.b32.xlu0 %v871, 12
        %v937 = vpop.permute.xlu0 %936
        %938 = vrot.lane.b32.xlu0 %v872, 12
        %v939 = vpop.permute.xlu0 %938
        %940 = vrot.lane.b32.xlu0 %v873, 12
        %v941 = vpop.permute.xlu0 %940
        %942 = vrot.lane.b32.xlu0 %v874, 12
        %v943 = vpop.permute.xlu0 %942
        %944 = vrot.lane.b32.xlu0 %v875, 12
        %v945 = vpop.permute.xlu0 %944
        %946 = vrot.lane.b32.xlu0 %v876, 12
        %v947 = vpop.permute.xlu0 %946
        %948 = vrot.lane.b32.xlu0 %v877, 12
        %v949 = vpop.permute.xlu0 %948
        %950 = vrot.lane.b32.xlu0 %v878, 12
        %v951 = vpop.permute.xlu0 %950
        %952 = vrot.lane.b32.xlu0 %v879, 12
        %v953 = vpop.permute.xlu0 %952
        %954 = vrot.lane.b32.xlu0 %v880, 12
        %v955 = vpop.permute.xlu0 %954
        %956 = vrot.lane.b32.xlu0 %v881, 12
        %v957 = vpop.permute.xlu0 %956
        %958 = vrot.lane.b32.xlu0 %v882, 12
        %v959 = vpop.permute.xlu0 %958
        %960 = vrot.lane.b32.xlu0 %v883, 12
        %v961 = vpop.permute.xlu0 %960
        %962 = vrot.lane.b32.xlu0 %v884, 12
        %v963 = vpop.permute.xlu0 %962
        %964 = vrot.lane.b32.xlu0 %v885, 12
        %v965 = vpop.permute.xlu0 %964
        %966 = vrot.lane.b32.xlu0 %v886, 12
        %v967 = vpop.permute.xlu0 %966
        %968 = vrot.lane.b32.xlu0 %v887, 12
        %v969 = vpop.permute.xlu0 %968
        %970 = vrot.lane.b32.xlu0 %v888, 12
        %v971 = vpop.permute.xlu0 %970
        %972 = vrot.lane.b32.xlu0 %v889, 12
        %v973 = vpop.permute.xlu0 %972
        %974 = vrot.lane.b32.xlu0 %v890, 12
        %v975 = vpop.permute.xlu0 %974
        %976 = vrot.lane.b32.xlu0 %v891, 12
        %v977 = vpop.permute.xlu0 %976
        %978 = vrot.lane.b32.xlu0 %v892, 12
        %v979 = vpop.permute.xlu0 %978
        %980 = vrot.lane.b32.xlu0 %v893, 12
        %v981 = vpop.permute.xlu0 %980
        %982 = vrot.lane.b32.xlu0 %v894, 12
        %v983 = vpop.permute.xlu0 %982
        %984 = vrot.lane.b32.xlu0 %v895, 12
        %v985 = vpop.permute.xlu0 %984
        %986 = vrot.lane.b32.xlu0 %v896, 12
        %v987 = vpop.permute.xlu0 %986
        %988 = vrot.lane.b32.xlu0 %v897, 12
        %v989 = vpop.permute.xlu0 %988
        %990 = vrot.lane.b32.xlu0 %v898, 12
        %v991 = vpop.permute.xlu0 %990
        %992 = vrot.lane.b32.xlu0 %v899, 12
        %v993 = vpop.permute.xlu0 %992
        %994 = vrot.lane.b32.xlu0 %v900, 12
        %v995 = vpop.permute.xlu0 %994
        %996 = vrot.lane.b32.xlu0 %v901, 12
        %v997 = vpop.permute.xlu0 %996
        %vm1030 = vcmask 126048
        %1031 = vst.msk [vmem:[#allocation3] sm:$0xf] %vm1030, %v935
        %1032 = vst.msk [vmem:[#allocation3 + $0x4] sm:$0xf] %vm1030, %v937
        %1033 = vst.msk [vmem:[#allocation3 + $0x8] sm:$0xf] %vm1030, %v939
        %1034 = vst.msk [vmem:[#allocation3 + $0xc] sm:$0xf] %vm1030, %v941
        %1035 = vst.msk [vmem:[#allocation3 + $0x10] sm:$0xf] %vm1030, %v943
        %1036 = vst.msk [vmem:[#allocation3 + $0x14] sm:$0xf] %vm1030, %v945
        %1037 = vst.msk [vmem:[#allocation3 + $0x18] sm:$0xf] %vm1030, %v947
        %1038 = vst.msk [vmem:[#allocation3 + $0x1c] sm:$0xf] %vm1030, %v949
        %1039 = vst.msk [vmem:[#allocation3 + $0x20] sm:$0xf] %vm1030, %v951
        %1040 = vst.msk [vmem:[#allocation3 + $0x24] sm:$0xf] %vm1030, %v953
        %1041 = vst.msk [vmem:[#allocation3 + $0x28] sm:$0xf] %vm1030, %v955
        %1042 = vst.msk [vmem:[#allocation3 + $0x2c] sm:$0xf] %vm1030, %v957
        %1043 = vst.msk [vmem:[#allocation3 + $0x30] sm:$0xf] %vm1030, %v959
        %1044 = vst.msk [vmem:[#allocation3 + $0x34] sm:$0xf] %vm1030, %v961
        %1045 = vst.msk [vmem:[#allocation3 + $0x38] sm:$0xf] %vm1030, %v963
        %1046 = vst.msk [vmem:[#allocation3 + $0x3c] sm:$0xf] %vm1030, %v965
        %1047 = vst.msk [vmem:[#allocation3 + $0x40] sm:$0xf] %vm1030, %v967
        %1048 = vst.msk [vmem:[#allocation3 + $0x44] sm:$0xf] %vm1030, %v969
        %1049 = vst.msk [vmem:[#allocation3 + $0x48] sm:$0xf] %vm1030, %v971
        %1050 = vst.msk [vmem:[#allocation3 + $0x4c] sm:$0xf] %vm1030, %v973
        %1051 = vst.msk [vmem:[#allocation3 + $0x50] sm:$0xf] %vm1030, %v975
        %1052 = vst.msk [vmem:[#allocation3 + $0x54] sm:$0xf] %vm1030, %v977
        %1053 = vst.msk [vmem:[#allocation3 + $0x58] sm:$0xf] %vm1030, %v979
        %1054 = vst.msk [vmem:[#allocation3 + $0x5c] sm:$0xf] %vm1030, %v981
        %1055 = vst.msk [vmem:[#allocation3 + $0x60] sm:$0xf] %vm1030, %v983
        %1056 = vst.msk [vmem:[#allocation3 + $0x64] sm:$0xf] %vm1030, %v985
        %1057 = vst.msk [vmem:[#allocation3 + $0x68] sm:$0xf] %vm1030, %v987
        %1058 = vst.msk [vmem:[#allocation3 + $0x6c] sm:$0xf] %vm1030, %v989
        %1059 = vst.msk [vmem:[#allocation3 + $0x70] sm:$0xf] %vm1030, %v991
        %1060 = vst.msk [vmem:[#allocation3 + $0x74] sm:$0xf] %vm1030, %v993
        %1061 = vst.msk [vmem:[#allocation3 + $0x78] sm:$0xf] %vm1030, %v995
        %1062 = vst.msk [vmem:[#allocation3 + $0x7c] sm:$0xf] %vm1030, %v997
        %v1063 = vld [vmem:[%s258 + $0x1] sm:$0xff]
        %v1064 = vld [vmem:[%s258 + $0x9] sm:$0xff]
        %v1065 = vld [vmem:[%s258 + $0x19] sm:$0xff]
        %v1066 = vld [vmem:[%s258 + $0x21] sm:$0xff]
        %v1067 = vld [vmem:[%s258 + $0x31] sm:$0xff]
        %v1068 = vld [vmem:[%s258 + $0x39] sm:$0xff]
        %v1069 = vld [vmem:[%s258 + $0x49] sm:$0xff]
        %v1070 = vld [vmem:[%s258 + $0x51] sm:$0xff]
        %v1071 = vld [vmem:[%s258 + $0x61] sm:$0xff]
        %v1072 = vld [vmem:[%s258 + $0x69] sm:$0xff]
        %v1073 = vld [vmem:[%s258 + $0x79] sm:$0xff]
        %v1074 = vld [vmem:[%s258 + $0x81] sm:$0xff]
        %v1075 = vld [vmem:[%s258 + $0x91] sm:$0xff]
        %v1076 = vld [vmem:[%s258 + $0x99] sm:$0xff]
        %v1077 = vld [vmem:[%s258 + $0xa9] sm:$0xff]
        %v1078 = vld [vmem:[%s258 + $0xb1] sm:$0xff]
        %v1079 = vld [vmem:[%s258 + $0xc1] sm:$0xff]
        %v1080 = vld [vmem:[%s258 + $0xc9] sm:$0xff]
        %v1081 = vld [vmem:[%s258 + $0xd9] sm:$0xff]
        %v1082 = vld [vmem:[%s258 + $0xe1] sm:$0xff]
        %v1083 = vld [vmem:[%s258 + $0xf1] sm:$0xff]
        %v1084 = vld [vmem:[%s258 + $0xf9] sm:$0xff]
        %v1085 = vld [vmem:[%s258 + $0x109] sm:$0xff]
        %v1086 = vld [vmem:[%s258 + $0x111] sm:$0xff]
        %v1087 = vld [vmem:[%s258 + $0x121] sm:$0xff]
        %v1088 = vld [vmem:[%s258 + $0x129] sm:$0xff]
        %v1089 = vld [vmem:[%s258 + $0x139] sm:$0xff]
        %v1090 = vld [vmem:[%s258 + $0x141] sm:$0xff]
        %v1091 = vld [vmem:[%s258 + $0x151] sm:$0xff]
        %v1092 = vld [vmem:[%s258 + $0x159] sm:$0xff]
        %v1093 = vld [vmem:[%s258 + $0x169] sm:$0xff]
        %v1094 = vld [vmem:[%s258 + $0x171] sm:$0xff]
        %v1095 = vpack.c.bf16 %v1063, %v1063
        %v1096 = vpack.c.bf16 %v1064, %v1064
        %v1097 = vpack.c.bf16 %v1065, %v1065
        %v1098 = vpack.c.bf16 %v1066, %v1066
        %v1099 = vpack.c.bf16 %v1067, %v1067
        %v1100 = vpack.c.bf16 %v1068, %v1068
        %v1101 = vpack.c.bf16 %v1069, %v1069
        %v1102 = vpack.c.bf16 %v1070, %v1070
        %v1103 = vpack.c.bf16 %v1071, %v1071
        %v1104 = vpack.c.bf16 %v1072, %v1072
        %v1105 = vpack.c.bf16 %v1073, %v1073
        %v1106 = vpack.c.bf16 %v1074, %v1074
        %v1107 = vpack.c.bf16 %v1075, %v1075
        %v1108 = vpack.c.bf16 %v1076, %v1076
        %v1109 = vpack.c.bf16 %v1077, %v1077
        %v1110 = vpack.c.bf16 %v1078, %v1078
        %v1111 = vpack.c.bf16 %v1079, %v1079
        %v1112 = vpack.c.bf16 %v1080, %v1080
        %v1113 = vpack.c.bf16 %v1081, %v1081
        %v1114 = vpack.c.bf16 %v1082, %v1082
        %v1115 = vpack.c.bf16 %v1083, %v1083
        %v1116 = vpack.c.bf16 %v1084, %v1084
        %v1117 = vpack.c.bf16 %v1085, %v1085
        %v1118 = vpack.c.bf16 %v1086, %v1086
        %v1119 = vpack.c.bf16 %v1087, %v1087
        %v1120 = vpack.c.bf16 %v1088, %v1088
        %v1121 = vpack.c.bf16 %v1089, %v1089
        %v1122 = vpack.c.bf16 %v1090, %v1090
        %v1123 = vpack.c.bf16 %v1091, %v1091
        %v1124 = vpack.c.bf16 %v1092, %v1092
        %v1125 = vpack.c.bf16 %v1093, %v1093
        %v1126 = vpack.c.bf16 %v1094, %v1094
        %1159 = vrot.lane.b32.xlu0 %v1095, 16
        %v1160 = vpop.permute.xlu0 %1159
        %1161 = vrot.lane.b32.xlu0 %v1096, 16
        %v1162 = vpop.permute.xlu0 %1161
        %1163 = vrot.lane.b32.xlu0 %v1097, 16
        %v1164 = vpop.permute.xlu0 %1163
        %1165 = vrot.lane.b32.xlu0 %v1098, 16
        %v1166 = vpop.permute.xlu0 %1165
        %1167 = vrot.lane.b32.xlu0 %v1099, 16
        %v1168 = vpop.permute.xlu0 %1167
        %1169 = vrot.lane.b32.xlu0 %v1100, 16
        %v1170 = vpop.permute.xlu0 %1169
        %1171 = vrot.lane.b32.xlu0 %v1101, 16
        %v1172 = vpop.permute.xlu0 %1171
        %1173 = vrot.lane.b32.xlu0 %v1102, 16
        %v1174 = vpop.permute.xlu0 %1173
        %1175 = vrot.lane.b32.xlu0 %v1103, 16
        %v1176 = vpop.permute.xlu0 %1175
        %1177 = vrot.lane.b32.xlu0 %v1104, 16
        %v1178 = vpop.permute.xlu0 %1177
        %1179 = vrot.lane.b32.xlu0 %v1105, 16
        %v1180 = vpop.permute.xlu0 %1179
        %1181 = vrot.lane.b32.xlu0 %v1106, 16
        %v1182 = vpop.permute.xlu0 %1181
        %1183 = vrot.lane.b32.xlu0 %v1107, 16
        %v1184 = vpop.permute.xlu0 %1183
        %1185 = vrot.lane.b32.xlu0 %v1108, 16
        %v1186 = vpop.permute.xlu0 %1185
        %1187 = vrot.lane.b32.xlu0 %v1109, 16
        %v1188 = vpop.permute.xlu0 %1187
        %1189 = vrot.lane.b32.xlu0 %v1110, 16
        %v1190 = vpop.permute.xlu0 %1189
        %1191 = vrot.lane.b32.xlu0 %v1111, 16
        %v1192 = vpop.permute.xlu0 %1191
        %1193 = vrot.lane.b32.xlu0 %v1112, 16
        %v1194 = vpop.permute.xlu0 %1193
        %1195 = vrot.lane.b32.xlu0 %v1113, 16
        %v1196 = vpop.permute.xlu0 %1195
        %1197 = vrot.lane.b32.xlu0 %v1114, 16
        %v1198 = vpop.permute.xlu0 %1197
        %1199 = vrot.lane.b32.xlu0 %v1115, 16
        %v1200 = vpop.permute.xlu0 %1199
        %1201 = vrot.lane.b32.xlu0 %v1116, 16
        %v1202 = vpop.permute.xlu0 %1201
        %1203 = vrot.lane.b32.xlu0 %v1117, 16
        %v1204 = vpop.permute.xlu0 %1203
        %1205 = vrot.lane.b32.xlu0 %v1118, 16
        %v1206 = vpop.permute.xlu0 %1205
        %1207 = vrot.lane.b32.xlu0 %v1119, 16
        %v1208 = vpop.permute.xlu0 %1207
        %1209 = vrot.lane.b32.xlu0 %v1120, 16
        %v1210 = vpop.permute.xlu0 %1209
        %1211 = vrot.lane.b32.xlu0 %v1121, 16
        %v1212 = vpop.permute.xlu0 %1211
        %1213 = vrot.lane.b32.xlu0 %v1122, 16
        %v1214 = vpop.permute.xlu0 %1213
        %1215 = vrot.lane.b32.xlu0 %v1123, 16
        %v1216 = vpop.permute.xlu0 %1215
        %1217 = vrot.lane.b32.xlu0 %v1124, 16
        %v1218 = vpop.permute.xlu0 %1217
        %1219 = vrot.lane.b32.xlu0 %v1125, 16
        %v1220 = vpop.permute.xlu0 %1219
        %1221 = vrot.lane.b32.xlu0 %v1126, 16
        %v1222 = vpop.permute.xlu0 %1221
        %vm1255 = vcmask 158848
        %1256 = vst.msk [vmem:[#allocation3] sm:$0xf] %vm1255, %v1160
        %1257 = vst.msk [vmem:[#allocation3 + $0x4] sm:$0xf] %vm1255, %v1162
        %1258 = vst.msk [vmem:[#allocation3 + $0x8] sm:$0xf] %vm1255, %v1164
        %1259 = vst.msk [vmem:[#allocation3 + $0xc] sm:$0xf] %vm1255, %v1166
        %1260 = vst.msk [vmem:[#allocation3 + $0x10] sm:$0xf] %vm1255, %v1168
        %1261 = vst.msk [vmem:[#allocation3 + $0x14] sm:$0xf] %vm1255, %v1170
        %1262 = vst.msk [vmem:[#allocation3 + $0x18] sm:$0xf] %vm1255, %v1172
        %1263 = vst.msk [vmem:[#allocation3 + $0x1c] sm:$0xf] %vm1255, %v1174
        %1264 = vst.msk [vmem:[#allocation3 + $0x20] sm:$0xf] %vm1255, %v1176
        %1265 = vst.msk [vmem:[#allocation3 + $0x24] sm:$0xf] %vm1255, %v1178
        %1266 = vst.msk [vmem:[#allocation3 + $0x28] sm:$0xf] %vm1255, %v1180
        %1267 = vst.msk [vmem:[#allocation3 + $0x2c] sm:$0xf] %vm1255, %v1182
        %1268 = vst.msk [vmem:[#allocation3 + $0x30] sm:$0xf] %vm1255, %v1184
        %1269 = vst.msk [vmem:[#allocation3 + $0x34] sm:$0xf] %vm1255, %v1186
        %1270 = vst.msk [vmem:[#allocation3 + $0x38] sm:$0xf] %vm1255, %v1188
        %1271 = vst.msk [vmem:[#allocation3 + $0x3c] sm:$0xf] %vm1255, %v1190
        %1272 = vst.msk [vmem:[#allocation3 + $0x40] sm:$0xf] %vm1255, %v1192
        %1273 = vst.msk [vmem:[#allocation3 + $0x44] sm:$0xf] %vm1255, %v1194
        %1274 = vst.msk [vmem:[#allocation3 + $0x48] sm:$0xf] %vm1255, %v1196
        %1275 = vst.msk [vmem:[#allocation3 + $0x4c] sm:$0xf] %vm1255, %v1198
        %1276 = vst.msk [vmem:[#allocation3 + $0x50] sm:$0xf] %vm1255, %v1200
        %1277 = vst.msk [vmem:[#allocation3 + $0x54] sm:$0xf] %vm1255, %v1202
        %1278 = vst.msk [vmem:[#allocation3 + $0x58] sm:$0xf] %vm1255, %v1204
        %1279 = vst.msk [vmem:[#allocation3 + $0x5c] sm:$0xf] %vm1255, %v1206
        %1280 = vst.msk [vmem:[#allocation3 + $0x60] sm:$0xf] %vm1255, %v1208
        %1281 = vst.msk [vmem:[#allocation3 + $0x64] sm:$0xf] %vm1255, %v1210
        %1282 = vst.msk [vmem:[#allocation3 + $0x68] sm:$0xf] %vm1255, %v1212
        %1283 = vst.msk [vmem:[#allocation3 + $0x6c] sm:$0xf] %vm1255, %v1214
        %1284 = vst.msk [vmem:[#allocation3 + $0x70] sm:$0xf] %vm1255, %v1216
        %1285 = vst.msk [vmem:[#allocation3 + $0x74] sm:$0xf] %vm1255, %v1218
        %1286 = vst.msk [vmem:[#allocation3 + $0x78] sm:$0xf] %vm1255, %v1220
        %1287 = vst.msk [vmem:[#allocation3 + $0x7c] sm:$0xf] %vm1255, %v1222
        %v1288 = vld [vmem:[%s258 + $0x2] sm:$0xff]
        %v1289 = vld [vmem:[%s258 + $0xa] sm:$0xff]
        %v1290 = vld [vmem:[%s258 + $0x1a] sm:$0xff]
        %v1291 = vld [vmem:[%s258 + $0x22] sm:$0xff]
        %v1292 = vld [vmem:[%s258 + $0x32] sm:$0xff]
        %v1293 = vld [vmem:[%s258 + $0x3a] sm:$0xff]
        %v1294 = vld [vmem:[%s258 + $0x4a] sm:$0xff]
        %v1295 = vld [vmem:[%s258 + $0x52] sm:$0xff]
        %v1296 = vld [vmem:[%s258 + $0x62] sm:$0xff]
        %v1297 = vld [vmem:[%s258 + $0x6a] sm:$0xff]
        %v1298 = vld [vmem:[%s258 + $0x7a] sm:$0xff]
        %v1299 = vld [vmem:[%s258 + $0x82] sm:$0xff]
        %v1300 = vld [vmem:[%s258 + $0x92] sm:$0xff]
        %v1301 = vld [vmem:[%s258 + $0x9a] sm:$0xff]
        %v1302 = vld [vmem:[%s258 + $0xaa] sm:$0xff]
        %v1303 = vld [vmem:[%s258 + $0xb2] sm:$0xff]
        %v1304 = vld [vmem:[%s258 + $0xc2] sm:$0xff]
        %v1305 = vld [vmem:[%s258 + $0xca] sm:$0xff]
        %v1306 = vld [vmem:[%s258 + $0xda] sm:$0xff]
        %v1307 = vld [vmem:[%s258 + $0xe2] sm:$0xff]
        %v1308 = vld [vmem:[%s258 + $0xf2] sm:$0xff]
        %v1309 = vld [vmem:[%s258 + $0xfa] sm:$0xff]
        %v1310 = vld [vmem:[%s258 + $0x10a] sm:$0xff]
        %v1311 = vld [vmem:[%s258 + $0x112] sm:$0xff]
        %v1312 = vld [vmem:[%s258 + $0x122] sm:$0xff]
        %v1313 = vld [vmem:[%s258 + $0x12a] sm:$0xff]
        %v1314 = vld [vmem:[%s258 + $0x13a] sm:$0xff]
        %v1315 = vld [vmem:[%s258 + $0x142] sm:$0xff]
        %v1316 = vld [vmem:[%s258 + $0x152] sm:$0xff]
        %v1317 = vld [vmem:[%s258 + $0x15a] sm:$0xff]
        %v1318 = vld [vmem:[%s258 + $0x16a] sm:$0xff]
        %v1319 = vld [vmem:[%s258 + $0x172] sm:$0xff]
        %v1320 = vpack.c.bf16 %v1288, %v1288
        %v1321 = vpack.c.bf16 %v1289, %v1289
        %v1322 = vpack.c.bf16 %v1290, %v1290
        %v1323 = vpack.c.bf16 %v1291, %v1291
        %v1324 = vpack.c.bf16 %v1292, %v1292
        %v1325 = vpack.c.bf16 %v1293, %v1293
        %v1326 = vpack.c.bf16 %v1294, %v1294
        %v1327 = vpack.c.bf16 %v1295, %v1295
        %v1328 = vpack.c.bf16 %v1296, %v1296
        %v1329 = vpack.c.bf16 %v1297, %v1297
        %v1330 = vpack.c.bf16 %v1298, %v1298
        %v1331 = vpack.c.bf16 %v1299, %v1299
        %v1332 = vpack.c.bf16 %v1300, %v1300
        %v1333 = vpack.c.bf16 %v1301, %v1301
        %v1334 = vpack.c.bf16 %v1302, %v1302
        %v1335 = vpack.c.bf16 %v1303, %v1303
        %v1336 = vpack.c.bf16 %v1304, %v1304
        %v1337 = vpack.c.bf16 %v1305, %v1305
        %v1338 = vpack.c.bf16 %v1306, %v1306
        %v1339 = vpack.c.bf16 %v1307, %v1307
        %v1340 = vpack.c.bf16 %v1308, %v1308
        %v1341 = vpack.c.bf16 %v1309, %v1309
        %v1342 = vpack.c.bf16 %v1310, %v1310
        %v1343 = vpack.c.bf16 %v1311, %v1311
        %v1344 = vpack.c.bf16 %v1312, %v1312
        %v1345 = vpack.c.bf16 %v1313, %v1313
        %v1346 = vpack.c.bf16 %v1314, %v1314
        %v1347 = vpack.c.bf16 %v1315, %v1315
        %v1348 = vpack.c.bf16 %v1316, %v1316
        %v1349 = vpack.c.bf16 %v1317, %v1317
        %v1350 = vpack.c.bf16 %v1318, %v1318
        %v1351 = vpack.c.bf16 %v1319, %v1319
        %1384 = vrot.lane.b32.xlu0 %v1320, 20
        %v1385 = vpop.permute.xlu0 %1384
        %1386 = vrot.lane.b32.xlu0 %v1321, 20
        %v1387 = vpop.permute.xlu0 %1386
        %1388 = vrot.lane.b32.xlu0 %v1322, 20
        %v1389 = vpop.permute.xlu0 %1388
        %1390 = vrot.lane.b32.xlu0 %v1323, 20
        %v1391 = vpop.permute.xlu0 %1390
        %1392 = vrot.lane.b32.xlu0 %v1324, 20
        %v1393 = vpop.permute.xlu0 %1392
        %1394 = vrot.lane.b32.xlu0 %v1325, 20
        %v1395 = vpop.permute.xlu0 %1394
        %1396 = vrot.lane.b32.xlu0 %v1326, 20
        %v1397 = vpop.permute.xlu0 %1396
        %1398 = vrot.lane.b32.xlu0 %v1327, 20
        %v1399 = vpop.permute.xlu0 %1398
        %1400 = vrot.lane.b32.xlu0 %v1328, 20
        %v1401 = vpop.permute.xlu0 %1400
        %1402 = vrot.lane.b32.xlu0 %v1329, 20
        %v1403 = vpop.permute.xlu0 %1402
        %1404 = vrot.lane.b32.xlu0 %v1330, 20
        %v1405 = vpop.permute.xlu0 %1404
        %1406 = vrot.lane.b32.xlu0 %v1331, 20
        %v1407 = vpop.permute.xlu0 %1406
        %1408 = vrot.lane.b32.xlu0 %v1332, 20
        %v1409 = vpop.permute.xlu0 %1408
        %1410 = vrot.lane.b32.xlu0 %v1333, 20
        %v1411 = vpop.permute.xlu0 %1410
        %1412 = vrot.lane.b32.xlu0 %v1334, 20
        %v1413 = vpop.permute.xlu0 %1412
        %1414 = vrot.lane.b32.xlu0 %v1335, 20
        %v1415 = vpop.permute.xlu0 %1414
        %1416 = vrot.lane.b32.xlu0 %v1336, 20
        %v1417 = vpop.permute.xlu0 %1416
        %1418 = vrot.lane.b32.xlu0 %v1337, 20
        %v1419 = vpop.permute.xlu0 %1418
        %1420 = vrot.lane.b32.xlu0 %v1338, 20
        %v1421 = vpop.permute.xlu0 %1420
        %1422 = vrot.lane.b32.xlu0 %v1339, 20
        %v1423 = vpop.permute.xlu0 %1422
        %1424 = vrot.lane.b32.xlu0 %v1340, 20
        %v1425 = vpop.permute.xlu0 %1424
        %1426 = vrot.lane.b32.xlu0 %v1341, 20
        %v1427 = vpop.permute.xlu0 %1426
        %1428 = vrot.lane.b32.xlu0 %v1342, 20
        %v1429 = vpop.permute.xlu0 %1428
        %1430 = vrot.lane.b32.xlu0 %v1343, 20
        %v1431 = vpop.permute.xlu0 %1430
        %1432 = vrot.lane.b32.xlu0 %v1344, 20
        %v1433 = vpop.permute.xlu0 %1432
        %1434 = vrot.lane.b32.xlu0 %v1345, 20
        %v1435 = vpop.permute.xlu0 %1434
        %1436 = vrot.lane.b32.xlu0 %v1346, 20
        %v1437 = vpop.permute.xlu0 %1436
        %1438 = vrot.lane.b32.xlu0 %v1347, 20
        %v1439 = vpop.permute.xlu0 %1438
        %1440 = vrot.lane.b32.xlu0 %v1348, 20
        %v1441 = vpop.permute.xlu0 %1440
        %1442 = vrot.lane.b32.xlu0 %v1349, 20
        %v1443 = vpop.permute.xlu0 %1442
        %1444 = vrot.lane.b32.xlu0 %v1350, 20
        %v1445 = vpop.permute.xlu0 %1444
        %1446 = vrot.lane.b32.xlu0 %v1351, 20
        %v1447 = vpop.permute.xlu0 %1446
        %vm1480 = vcmask 191648
        %1481 = vst.msk [vmem:[#allocation3] sm:$0xf] %vm1480, %v1385
        %1482 = vst.msk [vmem:[#allocation3 + $0x4] sm:$0xf] %vm1480, %v1387
        %1483 = vst.msk [vmem:[#allocation3 + $0x8] sm:$0xf] %vm1480, %v1389
        %1484 = vst.msk [vmem:[#allocation3 + $0xc] sm:$0xf] %vm1480, %v1391
        %1485 = vst.msk [vmem:[#allocation3 + $0x10] sm:$0xf] %vm1480, %v1393
        %1486 = vst.msk [vmem:[#allocation3 + $0x14] sm:$0xf] %vm1480, %v1395
        %1487 = vst.msk [vmem:[#allocation3 + $0x18] sm:$0xf] %vm1480, %v1397
        %1488 = vst.msk [vmem:[#allocation3 + $0x1c] sm:$0xf] %vm1480, %v1399
        %1489 = vst.msk [vmem:[#allocation3 + $0x20] sm:$0xf] %vm1480, %v1401
        %1490 = vst.msk [vmem:[#allocation3 + $0x24] sm:$0xf] %vm1480, %v1403
        %1491 = vst.msk [vmem:[#allocation3 + $0x28] sm:$0xf] %vm1480, %v1405
        %1492 = vst.msk [vmem:[#allocation3 + $0x2c] sm:$0xf] %vm1480, %v1407
        %1493 = vst.msk [vmem:[#allocation3 + $0x30] sm:$0xf] %vm1480, %v1409
        %1494 = vst.msk [vmem:[#allocation3 + $0x34] sm:$0xf] %vm1480, %v1411
        %1495 = vst.msk [vmem:[#allocation3 + $0x38] sm:$0xf] %vm1480, %v1413
        %1496 = vst.msk [vmem:[#allocation3 + $0x3c] sm:$0xf] %vm1480, %v1415
        %1497 = vst.msk [vmem:[#allocation3 + $0x40] sm:$0xf] %vm1480, %v1417
        %1498 = vst.msk [vmem:[#allocation3 + $0x44] sm:$0xf] %vm1480, %v1419
        %1499 = vst.msk [vmem:[#allocation3 + $0x48] sm:$0xf] %vm1480, %v1421
        %1500 = vst.msk [vmem:[#allocation3 + $0x4c] sm:$0xf] %vm1480, %v1423
        %1501 = vst.msk [vmem:[#allocation3 + $0x50] sm:$0xf] %vm1480, %v1425
        %1502 = vst.msk [vmem:[#allocation3 + $0x54] sm:$0xf] %vm1480, %v1427
        %1503 = vst.msk [vmem:[#allocation3 + $0x58] sm:$0xf] %vm1480, %v1429
        %1504 = vst.msk [vmem:[#allocation3 + $0x5c] sm:$0xf] %vm1480, %v1431
        %1505 = vst.msk [vmem:[#allocation3 + $0x60] sm:$0xf] %vm1480, %v1433
        %1506 = vst.msk [vmem:[#allocation3 + $0x64] sm:$0xf] %vm1480, %v1435
        %1507 = vst.msk [vmem:[#allocation3 + $0x68] sm:$0xf] %vm1480, %v1437
        %1508 = vst.msk [vmem:[#allocation3 + $0x6c] sm:$0xf] %vm1480, %v1439
        %1509 = vst.msk [vmem:[#allocation3 + $0x70] sm:$0xf] %vm1480, %v1441
        %1510 = vst.msk [vmem:[#allocation3 + $0x74] sm:$0xf] %vm1480, %v1443
        %1511 = vst.msk [vmem:[#allocation3 + $0x78] sm:$0xf] %vm1480, %v1445
        %1512 = vst.msk [vmem:[#allocation3 + $0x7c] sm:$0xf] %vm1480, %v1447
        %s1513 = scalar_lea.vmem [#allocation2], 48
        %v1514 = vld [vmem:[%s1513] sm:$0xff]
        %v1515 = vld [vmem:[%s1513 + $0x8] sm:$0xff]
        %v1516 = vld [vmem:[%s1513 + $0x18] sm:$0xff]
        %v1517 = vld [vmem:[%s1513 + $0x20] sm:$0xff]
        %v1518 = vld [vmem:[%s1513 + $0x30] sm:$0xff]
        %v1519 = vld [vmem:[%s1513 + $0x38] sm:$0xff]
        %v1520 = vld [vmem:[%s1513 + $0x48] sm:$0xff]
        %v1521 = vld [vmem:[%s1513 + $0x50] sm:$0xff]
        %v1522 = vld [vmem:[%s1513 + $0x60] sm:$0xff]
        %v1523 = vld [vmem:[%s1513 + $0x68] sm:$0xff]
        %v1524 = vld [vmem:[%s1513 + $0x78] sm:$0xff]
        %v1525 = vld [vmem:[%s1513 + $0x80] sm:$0xff]
        %v1526 = vld [vmem:[%s1513 + $0x90] sm:$0xff]
        %v1527 = vld [vmem:[%s1513 + $0x98] sm:$0xff]
        %v1528 = vld [vmem:[%s1513 + $0xa8] sm:$0xff]
        %v1529 = vld [vmem:[%s1513 + $0xb0] sm:$0xff]
        %v1530 = vld [vmem:[%s1513 + $0xc0] sm:$0xff]
        %v1531 = vld [vmem:[%s1513 + $0xc8] sm:$0xff]
        %v1532 = vld [vmem:[%s1513 + $0xd8] sm:$0xff]
        %v1533 = vld [vmem:[%s1513 + $0xe0] sm:$0xff]
        %v1534 = vld [vmem:[%s1513 + $0xf0] sm:$0xff]
        %v1535 = vld [vmem:[%s1513 + $0xf8] sm:$0xff]
        %v1536 = vld [vmem:[%s1513 + $0x108] sm:$0xff]
        %v1537 = vld [vmem:[%s1513 + $0x110] sm:$0xff]
        %v1538 = vld [vmem:[%s1513 + $0x120] sm:$0xff]
        %v1539 = vld [vmem:[%s1513 + $0x128] sm:$0xff]
        %v1540 = vld [vmem:[%s1513 + $0x138] sm:$0xff]
        %v1541 = vld [vmem:[%s1513 + $0x140] sm:$0xff]
        %v1542 = vld [vmem:[%s1513 + $0x150] sm:$0xff]
        %v1543 = vld [vmem:[%s1513 + $0x158] sm:$0xff]
        %v1544 = vld [vmem:[%s1513 + $0x168] sm:$0xff]
        %v1545 = vld [vmem:[%s1513 + $0x170] sm:$0xff]
        %v1546 = vpack.c.bf16 %v1514, %v1514
        %v1547 = vpack.c.bf16 %v1515, %v1515
        %v1548 = vpack.c.bf16 %v1516, %v1516
        %v1549 = vpack.c.bf16 %v1517, %v1517
        %v1550 = vpack.c.bf16 %v1518, %v1518
        %v1551 = vpack.c.bf16 %v1519, %v1519
        %v1552 = vpack.c.bf16 %v1520, %v1520
        %v1553 = vpack.c.bf16 %v1521, %v1521
        %v1554 = vpack.c.bf16 %v1522, %v1522
        %v1555 = vpack.c.bf16 %v1523, %v1523
        %v1556 = vpack.c.bf16 %v1524, %v1524
        %v1557 = vpack.c.bf16 %v1525, %v1525
        %v1558 = vpack.c.bf16 %v1526, %v1526
        %v1559 = vpack.c.bf16 %v1527, %v1527
        %v1560 = vpack.c.bf16 %v1528, %v1528
        %v1561 = vpack.c.bf16 %v1529, %v1529
        %v1562 = vpack.c.bf16 %v1530, %v1530
        %v1563 = vpack.c.bf16 %v1531, %v1531
        %v1564 = vpack.c.bf16 %v1532, %v1532
        %v1565 = vpack.c.bf16 %v1533, %v1533
        %v1566 = vpack.c.bf16 %v1534, %v1534
        %v1567 = vpack.c.bf16 %v1535, %v1535
        %v1568 = vpack.c.bf16 %v1536, %v1536
        %v1569 = vpack.c.bf16 %v1537, %v1537
        %v1570 = vpack.c.bf16 %v1538, %v1538
        %v1571 = vpack.c.bf16 %v1539, %v1539
        %v1572 = vpack.c.bf16 %v1540, %v1540
        %v1573 = vpack.c.bf16 %v1541, %v1541
        %v1574 = vpack.c.bf16 %v1542, %v1542
        %v1575 = vpack.c.bf16 %v1543, %v1543
        %v1576 = vpack.c.bf16 %v1544, %v1544
        %v1577 = vpack.c.bf16 %v1545, %v1545
        %1610 = vrot.lane.b32.xlu0 %v1546, 24
        %v1611 = vpop.permute.xlu0 %1610
        %1612 = vrot.lane.b32.xlu0 %v1547, 24
        %v1613 = vpop.permute.xlu0 %1612
        %1614 = vrot.lane.b32.xlu0 %v1548, 24
        %v1615 = vpop.permute.xlu0 %1614
        %1616 = vrot.lane.b32.xlu0 %v1549, 24
        %v1617 = vpop.permute.xlu0 %1616
        %1618 = vrot.lane.b32.xlu0 %v1550, 24
        %v1619 = vpop.permute.xlu0 %1618
        %1620 = vrot.lane.b32.xlu0 %v1551, 24
        %v1621 = vpop.permute.xlu0 %1620
        %1622 = vrot.lane.b32.xlu0 %v1552, 24
        %v1623 = vpop.permute.xlu0 %1622
        %1624 = vrot.lane.b32.xlu0 %v1553, 24
        %v1625 = vpop.permute.xlu0 %1624
        %1626 = vrot.lane.b32.xlu0 %v1554, 24
        %v1627 = vpop.permute.xlu0 %1626
        %1628 = vrot.lane.b32.xlu0 %v1555, 24
        %v1629 = vpop.permute.xlu0 %1628
        %1630 = vrot.lane.b32.xlu0 %v1556, 24
        %v1631 = vpop.permute.xlu0 %1630
        %1632 = vrot.lane.b32.xlu0 %v1557, 24
        %v1633 = vpop.permute.xlu0 %1632
        %1634 = vrot.lane.b32.xlu0 %v1558, 24
        %v1635 = vpop.permute.xlu0 %1634
        %1636 = vrot.lane.b32.xlu0 %v1559, 24
        %v1637 = vpop.permute.xlu0 %1636
        %1638 = vrot.lane.b32.xlu0 %v1560, 24
        %v1639 = vpop.permute.xlu0 %1638
        %1640 = vrot.lane.b32.xlu0 %v1561, 24
        %v1641 = vpop.permute.xlu0 %1640
        %1642 = vrot.lane.b32.xlu0 %v1562, 24
        %v1643 = vpop.permute.xlu0 %1642
        %1644 = vrot.lane.b32.xlu0 %v1563, 24
        %v1645 = vpop.permute.xlu0 %1644
        %1646 = vrot.lane.b32.xlu0 %v1564, 24
        %v1647 = vpop.permute.xlu0 %1646
        %1648 = vrot.lane.b32.xlu0 %v1565, 24
        %v1649 = vpop.permute.xlu0 %1648
        %1650 = vrot.lane.b32.xlu0 %v1566, 24
        %v1651 = vpop.permute.xlu0 %1650
        %1652 = vrot.lane.b32.xlu0 %v1567, 24
        %v1653 = vpop.permute.xlu0 %1652
        %1654 = vrot.lane.b32.xlu0 %v1568, 24
        %v1655 = vpop.permute.xlu0 %1654
        %1656 = vrot.lane.b32.xlu0 %v1569, 24
        %v1657 = vpop.permute.xlu0 %1656
        %1658 = vrot.lane.b32.xlu0 %v1570, 24
        %v1659 = vpop.permute.xlu0 %1658
        %1660 = vrot.lane.b32.xlu0 %v1571, 24
        %v1661 = vpop.permute.xlu0 %1660
        %1662 = vrot.lane.b32.xlu0 %v1572, 24
        %v1663 = vpop.permute.xlu0 %1662
        %1664 = vrot.lane.b32.xlu0 %v1573, 24
        %v1665 = vpop.permute.xlu0 %1664
        %1666 = vrot.lane.b32.xlu0 %v1574, 24
        %v1667 = vpop.permute.xlu0 %1666
        %1668 = vrot.lane.b32.xlu0 %v1575, 24
        %v1669 = vpop.permute.xlu0 %1668
        %1670 = vrot.lane.b32.xlu0 %v1576, 24
        %v1671 = vpop.permute.xlu0 %1670
        %1672 = vrot.lane.b32.xlu0 %v1577, 24
        %v1673 = vpop.permute.xlu0 %1672
        %vm1706 = vcmask 224448
        %1707 = vst.msk [vmem:[#allocation3] sm:$0xf] %vm1706, %v1611
        %1708 = vst.msk [vmem:[#allocation3 + $0x4] sm:$0xf] %vm1706, %v1613
        %1709 = vst.msk [vmem:[#allocation3 + $0x8] sm:$0xf] %vm1706, %v1615
        %1710 = vst.msk [vmem:[#allocation3 + $0xc] sm:$0xf] %vm1706, %v1617
        %1711 = vst.msk [vmem:[#allocation3 + $0x10] sm:$0xf] %vm1706, %v1619
        %1712 = vst.msk [vmem:[#allocation3 + $0x14] sm:$0xf] %vm1706, %v1621
        %1713 = vst.msk [vmem:[#allocation3 + $0x18] sm:$0xf] %vm1706, %v1623
        %1714 = vst.msk [vmem:[#allocation3 + $0x1c] sm:$0xf] %vm1706, %v1625
        %1715 = vst.msk [vmem:[#allocation3 + $0x20] sm:$0xf] %vm1706, %v1627
        %1716 = vst.msk [vmem:[#allocation3 + $0x24] sm:$0xf] %vm1706, %v1629
        %1717 = vst.msk [vmem:[#allocation3 + $0x28] sm:$0xf] %vm1706, %v1631
        %1718 = vst.msk [vmem:[#allocation3 + $0x2c] sm:$0xf] %vm1706, %v1633
        %1719 = vst.msk [vmem:[#allocation3 + $0x30] sm:$0xf] %vm1706, %v1635
        %1720 = vst.msk [vmem:[#allocation3 + $0x34] sm:$0xf] %vm1706, %v1637
        %1721 = vst.msk [vmem:[#allocation3 + $0x38] sm:$0xf] %vm1706, %v1639
        %1722 = vst.msk [vmem:[#allocation3 + $0x3c] sm:$0xf] %vm1706, %v1641
        %1723 = vst.msk [vmem:[#allocation3 + $0x40] sm:$0xf] %vm1706, %v1643
        %1724 = vst.msk [vmem:[#allocation3 + $0x44] sm:$0xf] %vm1706, %v1645
        %1725 = vst.msk [vmem:[#allocation3 + $0x48] sm:$0xf] %vm1706, %v1647
        %1726 = vst.msk [vmem:[#allocation3 + $0x4c] sm:$0xf] %vm1706, %v1649
        %1727 = vst.msk [vmem:[#allocation3 + $0x50] sm:$0xf] %vm1706, %v1651
        %1728 = vst.msk [vmem:[#allocation3 + $0x54] sm:$0xf] %vm1706, %v1653
        %1729 = vst.msk [vmem:[#allocation3 + $0x58] sm:$0xf] %vm1706, %v1655
        %1730 = vst.msk [vmem:[#allocation3 + $0x5c] sm:$0xf] %vm1706, %v1657
        %1731 = vst.msk [vmem:[#allocation3 + $0x60] sm:$0xf] %vm1706, %v1659
        %1732 = vst.msk [vmem:[#allocation3 + $0x64] sm:$0xf] %vm1706, %v1661
        %1733 = vst.msk [vmem:[#allocation3 + $0x68] sm:$0xf] %vm1706, %v1663
        %1734 = vst.msk [vmem:[#allocation3 + $0x6c] sm:$0xf] %vm1706, %v1665
        %1735 = vst.msk [vmem:[#allocation3 + $0x70] sm:$0xf] %vm1706, %v1667
        %1736 = vst.msk [vmem:[#allocation3 + $0x74] sm:$0xf] %vm1706, %v1669
        %1737 = vst.msk [vmem:[#allocation3 + $0x78] sm:$0xf] %vm1706, %v1671
        %1738 = vst.msk [vmem:[#allocation3 + $0x7c] sm:$0xf] %vm1706, %v1673
        %v1739 = vld [vmem:[%s1513 + $0x1] sm:$0xff]
        %v1740 = vld [vmem:[%s1513 + $0x9] sm:$0xff]
        %v1741 = vld [vmem:[%s1513 + $0x19] sm:$0xff]
        %v1742 = vld [vmem:[%s1513 + $0x21] sm:$0xff]
        %v1743 = vld [vmem:[%s1513 + $0x31] sm:$0xff]
        %v1744 = vld [vmem:[%s1513 + $0x39] sm:$0xff]
        %v1745 = vld [vmem:[%s1513 + $0x49] sm:$0xff]
        %v1746 = vld [vmem:[%s1513 + $0x51] sm:$0xff]
        %v1747 = vld [vmem:[%s1513 + $0x61] sm:$0xff]
        %v1748 = vld [vmem:[%s1513 + $0x69] sm:$0xff]
        %v1749 = vld [vmem:[%s1513 + $0x79] sm:$0xff]
        %v1750 = vld [vmem:[%s1513 + $0x81] sm:$0xff]
        %v1751 = vld [vmem:[%s1513 + $0x91] sm:$0xff]
        %v1752 = vld [vmem:[%s1513 + $0x99] sm:$0xff]
        %v1753 = vld [vmem:[%s1513 + $0xa9] sm:$0xff]
        %v1754 = vld [vmem:[%s1513 + $0xb1] sm:$0xff]
        %v1755 = vld [vmem:[%s1513 + $0xc1] sm:$0xff]
        %v1756 = vld [vmem:[%s1513 + $0xc9] sm:$0xff]
        %v1757 = vld [vmem:[%s1513 + $0xd9] sm:$0xff]
        %v1758 = vld [vmem:[%s1513 + $0xe1] sm:$0xff]
        %v1759 = vld [vmem:[%s1513 + $0xf1] sm:$0xff]
        %v1760 = vld [vmem:[%s1513 + $0xf9] sm:$0xff]
        %v1761 = vld [vmem:[%s1513 + $0x109] sm:$0xff]
        %v1762 = vld [vmem:[%s1513 + $0x111] sm:$0xff]
        %v1763 = vld [vmem:[%s1513 + $0x121] sm:$0xff]
        %v1764 = vld [vmem:[%s1513 + $0x129] sm:$0xff]
        %v1765 = vld [vmem:[%s1513 + $0x139] sm:$0xff]
        %v1766 = vld [vmem:[%s1513 + $0x141] sm:$0xff]
        %v1767 = vld [vmem:[%s1513 + $0x151] sm:$0xff]
        %v1768 = vld [vmem:[%s1513 + $0x159] sm:$0xff]
        %v1769 = vld [vmem:[%s1513 + $0x169] sm:$0xff]
        %v1770 = vld [vmem:[%s1513 + $0x171] sm:$0xff]
        %v1771 = vpack.c.bf16 %v1739, %v1739
        %v1772 = vpack.c.bf16 %v1740, %v1740
        %v1773 = vpack.c.bf16 %v1741, %v1741
        %v1774 = vpack.c.bf16 %v1742, %v1742
        %v1775 = vpack.c.bf16 %v1743, %v1743
        %v1776 = vpack.c.bf16 %v1744, %v1744
        %v1777 = vpack.c.bf16 %v1745, %v1745
        %v1778 = vpack.c.bf16 %v1746, %v1746
        %v1779 = vpack.c.bf16 %v1747, %v1747
        %v1780 = vpack.c.bf16 %v1748, %v1748
        %v1781 = vpack.c.bf16 %v1749, %v1749
        %v1782 = vpack.c.bf16 %v1750, %v1750
        %v1783 = vpack.c.bf16 %v1751, %v1751
        %v1784 = vpack.c.bf16 %v1752, %v1752
        %v1785 = vpack.c.bf16 %v1753, %v1753
        %v1786 = vpack.c.bf16 %v1754, %v1754
        %v1787 = vpack.c.bf16 %v1755, %v1755
        %v1788 = vpack.c.bf16 %v1756, %v1756
        %v1789 = vpack.c.bf16 %v1757, %v1757
        %v1790 = vpack.c.bf16 %v1758, %v1758
        %v1791 = vpack.c.bf16 %v1759, %v1759
        %v1792 = vpack.c.bf16 %v1760, %v1760
        %v1793 = vpack.c.bf16 %v1761, %v1761
        %v1794 = vpack.c.bf16 %v1762, %v1762
        %v1795 = vpack.c.bf16 %v1763, %v1763
        %v1796 = vpack.c.bf16 %v1764, %v1764
        %v1797 = vpack.c.bf16 %v1765, %v1765
        %v1798 = vpack.c.bf16 %v1766, %v1766
        %v1799 = vpack.c.bf16 %v1767, %v1767
        %v1800 = vpack.c.bf16 %v1768, %v1768
        %v1801 = vpack.c.bf16 %v1769, %v1769
        %v1802 = vpack.c.bf16 %v1770, %v1770
        %1835 = vrot.lane.b32.xlu0 %v1771, 28
        %v1836 = vpop.permute.xlu0 %1835
        %1837 = vrot.lane.b32.xlu0 %v1772, 28
        %v1838 = vpop.permute.xlu0 %1837
        %1839 = vrot.lane.b32.xlu0 %v1773, 28
        %v1840 = vpop.permute.xlu0 %1839
        %1841 = vrot.lane.b32.xlu0 %v1774, 28
        %v1842 = vpop.permute.xlu0 %1841
        %1843 = vrot.lane.b32.xlu0 %v1775, 28
        %v1844 = vpop.permute.xlu0 %1843
        %1845 = vrot.lane.b32.xlu0 %v1776, 28
        %v1846 = vpop.permute.xlu0 %1845
        %1847 = vrot.lane.b32.xlu0 %v1777, 28
        %v1848 = vpop.permute.xlu0 %1847
        %1849 = vrot.lane.b32.xlu0 %v1778, 28
        %v1850 = vpop.permute.xlu0 %1849
        %1851 = vrot.lane.b32.xlu0 %v1779, 28
        %v1852 = vpop.permute.xlu0 %1851
        %1853 = vrot.lane.b32.xlu0 %v1780, 28
        %v1854 = vpop.permute.xlu0 %1853
        %1855 = vrot.lane.b32.xlu0 %v1781, 28
        %v1856 = vpop.permute.xlu0 %1855
        %1857 = vrot.lane.b32.xlu0 %v1782, 28
        %v1858 = vpop.permute.xlu0 %1857
        %1859 = vrot.lane.b32.xlu0 %v1783, 28
        %v1860 = vpop.permute.xlu0 %1859
        %1861 = vrot.lane.b32.xlu0 %v1784, 28
        %v1862 = vpop.permute.xlu0 %1861
        %1863 = vrot.lane.b32.xlu0 %v1785, 28
        %v1864 = vpop.permute.xlu0 %1863
        %1865 = vrot.lane.b32.xlu0 %v1786, 28
        %v1866 = vpop.permute.xlu0 %1865
        %1867 = vrot.lane.b32.xlu0 %v1787, 28
        %v1868 = vpop.permute.xlu0 %1867
        %1869 = vrot.lane.b32.xlu0 %v1788, 28
        %v1870 = vpop.permute.xlu0 %1869
        %1871 = vrot.lane.b32.xlu0 %v1789, 28
        %v1872 = vpop.permute.xlu0 %1871
        %1873 = vrot.lane.b32.xlu0 %v1790, 28
        %v1874 = vpop.permute.xlu0 %1873
        %1875 = vrot.lane.b32.xlu0 %v1791, 28
        %v1876 = vpop.permute.xlu0 %1875
        %1877 = vrot.lane.b32.xlu0 %v1792, 28
        %v1878 = vpop.permute.xlu0 %1877
        %1879 = vrot.lane.b32.xlu0 %v1793, 28
        %v1880 = vpop.permute.xlu0 %1879
        %1881 = vrot.lane.b32.xlu0 %v1794, 28
        %v1882 = vpop.permute.xlu0 %1881
        %1883 = vrot.lane.b32.xlu0 %v1795, 28
        %v1884 = vpop.permute.xlu0 %1883
        %1885 = vrot.lane.b32.xlu0 %v1796, 28
        %v1886 = vpop.permute.xlu0 %1885
        %1887 = vrot.lane.b32.xlu0 %v1797, 28
        %v1888 = vpop.permute.xlu0 %1887
        %1889 = vrot.lane.b32.xlu0 %v1798, 28
        %v1890 = vpop.permute.xlu0 %1889
        %1891 = vrot.lane.b32.xlu0 %v1799, 28
        %v1892 = vpop.permute.xlu0 %1891
        %1893 = vrot.lane.b32.xlu0 %v1800, 28
        %v1894 = vpop.permute.xlu0 %1893
        %1895 = vrot.lane.b32.xlu0 %v1801, 28
        %v1896 = vpop.permute.xlu0 %1895
        %1897 = vrot.lane.b32.xlu0 %v1802, 28
        %v1898 = vpop.permute.xlu0 %1897
        %vm1931 = vcmask 257248
        %1932 = vst.msk [vmem:[#allocation3] sm:$0xf] %vm1931, %v1836
        %1933 = vst.msk [vmem:[#allocation3 + $0x4] sm:$0xf] %vm1931, %v1838
        %1934 = vst.msk [vmem:[#allocation3 + $0x8] sm:$0xf] %vm1931, %v1840
        %1935 = vst.msk [vmem:[#allocation3 + $0xc] sm:$0xf] %vm1931, %v1842
        %1936 = vst.msk [vmem:[#allocation3 + $0x10] sm:$0xf] %vm1931, %v1844
        %1937 = vst.msk [vmem:[#allocation3 + $0x14] sm:$0xf] %vm1931, %v1846
        %1938 = vst.msk [vmem:[#allocation3 + $0x18] sm:$0xf] %vm1931, %v1848
        %1939 = vst.msk [vmem:[#allocation3 + $0x1c] sm:$0xf] %vm1931, %v1850
        %1940 = vst.msk [vmem:[#allocation3 + $0x20] sm:$0xf] %vm1931, %v1852
        %1941 = vst.msk [vmem:[#allocation3 + $0x24] sm:$0xf] %vm1931, %v1854
        %1942 = vst.msk [vmem:[#allocation3 + $0x28] sm:$0xf] %vm1931, %v1856
        %1943 = vst.msk [vmem:[#allocation3 + $0x2c] sm:$0xf] %vm1931, %v1858
        %1944 = vst.msk [vmem:[#allocation3 + $0x30] sm:$0xf] %vm1931, %v1860
        %1945 = vst.msk [vmem:[#allocation3 + $0x34] sm:$0xf] %vm1931, %v1862
        %1946 = vst.msk [vmem:[#allocation3 + $0x38] sm:$0xf] %vm1931, %v1864
        %1947 = vst.msk [vmem:[#allocation3 + $0x3c] sm:$0xf] %vm1931, %v1866
        %1948 = vst.msk [vmem:[#allocation3 + $0x40] sm:$0xf] %vm1931, %v1868
        %1949 = vst.msk [vmem:[#allocation3 + $0x44] sm:$0xf] %vm1931, %v1870
        %1950 = vst.msk [vmem:[#allocation3 + $0x48] sm:$0xf] %vm1931, %v1872
        %1951 = vst.msk [vmem:[#allocation3 + $0x4c] sm:$0xf] %vm1931, %v1874
        %1952 = vst.msk [vmem:[#allocation3 + $0x50] sm:$0xf] %vm1931, %v1876
        %1953 = vst.msk [vmem:[#allocation3 + $0x54] sm:$0xf] %vm1931, %v1878
        %1954 = vst.msk [vmem:[#allocation3 + $0x58] sm:$0xf] %vm1931, %v1880
        %1955 = vst.msk [vmem:[#allocation3 + $0x5c] sm:$0xf] %vm1931, %v1882
        %1956 = vst.msk [vmem:[#allocation3 + $0x60] sm:$0xf] %vm1931, %v1884
        %1957 = vst.msk [vmem:[#allocation3 + $0x64] sm:$0xf] %vm1931, %v1886
        %1958 = vst.msk [vmem:[#allocation3 + $0x68] sm:$0xf] %vm1931, %v1888
        %1959 = vst.msk [vmem:[#allocation3 + $0x6c] sm:$0xf] %vm1931, %v1890
        %1960 = vst.msk [vmem:[#allocation3 + $0x70] sm:$0xf] %vm1931, %v1892
        %1961 = vst.msk [vmem:[#allocation3 + $0x74] sm:$0xf] %vm1931, %v1894
        %1962 = vst.msk [vmem:[#allocation3 + $0x78] sm:$0xf] %vm1931, %v1896
        %1963 = vst.msk [vmem:[#allocation3 + $0x7c] sm:$0xf] %vm1931, %v1898
        %v1964 = vld [vmem:[%s1513 + $0x2] sm:$0xff]
        %v1965 = vld [vmem:[%s1513 + $0xa] sm:$0xff]
        %v1966 = vld [vmem:[%s1513 + $0x1a] sm:$0xff]
        %v1967 = vld [vmem:[%s1513 + $0x22] sm:$0xff]
        %v1968 = vld [vmem:[%s1513 + $0x32] sm:$0xff]
        %v1969 = vld [vmem:[%s1513 + $0x3a] sm:$0xff]
        %v1970 = vld [vmem:[%s1513 + $0x4a] sm:$0xff]
        %v1971 = vld [vmem:[%s1513 + $0x52] sm:$0xff]
        %v1972 = vld [vmem:[%s1513 + $0x62] sm:$0xff]
        %v1973 = vld [vmem:[%s1513 + $0x6a] sm:$0xff]
        %v1974 = vld [vmem:[%s1513 + $0x7a] sm:$0xff]
        %v1975 = vld [vmem:[%s1513 + $0x82] sm:$0xff]
        %v1976 = vld [vmem:[%s1513 + $0x92] sm:$0xff]
        %v1977 = vld [vmem:[%s1513 + $0x9a] sm:$0xff]
        %v1978 = vld [vmem:[%s1513 + $0xaa] sm:$0xff]
        %v1979 = vld [vmem:[%s1513 + $0xb2] sm:$0xff]
        %v1980 = vld [vmem:[%s1513 + $0xc2] sm:$0xff]
        %v1981 = vld [vmem:[%s1513 + $0xca] sm:$0xff]
        %v1982 = vld [vmem:[%s1513 + $0xda] sm:$0xff]
        %v1983 = vld [vmem:[%s1513 + $0xe2] sm:$0xff]
        %v1984 = vld [vmem:[%s1513 + $0xf2] sm:$0xff]
        %v1985 = vld [vmem:[%s1513 + $0xfa] sm:$0xff]
        %v1986 = vld [vmem:[%s1513 + $0x10a] sm:$0xff]
        %v1987 = vld [vmem:[%s1513 + $0x112] sm:$0xff]
        %v1988 = vld [vmem:[%s1513 + $0x122] sm:$0xff]
        %v1989 = vld [vmem:[%s1513 + $0x12a] sm:$0xff]
        %v1990 = vld [vmem:[%s1513 + $0x13a] sm:$0xff]
        %v1991 = vld [vmem:[%s1513 + $0x142] sm:$0xff]
        %v1992 = vld [vmem:[%s1513 + $0x152] sm:$0xff]
        %v1993 = vld [vmem:[%s1513 + $0x15a] sm:$0xff]
        %v1994 = vld [vmem:[%s1513 + $0x16a] sm:$0xff]
        %v1995 = vld [vmem:[%s1513 + $0x172] sm:$0xff]
        %v1996 = vpack.c.bf16 %v1964, %v1964
        %v1997 = vpack.c.bf16 %v1965, %v1965
        %v1998 = vpack.c.bf16 %v1966, %v1966
        %v1999 = vpack.c.bf16 %v1967, %v1967
        %v2000 = vpack.c.bf16 %v1968, %v1968
        %v2001 = vpack.c.bf16 %v1969, %v1969
        %v2002 = vpack.c.bf16 %v1970, %v1970
        %v2003 = vpack.c.bf16 %v1971, %v1971
        %v2004 = vpack.c.bf16 %v1972, %v1972
        %v2005 = vpack.c.bf16 %v1973, %v1973
        %v2006 = vpack.c.bf16 %v1974, %v1974
        %v2007 = vpack.c.bf16 %v1975, %v1975
        %v2008 = vpack.c.bf16 %v1976, %v1976
        %v2009 = vpack.c.bf16 %v1977, %v1977
        %v2010 = vpack.c.bf16 %v1978, %v1978
        %v2011 = vpack.c.bf16 %v1979, %v1979
        %v2012 = vpack.c.bf16 %v1980, %v1980
        %v2013 = vpack.c.bf16 %v1981, %v1981
        %v2014 = vpack.c.bf16 %v1982, %v1982
        %v2015 = vpack.c.bf16 %v1983, %v1983
        %v2016 = vpack.c.bf16 %v1984, %v1984
        %v2017 = vpack.c.bf16 %v1985, %v1985
        %v2018 = vpack.c.bf16 %v1986, %v1986
        %v2019 = vpack.c.bf16 %v1987, %v1987
        %v2020 = vpack.c.bf16 %v1988, %v1988
        %v2021 = vpack.c.bf16 %v1989, %v1989
        %v2022 = vpack.c.bf16 %v1990, %v1990
        %v2023 = vpack.c.bf16 %v1991, %v1991
        %v2024 = vpack.c.bf16 %v1992, %v1992
        %v2025 = vpack.c.bf16 %v1993, %v1993
        %v2026 = vpack.c.bf16 %v1994, %v1994
        %v2027 = vpack.c.bf16 %v1995, %v1995
        %2060 = vrot.lane.b32.xlu0 %v1996, 32
        %v2061 = vpop.permute.xlu0 %2060
        %2062 = vrot.lane.b32.xlu0 %v1997, 32
        %v2063 = vpop.permute.xlu0 %2062
        %2064 = vrot.lane.b32.xlu0 %v1998, 32
        %v2065 = vpop.permute.xlu0 %2064
        %2066 = vrot.lane.b32.xlu0 %v1999, 32
        %v2067 = vpop.permute.xlu0 %2066
        %2068 = vrot.lane.b32.xlu0 %v2000, 32
        %v2069 = vpop.permute.xlu0 %2068
        %2070 = vrot.lane.b32.xlu0 %v2001, 32
        %v2071 = vpop.permute.xlu0 %2070
        %2072 = vrot.lane.b32.xlu0 %v2002, 32
        %v2073 = vpop.permute.xlu0 %2072
        %2074 = vrot.lane.b32.xlu0 %v2003, 32
        %v2075 = vpop.permute.xlu0 %2074
        %2076 = vrot.lane.b32.xlu0 %v2004, 32
        %v2077 = vpop.permute.xlu0 %2076
        %2078 = vrot.lane.b32.xlu0 %v2005, 32
        %v2079 = vpop.permute.xlu0 %2078
        %2080 = vrot.lane.b32.xlu0 %v2006, 32
        %v2081 = vpop.permute.xlu0 %2080
        %2082 = vrot.lane.b32.xlu0 %v2007, 32
        %v2083 = vpop.permute.xlu0 %2082
        %2084 = vrot.lane.b32.xlu0 %v2008, 32
        %v2085 = vpop.permute.xlu0 %2084
        %2086 = vrot.lane.b32.xlu0 %v2009, 32
        %v2087 = vpop.permute.xlu0 %2086
        %2088 = vrot.lane.b32.xlu0 %v2010, 32
        %v2089 = vpop.permute.xlu0 %2088
        %2090 = vrot.lane.b32.xlu0 %v2011, 32
        %v2091 = vpop.permute.xlu0 %2090
        %2092 = vrot.lane.b32.xlu0 %v2012, 32
        %v2093 = vpop.permute.xlu0 %2092
        %2094 = vrot.lane.b32.xlu0 %v2013, 32
        %v2095 = vpop.permute.xlu0 %2094
        %2096 = vrot.lane.b32.xlu0 %v2014, 32
        %v2097 = vpop.permute.xlu0 %2096
        %2098 = vrot.lane.b32.xlu0 %v2015, 32
        %v2099 = vpop.permute.xlu0 %2098
        %2100 = vrot.lane.b32.xlu0 %v2016, 32
        %v2101 = vpop.permute.xlu0 %2100
        %2102 = vrot.lane.b32.xlu0 %v2017, 32
        %v2103 = vpop.permute.xlu0 %2102
        %2104 = vrot.lane.b32.xlu0 %v2018, 32
        %v2105 = vpop.permute.xlu0 %2104
        %2106 = vrot.lane.b32.xlu0 %v2019, 32
        %v2107 = vpop.permute.xlu0 %2106
        %2108 = vrot.lane.b32.xlu0 %v2020, 32
        %v2109 = vpop.permute.xlu0 %2108
        %2110 = vrot.lane.b32.xlu0 %v2021, 32
        %v2111 = vpop.permute.xlu0 %2110
        %2112 = vrot.lane.b32.xlu0 %v2022, 32
        %v2113 = vpop.permute.xlu0 %2112
        %2114 = vrot.lane.b32.xlu0 %v2023, 32
        %v2115 = vpop.permute.xlu0 %2114
        %2116 = vrot.lane.b32.xlu0 %v2024, 32
        %v2117 = vpop.permute.xlu0 %2116
        %2118 = vrot.lane.b32.xlu0 %v2025, 32
        %v2119 = vpop.permute.xlu0 %2118
        %2120 = vrot.lane.b32.xlu0 %v2026, 32
        %v2121 = vpop.permute.xlu0 %2120
        %2122 = vrot.lane.b32.xlu0 %v2027, 32
        %v2123 = vpop.permute.xlu0 %2122
        %vm2156 = vcmask 290048
        %2157 = vst.msk [vmem:[#allocation3] sm:$0xf] %vm2156, %v2061
        %2158 = vst.msk [vmem:[#allocation3 + $0x4] sm:$0xf] %vm2156, %v2063
        %2159 = vst.msk [vmem:[#allocation3 + $0x8] sm:$0xf] %vm2156, %v2065
        %2160 = vst.msk [vmem:[#allocation3 + $0xc] sm:$0xf] %vm2156, %v2067
        %2161 = vst.msk [vmem:[#allocation3 + $0x10] sm:$0xf] %vm2156, %v2069
        %2162 = vst.msk [vmem:[#allocation3 + $0x14] sm:$0xf] %vm2156, %v2071
        %2163 = vst.msk [vmem:[#allocation3 + $0x18] sm:$0xf] %vm2156, %v2073
        %2164 = vst.msk [vmem:[#allocation3 + $0x1c] sm:$0xf] %vm2156, %v2075
        %2165 = vst.msk [vmem:[#allocation3 + $0x20] sm:$0xf] %vm2156, %v2077
        %2166 = vst.msk [vmem:[#allocation3 + $0x24] sm:$0xf] %vm2156, %v2079
        %2167 = vst.msk [vmem:[#allocation3 + $0x28] sm:$0xf] %vm2156, %v2081
        %2168 = vst.msk [vmem:[#allocation3 + $0x2c] sm:$0xf] %vm2156, %v2083
        %2169 = vst.msk [vmem:[#allocation3 + $0x30] sm:$0xf] %vm2156, %v2085
        %2170 = vst.msk [vmem:[#allocation3 + $0x34] sm:$0xf] %vm2156, %v2087
        %2171 = vst.msk [vmem:[#allocation3 + $0x38] sm:$0xf] %vm2156, %v2089
        %2172 = vst.msk [vmem:[#allocation3 + $0x3c] sm:$0xf] %vm2156, %v2091
        %2173 = vst.msk [vmem:[#allocation3 + $0x40] sm:$0xf] %vm2156, %v2093
        %2174 = vst.msk [vmem:[#allocation3 + $0x44] sm:$0xf] %vm2156, %v2095
        %2175 = vst.msk [vmem:[#allocation3 + $0x48] sm:$0xf] %vm2156, %v2097
        %2176 = vst.msk [vmem:[#allocation3 + $0x4c] sm:$0xf] %vm2156, %v2099
        %2177 = vst.msk [vmem:[#allocation3 + $0x50] sm:$0xf] %vm2156, %v2101
        %2178 = vst.msk [vmem:[#allocation3 + $0x54] sm:$0xf] %vm2156, %v2103
        %2179 = vst.msk [vmem:[#allocation3 + $0x58] sm:$0xf] %vm2156, %v2105
        %2180 = vst.msk [vmem:[#allocation3 + $0x5c] sm:$0xf] %vm2156, %v2107
        %2181 = vst.msk [vmem:[#allocation3 + $0x60] sm:$0xf] %vm2156, %v2109
        %2182 = vst.msk [vmem:[#allocation3 + $0x64] sm:$0xf] %vm2156, %v2111
        %2183 = vst.msk [vmem:[#allocation3 + $0x68] sm:$0xf] %vm2156, %v2113
        %2184 = vst.msk [vmem:[#allocation3 + $0x6c] sm:$0xf] %vm2156, %v2115
        %2185 = vst.msk [vmem:[#allocation3 + $0x70] sm:$0xf] %vm2156, %v2117
        %2186 = vst.msk [vmem:[#allocation3 + $0x74] sm:$0xf] %vm2156, %v2119
        %2187 = vst.msk [vmem:[#allocation3 + $0x78] sm:$0xf] %vm2156, %v2121
        %2188 = vst.msk [vmem:[#allocation3 + $0x7c] sm:$0xf] %vm2156, %v2123
        %v2189 = vld [vmem:[#allocation3] sm:$0xf]
        %v2190 = vld [vmem:[#allocation3 + $0x4] sm:$0xf]
        %v2191 = vld [vmem:[#allocation3 + $0x8] sm:$0xf]
        %v2192 = vld [vmem:[#allocation3 + $0xc] sm:$0xf]
        %v2193 = vld [vmem:[#allocation3 + $0x10] sm:$0xf]
        %v2194 = vld [vmem:[#allocation3 + $0x14] sm:$0xf]
        %v2195 = vld [vmem:[#allocation3 + $0x18] sm:$0xf]
        %v2196 = vld [vmem:[#allocation3 + $0x1c] sm:$0xf]
        %v2197 = vld [vmem:[#allocation3 + $0x20] sm:$0xf]
        %v2198 = vld [vmem:[#allocation3 + $0x24] sm:$0xf]
        %v2199 = vld [vmem:[#allocation3 + $0x28] sm:$0xf]
        %v2200 = vld [vmem:[#allocation3 + $0x2c] sm:$0xf]
        %v2201 = vld [vmem:[#allocation3 + $0x30] sm:$0xf]
        %v2202 = vld [vmem:[#allocation3 + $0x34] sm:$0xf]
        %v2203 = vld [vmem:[#allocation3 + $0x38] sm:$0xf]
        %v2204 = vld [vmem:[#allocation3 + $0x3c] sm:$0xf]
        %v2205 = vld [vmem:[#allocation3 + $0x40] sm:$0xf]
        %v2206 = vld [vmem:[#allocation3 + $0x44] sm:$0xf]
        %v2207 = vld [vmem:[#allocation3 + $0x48] sm:$0xf]
        %v2208 = vld [vmem:[#allocation3 + $0x4c] sm:$0xf]
        %v2209 = vld [vmem:[#allocation3 + $0x50] sm:$0xf]
        %v2210 = vld [vmem:[#allocation3 + $0x54] sm:$0xf]
        %v2211 = vld [vmem:[#allocation3 + $0x58] sm:$0xf]
        %v2212 = vld [vmem:[#allocation3 + $0x5c] sm:$0xf]
        %v2213 = vld [vmem:[#allocation3 + $0x60] sm:$0xf]
        %v2214 = vld [vmem:[#allocation3 + $0x64] sm:$0xf]
        %v2215 = vld [vmem:[#allocation3 + $0x68] sm:$0xf]
        %v2216 = vld [vmem:[#allocation3 + $0x6c] sm:$0xf]
        %v2217 = vld [vmem:[#allocation3 + $0x70] sm:$0xf]
        %v2218 = vld [vmem:[#allocation3 + $0x74] sm:$0xf]
        %v2219 = vld [vmem:[#allocation3 + $0x78] sm:$0xf]
        %v2220 = vld [vmem:[#allocation3 + $0x7c] sm:$0xf]
        %v2221 = vld [vmem:[%s1] sm:$0xf]
        %v2222 = vld [vmem:[%s1 + $0x4] sm:$0xf]
        %v2223 = vld [vmem:[%s1 + $0x8] sm:$0xf]
        %v2224 = vld [vmem:[%s1 + $0xc] sm:$0xf]
        %v2225 = vld [vmem:[%s1 + $0x10] sm:$0x3]
        %v2226 = vld [vmem:[%s2] sm:$0x1]
        %v2228 = vperm.slane %v2226, 0
        %v2262 = vunpack.c.l.b16 %v2189
        %v2263 = vunpack.c.l.b16 %v2190
        %v2264 = vunpack.c.l.b16 %v2191
        %v2265 = vunpack.c.l.b16 %v2192
        %v2266 = vunpack.c.l.b16 %v2193
        %v2267 = vunpack.c.l.b16 %v2194
        %v2268 = vunpack.c.l.b16 %v2195
        %v2269 = vunpack.c.l.b16 %v2196
        %v2270 = vunpack.c.l.b16 %v2197
        %v2271 = vunpack.c.l.b16 %v2198
        %v2272 = vunpack.c.l.b16 %v2199
        %v2273 = vunpack.c.l.b16 %v2200
        %v2274 = vunpack.c.l.b16 %v2201
        %v2275 = vunpack.c.l.b16 %v2202
        %v2276 = vunpack.c.l.b16 %v2203
        %v2277 = vunpack.c.l.b16 %v2204
        %v2278 = vunpack.c.l.b16 %v2205
        %v2279 = vunpack.c.l.b16 %v2206
        %v2280 = vunpack.c.l.b16 %v2207
        %v2281 = vunpack.c.l.b16 %v2208
        %v2282 = vunpack.c.l.b16 %v2209
        %v2283 = vunpack.c.l.b16 %v2210
        %v2284 = vunpack.c.l.b16 %v2211
        %v2285 = vunpack.c.l.b16 %v2212
        %v2286 = vunpack.c.l.b16 %v2213
        %v2287 = vunpack.c.l.b16 %v2214
        %v2288 = vunpack.c.l.b16 %v2215
        %v2289 = vunpack.c.l.b16 %v2216
        %v2290 = vunpack.c.l.b16 %v2217
        %v2291 = vunpack.c.l.b16 %v2218
        %v2292 = vunpack.c.l.b16 %v2219
        %v2293 = vunpack.c.l.b16 %v2220
        %v2294 = vpack.c.b16 %v2263, %v2262
        %v2295 = vpack.c.b16 %v2265, %v2264
        %v2296 = vpack.c.b16 %v2267, %v2266
        %v2297 = vpack.c.b16 %v2269, %v2268
        %v2298 = vpack.c.b16 %v2271, %v2270
        %v2299 = vpack.c.b16 %v2273, %v2272
        %v2300 = vpack.c.b16 %v2275, %v2274
        %v2301 = vpack.c.b16 %v2277, %v2276
        %v2302 = vpack.c.b16 %v2279, %v2278
        %v2303 = vpack.c.b16 %v2281, %v2280
        %v2304 = vpack.c.b16 %v2283, %v2282
        %v2305 = vpack.c.b16 %v2285, %v2284
        %v2306 = vpack.c.b16 %v2287, %v2286
        %v2307 = vpack.c.b16 %v2289, %v2288
        %v2308 = vpack.c.b16 %v2291, %v2290
        %v2309 = vpack.c.b16 %v2293, %v2292
        %v2315 = vunpack.c.l.b16 %v2221
        %v2316 = vunpack.c.l.b16 %v2222
        %v2317 = vunpack.c.l.b16 %v2223
        %v2318 = vunpack.c.l.b16 %v2224
        %v2319 = vunpack.c.l.b16 %v2225
        %v2320 = vpack.c.b16 %v2316, %v2315
        %v2321 = vpack.c.b16 %v2318, %v2317
        %v2322 = vpack.c.b16 %v2319, %v2319
        %vm2325 = vcmask 293888
        %v2327 = vsel %vm2325, %v2294, 0
        %v2330 = vsel %vm2325, %v2295, 0
        %v2333 = vsel %vm2325, %v2296, 0
        %v2336 = vsel %vm2325, %v2297, 0
        %v2339 = vsel %vm2325, %v2298, 0
        %v2342 = vsel %vm2325, %v2299, 0
        %v2345 = vsel %vm2325, %v2300, 0
        %v2348 = vsel %vm2325, %v2301, 0
        %v2351 = vsel %vm2325, %v2302, 0
        %v2354 = vsel %vm2325, %v2303, 0
        %v2357 = vsel %vm2325, %v2304, 0
        %v2360 = vsel %vm2325, %v2305, 0
        %v2363 = vsel %vm2325, %v2306, 0
        %v2366 = vsel %vm2325, %v2307, 0
        %v2369 = vsel %vm2325, %v2308, 0
        %v2372 = vsel %vm2325, %v2309, 0
        %vm2374 = vcmask 1041408
        %v2376 = vsel %vm2374, %v2322, 0
        %2378 = vmatpush.bf16.msra.mxu0 0
        %2379 = vmatpush.bf16.msra.mxu0 0
        %2380 = vmatpush.bf16.msra.mxu0 0
        %2381 = vmatpush.bf16.msra.mxu0 0
        %2382 = vmatpush.bf16.msra.mxu0 0
        %2383 = vmatpush.bf16.msra.mxu0 %v2376
        %2384 = vmatpush.bf16.msra.mxu0 %v2321
        %2385 = vmatpush.bf16.msra.mxu0 %v2320
        %2386 = vmatmul.bf16.gmra.mxu0 %v2327
        %v2387 = vpop.f32.mrf.mxu0
        %v2388 = vadd.f32 %v2228, %v2387
        %v2389 = vpop.f32.mrf.mxu0
        %v2390 = vadd.f32 %v2228, %v2389
        %2391 = vmatmul.bf16.gmra.mxu0 %v2330
        %v2392 = vpop.f32.mrf.mxu0
        %v2393 = vadd.f32 %v2228, %v2392
        %v2394 = vpop.f32.mrf.mxu0
        %v2395 = vadd.f32 %v2228, %v2394
        %2396 = vmatmul.bf16.gmra.mxu0 %v2333
        %v2397 = vpop.f32.mrf.mxu0
        %v2398 = vadd.f32 %v2228, %v2397
        %v2399 = vpop.f32.mrf.mxu0
        %v2400 = vadd.f32 %v2228, %v2399
        %2401 = vmatmul.bf16.gmra.mxu0 %v2336
        %v2402 = vpop.f32.mrf.mxu0
        %v2403 = vadd.f32 %v2228, %v2402
        %v2404 = vpop.f32.mrf.mxu0
        %v2405 = vadd.f32 %v2228, %v2404
        %2406 = vmatmul.bf16.gmra.mxu0 %v2339
        %v2407 = vpop.f32.mrf.mxu0
        %v2408 = vadd.f32 %v2228, %v2407
        %v2409 = vpop.f32.mrf.mxu0
        %v2410 = vadd.f32 %v2228, %v2409
        %2411 = vmatmul.bf16.gmra.mxu0 %v2342
        %v2412 = vpop.f32.mrf.mxu0
        %v2413 = vadd.f32 %v2228, %v2412
        %v2414 = vpop.f32.mrf.mxu0
        %v2415 = vadd.f32 %v2228, %v2414
        %2416 = vmatmul.bf16.gmra.mxu0 %v2345
        %v2417 = vpop.f32.mrf.mxu0
        %v2418 = vadd.f32 %v2228, %v2417
        %v2419 = vpop.f32.mrf.mxu0
        %v2420 = vadd.f32 %v2228, %v2419
        %2421 = vmatmul.bf16.gmra.mxu0 %v2348
        %v2422 = vpop.f32.mrf.mxu0
        %v2423 = vadd.f32 %v2228, %v2422
        %v2424 = vpop.f32.mrf.mxu0
        %v2425 = vadd.f32 %v2228, %v2424
        %2426 = vmatmul.bf16.gmra.mxu0 %v2351
        %v2427 = vpop.f32.mrf.mxu0
        %v2428 = vadd.f32 %v2228, %v2427
        %v2429 = vpop.f32.mrf.mxu0
        %v2430 = vadd.f32 %v2228, %v2429
        %2431 = vmatmul.bf16.gmra.mxu0 %v2354
        %v2432 = vpop.f32.mrf.mxu0
        %v2433 = vadd.f32 %v2228, %v2432
        %v2434 = vpop.f32.mrf.mxu0
        %v2435 = vadd.f32 %v2228, %v2434
        %2436 = vmatmul.bf16.gmra.mxu0 %v2357
        %v2437 = vpop.f32.mrf.mxu0
        %v2438 = vadd.f32 %v2228, %v2437
        %v2439 = vpop.f32.mrf.mxu0
        %v2440 = vadd.f32 %v2228, %v2439
        %2441 = vmatmul.bf16.gmra.mxu0 %v2360
        %v2442 = vpop.f32.mrf.mxu0
        %v2443 = vadd.f32 %v2228, %v2442
        %v2444 = vpop.f32.mrf.mxu0
        %v2445 = vadd.f32 %v2228, %v2444
        %2446 = vmatmul.bf16.gmra.mxu0 %v2363
        %v2447 = vpop.f32.mrf.mxu0
        %v2448 = vadd.f32 %v2228, %v2447
        %v2449 = vpop.f32.mrf.mxu0
        %v2450 = vadd.f32 %v2228, %v2449
        %2451 = vmatmul.bf16.gmra.mxu0 %v2366
        %v2452 = vpop.f32.mrf.mxu0
        %v2453 = vadd.f32 %v2228, %v2452
        %v2454 = vpop.f32.mrf.mxu0
        %v2455 = vadd.f32 %v2228, %v2454
        %2456 = vmatmul.bf16.gmra.mxu0 %v2369
        %v2457 = vpop.f32.mrf.mxu0
        %v2458 = vadd.f32 %v2228, %v2457
        %v2459 = vpop.f32.mrf.mxu0
        %v2460 = vadd.f32 %v2228, %v2459
        %2461 = vmatmul.bf16.gmra.mxu0 %v2372
        %v2462 = vpop.f32.mrf.mxu0
        %v2463 = vadd.f32 %v2228, %v2462
        %v2464 = vpop.f32.mrf.mxu0
        %v2465 = vadd.f32 %v2228, %v2464
        %2466 = vdwg.mxu0
        %vm2467 = vcmp.gt.f32.partialorder %v2388, 0.0
        %vm2468 = vcmp.gt.f32.partialorder %v2390, 0.0
        %vm2469 = vcmp.gt.f32.partialorder %v2393, 0.0
        %vm2470 = vcmp.gt.f32.partialorder %v2395, 0.0
        %vm2471 = vcmp.gt.f32.partialorder %v2398, 0.0
        %vm2472 = vcmp.gt.f32.partialorder %v2400, 0.0
        %vm2473 = vcmp.gt.f32.partialorder %v2403, 0.0
        %vm2474 = vcmp.gt.f32.partialorder %v2405, 0.0
        %vm2475 = vcmp.gt.f32.partialorder %v2408, 0.0
        %vm2476 = vcmp.gt.f32.partialorder %v2410, 0.0
        %vm2477 = vcmp.gt.f32.partialorder %v2413, 0.0
        %vm2478 = vcmp.gt.f32.partialorder %v2415, 0.0
        %vm2479 = vcmp.gt.f32.partialorder %v2418, 0.0
        %vm2480 = vcmp.gt.f32.partialorder %v2420, 0.0
        %vm2481 = vcmp.gt.f32.partialorder %v2423, 0.0
        %vm2482 = vcmp.gt.f32.partialorder %v2425, 0.0
        %vm2483 = vcmp.gt.f32.partialorder %v2428, 0.0
        %vm2484 = vcmp.gt.f32.partialorder %v2430, 0.0
        %vm2485 = vcmp.gt.f32.partialorder %v2433, 0.0
        %vm2486 = vcmp.gt.f32.partialorder %v2435, 0.0
        %vm2487 = vcmp.gt.f32.partialorder %v2438, 0.0
        %vm2488 = vcmp.gt.f32.partialorder %v2440, 0.0
        %vm2489 = vcmp.gt.f32.partialorder %v2443, 0.0
        %vm2490 = vcmp.gt.f32.partialorder %v2445, 0.0
        %vm2491 = vcmp.gt.f32.partialorder %v2448, 0.0
        %vm2492 = vcmp.gt.f32.partialorder %v2450, 0.0
        %vm2493 = vcmp.gt.f32.partialorder %v2453, 0.0
        %vm2494 = vcmp.gt.f32.partialorder %v2455, 0.0
        %vm2495 = vcmp.gt.f32.partialorder %v2458, 0.0
        %vm2496 = vcmp.gt.f32.partialorder %v2460, 0.0
        %vm2497 = vcmp.gt.f32.partialorder %v2463, 0.0
        %vm2498 = vcmp.gt.f32.partialorder %v2465, 0.0
        %v2499 = vmul.f32 %v2388, 0.1
        %v2500 = vmul.f32 %v2390, 0.1
        %v2501 = vmul.f32 %v2393, 0.1
        %v2502 = vmul.f32 %v2395, 0.1
        %v2503 = vmul.f32 %v2398, 0.1
        %v2504 = vmul.f32 %v2400, 0.1
        %v2505 = vmul.f32 %v2403, 0.1
        %v2506 = vmul.f32 %v2405, 0.1
        %v2507 = vmul.f32 %v2408, 0.1
        %v2508 = vmul.f32 %v2410, 0.1
        %v2509 = vmul.f32 %v2413, 0.1
        %v2510 = vmul.f32 %v2415, 0.1
        %v2511 = vmul.f32 %v2418, 0.1
        %v2512 = vmul.f32 %v2420, 0.1
        %v2513 = vmul.f32 %v2423, 0.1
        %v2514 = vmul.f32 %v2425, 0.1
        %v2515 = vmul.f32 %v2428, 0.1
        %v2516 = vmul.f32 %v2430, 0.1
        %v2517 = vmul.f32 %v2433, 0.1
        %v2518 = vmul.f32 %v2435, 0.1
        %v2519 = vmul.f32 %v2438, 0.1
        %v2520 = vmul.f32 %v2440, 0.1
        %v2521 = vmul.f32 %v2443, 0.1
        %v2522 = vmul.f32 %v2445, 0.1
        %v2523 = vmul.f32 %v2448, 0.1
        %v2524 = vmul.f32 %v2450, 0.1
        %v2525 = vmul.f32 %v2453, 0.1
        %v2526 = vmul.f32 %v2455, 0.1
        %v2527 = vmul.f32 %v2458, 0.1
        %v2528 = vmul.f32 %v2460, 0.1
        %v2529 = vmul.f32 %v2463, 0.1
        %v2530 = vmul.f32 %v2465, 0.1
        %v2531 = vsel %vm2467, %v2388, %v2499
        %v2532 = vsel %vm2468, %v2390, %v2500
        %v2533 = vsel %vm2469, %v2393, %v2501
        %v2534 = vsel %vm2470, %v2395, %v2502
        %v2535 = vsel %vm2471, %v2398, %v2503
        %v2536 = vsel %vm2472, %v2400, %v2504
        %v2537 = vsel %vm2473, %v2403, %v2505
        %v2538 = vsel %vm2474, %v2405, %v2506
        %v2539 = vsel %vm2475, %v2408, %v2507
        %v2540 = vsel %vm2476, %v2410, %v2508
        %v2541 = vsel %vm2477, %v2413, %v2509
        %v2542 = vsel %vm2478, %v2415, %v2510
        %v2543 = vsel %vm2479, %v2418, %v2511
        %v2544 = vsel %vm2480, %v2420, %v2512
        %v2545 = vsel %vm2481, %v2423, %v2513
        %v2546 = vsel %vm2482, %v2425, %v2514
        %v2547 = vsel %vm2483, %v2428, %v2515
        %v2548 = vsel %vm2484, %v2430, %v2516
        %v2549 = vsel %vm2485, %v2433, %v2517
        %v2550 = vsel %vm2486, %v2435, %v2518
        %v2551 = vsel %vm2487, %v2438, %v2519
        %v2552 = vsel %vm2488, %v2440, %v2520
        %v2553 = vsel %vm2489, %v2443, %v2521
        %v2554 = vsel %vm2490, %v2445, %v2522
        %v2555 = vsel %vm2491, %v2448, %v2523
        %v2556 = vsel %vm2492, %v2450, %v2524
        %v2557 = vsel %vm2493, %v2453, %v2525
        %v2558 = vsel %vm2494, %v2455, %v2526
        %v2559 = vsel %vm2495, %v2458, %v2527
        %v2560 = vsel %vm2496, %v2460, %v2528
        %v2561 = vsel %vm2497, %v2463, %v2529
        %v2562 = vsel %vm2498, %v2465, %v2530
        %v2595 = vrot.slane %v2531, 2
        %v2596 = vrot.slane %v2531, 4
        %v2597 = vrot.slane %v2531, 6
        %v2598 = vrot.slane %v2532, 2
        %v2599 = vrot.slane %v2532, 4
        %v2600 = vrot.slane %v2532, 6
        %v2601 = vrot.slane %v2533, 2
        %v2602 = vrot.slane %v2533, 4
        %v2603 = vrot.slane %v2533, 6
        %v2604 = vrot.slane %v2534, 2
        %v2605 = vrot.slane %v2534, 4
        %v2606 = vrot.slane %v2534, 6
        %v2607 = vrot.slane %v2535, 2
        %v2608 = vrot.slane %v2535, 4
        %v2609 = vrot.slane %v2535, 6
        %v2610 = vrot.slane %v2536, 2
        %v2611 = vrot.slane %v2536, 4
        %v2612 = vrot.slane %v2536, 6
        %v2613 = vrot.slane %v2537, 2
        %v2614 = vrot.slane %v2537, 4
        %v2615 = vrot.slane %v2537, 6
        %v2616 = vrot.slane %v2538, 2
        %v2617 = vrot.slane %v2538, 4
        %v2618 = vrot.slane %v2538, 6
        %v2619 = vrot.slane %v2539, 2
        %v2620 = vrot.slane %v2539, 4
        %v2621 = vrot.slane %v2539, 6
        %v2622 = vrot.slane %v2540, 2
        %v2623 = vrot.slane %v2540, 4
        %v2624 = vrot.slane %v2540, 6
        %v2625 = vrot.slane %v2541, 2
        %v2626 = vrot.slane %v2541, 4
        %v2627 = vrot.slane %v2541, 6
        %v2628 = vrot.slane %v2542, 2
        %v2629 = vrot.slane %v2542, 4
        %v2630 = vrot.slane %v2542, 6
        %v2631 = vrot.slane %v2543, 2
        %v2632 = vrot.slane %v2543, 4
        %v2633 = vrot.slane %v2543, 6
        %v2634 = vrot.slane %v2544, 2
        %v2635 = vrot.slane %v2544, 4
        %v2636 = vrot.slane %v2544, 6
        %v2637 = vrot.slane %v2545, 2
        %v2638 = vrot.slane %v2545, 4
        %v2639 = vrot.slane %v2545, 6
        %v2640 = vrot.slane %v2546, 2
        %v2641 = vrot.slane %v2546, 4
        %v2642 = vrot.slane %v2546, 6
        %v2643 = vrot.slane %v2547, 2
        %v2644 = vrot.slane %v2547, 4
        %v2645 = vrot.slane %v2547, 6
        %v2646 = vrot.slane %v2548, 2
        %v2647 = vrot.slane %v2548, 4
        %v2648 = vrot.slane %v2548, 6
        %v2649 = vrot.slane %v2549, 2
        %v2650 = vrot.slane %v2549, 4
        %v2651 = vrot.slane %v2549, 6
        %v2652 = vrot.slane %v2550, 2
        %v2653 = vrot.slane %v2550, 4
        %v2654 = vrot.slane %v2550, 6
        %v2655 = vrot.slane %v2551, 2
        %v2656 = vrot.slane %v2551, 4
        %v2657 = vrot.slane %v2551, 6
        %v2658 = vrot.slane %v2552, 2
        %v2659 = vrot.slane %v2552, 4
        %v2660 = vrot.slane %v2552, 6
        %v2661 = vrot.slane %v2553, 2
        %v2662 = vrot.slane %v2553, 4
        %v2663 = vrot.slane %v2553, 6
        %v2664 = vrot.slane %v2554, 2
        %v2665 = vrot.slane %v2554, 4
        %v2666 = vrot.slane %v2554, 6
        %v2667 = vrot.slane %v2555, 2
        %v2668 = vrot.slane %v2555, 4
        %v2669 = vrot.slane %v2555, 6
        %v2670 = vrot.slane %v2556, 2
        %v2671 = vrot.slane %v2556, 4
        %v2672 = vrot.slane %v2556, 6
        %v2673 = vrot.slane %v2557, 2
        %v2674 = vrot.slane %v2557, 4
        %v2675 = vrot.slane %v2557, 6
        %v2676 = vrot.slane %v2558, 2
        %v2677 = vrot.slane %v2558, 4
        %v2678 = vrot.slane %v2558, 6
        %v2679 = vrot.slane %v2559, 2
        %v2680 = vrot.slane %v2559, 4
        %v2681 = vrot.slane %v2559, 6
        %v2682 = vrot.slane %v2560, 2
        %v2683 = vrot.slane %v2560, 4
        %v2684 = vrot.slane %v2560, 6
        %v2685 = vrot.slane %v2561, 2
        %v2686 = vrot.slane %v2561, 4
        %v2687 = vrot.slane %v2561, 6
        %v2688 = vrot.slane %v2562, 2
        %v2689 = vrot.slane %v2562, 4
        %v2690 = vrot.slane %v2562, 6
        %v2787 = vrot.slane %v2531, 7
        %v2788 = vrot.slane %v2787, 2
        %v2789 = vrot.slane %v2595, 7
        %v2790 = vrot.slane %v2789, 2
        %v2791 = vrot.slane %v2596, 7
        %v2792 = vrot.slane %v2791, 2
        %v2793 = vrot.slane %v2597, 7
        %v2794 = vrot.slane %v2793, 2
        %v2795 = vrot.slane %v2532, 7
        %v2796 = vrot.slane %v2795, 2
        %v2797 = vrot.slane %v2598, 7
        %v2798 = vrot.slane %v2797, 2
        %v2799 = vrot.slane %v2599, 7
        %v2800 = vrot.slane %v2799, 2
        %v2801 = vrot.slane %v2600, 7
        %v2802 = vrot.slane %v2801, 2
        %v2803 = vrot.slane %v2533, 7
        %v2804 = vrot.slane %v2803, 2
        %v2805 = vrot.slane %v2601, 7
        %v2806 = vrot.slane %v2805, 2
        %v2807 = vrot.slane %v2602, 7
        %v2808 = vrot.slane %v2807, 2
        %v2809 = vrot.slane %v2603, 7
        %v2810 = vrot.slane %v2809, 2
        %v2811 = vrot.slane %v2534, 7
        %v2812 = vrot.slane %v2811, 2
        %v2813 = vrot.slane %v2604, 7
        %v2814 = vrot.slane %v2813, 2
        %v2815 = vrot.slane %v2605, 7
        %v2816 = vrot.slane %v2815, 2
        %v2817 = vrot.slane %v2606, 7
        %v2818 = vrot.slane %v2817, 2
        %v2819 = vrot.slane %v2535, 7
        %v2820 = vrot.slane %v2819, 2
        %v2821 = vrot.slane %v2607, 7
        %v2822 = vrot.slane %v2821, 2
        %v2823 = vrot.slane %v2608, 7
        %v2824 = vrot.slane %v2823, 2
        %v2825 = vrot.slane %v2609, 7
        %v2826 = vrot.slane %v2825, 2
        %v2827 = vrot.slane %v2536, 7
        %v2828 = vrot.slane %v2827, 2
        %v2829 = vrot.slane %v2610, 7
        %v2830 = vrot.slane %v2829, 2
        %v2831 = vrot.slane %v2611, 7
        %v2832 = vrot.slane %v2831, 2
        %v2833 = vrot.slane %v2612, 7
        %v2834 = vrot.slane %v2833, 2
        %v2835 = vrot.slane %v2537, 7
        %v2836 = vrot.slane %v2835, 2
        %v2837 = vrot.slane %v2613, 7
        %v2838 = vrot.slane %v2837, 2
        %v2839 = vrot.slane %v2614, 7
        %v2840 = vrot.slane %v2839, 2
        %v2841 = vrot.slane %v2615, 7
        %v2842 = vrot.slane %v2841, 2
        %v2843 = vrot.slane %v2538, 7
        %v2844 = vrot.slane %v2843, 2
        %v2845 = vrot.slane %v2616, 7
        %v2846 = vrot.slane %v2845, 2
        %v2847 = vrot.slane %v2617, 7
        %v2848 = vrot.slane %v2847, 2
        %v2849 = vrot.slane %v2618, 7
        %v2850 = vrot.slane %v2849, 2
        %v2851 = vrot.slane %v2539, 7
        %v2852 = vrot.slane %v2851, 2
        %v2853 = vrot.slane %v2619, 7
        %v2854 = vrot.slane %v2853, 2
        %v2855 = vrot.slane %v2620, 7
        %v2856 = vrot.slane %v2855, 2
        %v2857 = vrot.slane %v2621, 7
        %v2858 = vrot.slane %v2857, 2
        %v2859 = vrot.slane %v2540, 7
        %v2860 = vrot.slane %v2859, 2
        %v2861 = vrot.slane %v2622, 7
        %v2862 = vrot.slane %v2861, 2
        %v2863 = vrot.slane %v2623, 7
        %v2864 = vrot.slane %v2863, 2
        %v2865 = vrot.slane %v2624, 7
        %v2866 = vrot.slane %v2865, 2
        %v2867 = vrot.slane %v2541, 7
        %v2868 = vrot.slane %v2867, 2
        %v2869 = vrot.slane %v2625, 7
        %v2870 = vrot.slane %v2869, 2
        %v2871 = vrot.slane %v2626, 7
        %v2872 = vrot.slane %v2871, 2
        %v2873 = vrot.slane %v2627, 7
        %v2874 = vrot.slane %v2873, 2
        %v2875 = vrot.slane %v2542, 7
        %v2876 = vrot.slane %v2875, 2
        %v2877 = vrot.slane %v2628, 7
        %v2878 = vrot.slane %v2877, 2
        %v2879 = vrot.slane %v2629, 7
        %v2880 = vrot.slane %v2879, 2
        %v2881 = vrot.slane %v2630, 7
        %v2882 = vrot.slane %v2881, 2
        %v2883 = vrot.slane %v2543, 7
        %v2884 = vrot.slane %v2883, 2
        %v2885 = vrot.slane %v2631, 7
        %v2886 = vrot.slane %v2885, 2
        %v2887 = vrot.slane %v2632, 7
        %v2888 = vrot.slane %v2887, 2
        %v2889 = vrot.slane %v2633, 7
        %v2890 = vrot.slane %v2889, 2
        %v2891 = vrot.slane %v2544, 7
        %v2892 = vrot.slane %v2891, 2
        %v2893 = vrot.slane %v2634, 7
        %v2894 = vrot.slane %v2893, 2
        %v2895 = vrot.slane %v2635, 7
        %v2896 = vrot.slane %v2895, 2
        %v2897 = vrot.slane %v2636, 7
        %v2898 = vrot.slane %v2897, 2
        %v2899 = vrot.slane %v2545, 7
        %v2900 = vrot.slane %v2899, 2
        %v2901 = vrot.slane %v2637, 7
        %v2902 = vrot.slane %v2901, 2
        %v2903 = vrot.slane %v2638, 7
        %v2904 = vrot.slane %v2903, 2
        %v2905 = vrot.slane %v2639, 7
        %v2906 = vrot.slane %v2905, 2
        %v2907 = vrot.slane %v2546, 7
        %v2908 = vrot.slane %v2907, 2
        %v2909 = vrot.slane %v2640, 7
        %v2910 = vrot.slane %v2909, 2
        %v2911 = vrot.slane %v2641, 7
        %v2912 = vrot.slane %v2911, 2
        %v2913 = vrot.slane %v2642, 7
        %v2914 = vrot.slane %v2913, 2
        %v2915 = vrot.slane %v2547, 7
        %v2916 = vrot.slane %v2915, 2
        %v2917 = vrot.slane %v2643, 7
        %v2918 = vrot.slane %v2917, 2
        %v2919 = vrot.slane %v2644, 7
        %v2920 = vrot.slane %v2919, 2
        %v2921 = vrot.slane %v2645, 7
        %v2922 = vrot.slane %v2921, 2
        %v2923 = vrot.slane %v2548, 7
        %v2924 = vrot.slane %v2923, 2
        %v2925 = vrot.slane %v2646, 7
        %v2926 = vrot.slane %v2925, 2
        %v2927 = vrot.slane %v2647, 7
        %v2928 = vrot.slane %v2927, 2
        %v2929 = vrot.slane %v2648, 7
        %v2930 = vrot.slane %v2929, 2
        %v2931 = vrot.slane %v2549, 7
        %v2932 = vrot.slane %v2931, 2
        %v2933 = vrot.slane %v2649, 7
        %v2934 = vrot.slane %v2933, 2
        %v2935 = vrot.slane %v2650, 7
        %v2936 = vrot.slane %v2935, 2
        %v2937 = vrot.slane %v2651, 7
        %v2938 = vrot.slane %v2937, 2
        %v2939 = vrot.slane %v2550, 7
        %v2940 = vrot.slane %v2939, 2
        %v2941 = vrot.slane %v2652, 7
        %v2942 = vrot.slane %v2941, 2
        %v2943 = vrot.slane %v2653, 7
        %v2944 = vrot.slane %v2943, 2
        %v2945 = vrot.slane %v2654, 7
        %v2946 = vrot.slane %v2945, 2
        %v2947 = vrot.slane %v2551, 7
        %v2948 = vrot.slane %v2947, 2
        %v2949 = vrot.slane %v2655, 7
        %v2950 = vrot.slane %v2949, 2
        %v2951 = vrot.slane %v2656, 7
        %v2952 = vrot.slane %v2951, 2
        %v2953 = vrot.slane %v2657, 7
        %v2954 = vrot.slane %v2953, 2
        %v2955 = vrot.slane %v2552, 7
        %v2956 = vrot.slane %v2955, 2
        %v2957 = vrot.slane %v2658, 7
        %v2958 = vrot.slane %v2957, 2
        %v2959 = vrot.slane %v2659, 7
        %v2960 = vrot.slane %v2959, 2
        %v2961 = vrot.slane %v2660, 7
        %v2962 = vrot.slane %v2961, 2
        %v2963 = vrot.slane %v2553, 7
        %v2964 = vrot.slane %v2963, 2
        %v2965 = vrot.slane %v2661, 7
        %v2966 = vrot.slane %v2965, 2
        %v2967 = vrot.slane %v2662, 7
        %v2968 = vrot.slane %v2967, 2
        %v2969 = vrot.slane %v2663, 7
        %v2970 = vrot.slane %v2969, 2
        %v2971 = vrot.slane %v2554, 7
        %v2972 = vrot.slane %v2971, 2
        %v2973 = vrot.slane %v2664, 7
        %v2974 = vrot.slane %v2973, 2
        %v2975 = vrot.slane %v2665, 7
        %v2976 = vrot.slane %v2975, 2
        %v2977 = vrot.slane %v2666, 7
        %v2978 = vrot.slane %v2977, 2
        %v2979 = vrot.slane %v2555, 7
        %v2980 = vrot.slane %v2979, 2
        %v2981 = vrot.slane %v2667, 7
        %v2982 = vrot.slane %v2981, 2
        %v2983 = vrot.slane %v2668, 7
        %v2984 = vrot.slane %v2983, 2
        %v2985 = vrot.slane %v2669, 7
        %v2986 = vrot.slane %v2985, 2
        %v2987 = vrot.slane %v2556, 7
        %v2988 = vrot.slane %v2987, 2
        %v2989 = vrot.slane %v2670, 7
        %v2990 = vrot.slane %v2989, 2
        %v2991 = vrot.slane %v2671, 7
        %v2992 = vrot.slane %v2991, 2
        %v2993 = vrot.slane %v2672, 7
        %v2994 = vrot.slane %v2993, 2
        %v2995 = vrot.slane %v2557, 7
        %v2996 = vrot.slane %v2995, 2
        %v2997 = vrot.slane %v2673, 7
        %v2998 = vrot.slane %v2997, 2
        %v2999 = vrot.slane %v2674, 7
        %v3000 = vrot.slane %v2999, 2
        %v3001 = vrot.slane %v2675, 7
        %v3002 = vrot.slane %v3001, 2
        %v3003 = vrot.slane %v2558, 7
        %v3004 = vrot.slane %v3003, 2
        %v3005 = vrot.slane %v2676, 7
        %v3006 = vrot.slane %v3005, 2
        %v3007 = vrot.slane %v2677, 7
        %v3008 = vrot.slane %v3007, 2
        %v3009 = vrot.slane %v2678, 7
        %v3010 = vrot.slane %v3009, 2
        %v3011 = vrot.slane %v2559, 7
        %v3012 = vrot.slane %v3011, 2
        %v3013 = vrot.slane %v2679, 7
        %v3014 = vrot.slane %v3013, 2
        %v3015 = vrot.slane %v2680, 7
        %v3016 = vrot.slane %v3015, 2
        %v3017 = vrot.slane %v2681, 7
        %v3018 = vrot.slane %v3017, 2
        %v3019 = vrot.slane %v2560, 7
        %v3020 = vrot.slane %v3019, 2
        %v3021 = vrot.slane %v2682, 7
        %v3022 = vrot.slane %v3021, 2
        %v3023 = vrot.slane %v2683, 7
        %v3024 = vrot.slane %v3023, 2
        %v3025 = vrot.slane %v2684, 7
        %v3026 = vrot.slane %v3025, 2
        %v3027 = vrot.slane %v2561, 7
        %v3028 = vrot.slane %v3027, 2
        %v3029 = vrot.slane %v2685, 7
        %v3030 = vrot.slane %v3029, 2
        %v3031 = vrot.slane %v2686, 7
        %v3032 = vrot.slane %v3031, 2
        %v3033 = vrot.slane %v2687, 7
        %v3034 = vrot.slane %v3033, 2
        %v3035 = vrot.slane %v2562, 7
        %v3036 = vrot.slane %v3035, 2
        %v3037 = vrot.slane %v2688, 7
        %v3038 = vrot.slane %v3037, 2
        %v3039 = vrot.slane %v2689, 7
        %v3040 = vrot.slane %v3039, 2
        %v3041 = vrot.slane %v2690, 7
        %v3042 = vrot.slane %v3041, 2
        %v3171 = vmax.f32 %v2531, %v2788
        %v3172 = vmax.f32 %v2595, %v2790
        %v3173 = vmax.f32 %v2596, %v2792
        %v3174 = vmax.f32 %v2597, %v2794
        %v3175 = vmax.f32 %v2532, %v2796
        %v3176 = vmax.f32 %v2598, %v2798
        %v3177 = vmax.f32 %v2599, %v2800
        %v3178 = vmax.f32 %v2600, %v2802
        %v3179 = vmax.f32 %v2533, %v2804
        %v3180 = vmax.f32 %v2601, %v2806
        %v3181 = vmax.f32 %v2602, %v2808
        %v3182 = vmax.f32 %v2603, %v2810
        %v3183 = vmax.f32 %v2534, %v2812
        %v3184 = vmax.f32 %v2604, %v2814
        %v3185 = vmax.f32 %v2605, %v2816
        %v3186 = vmax.f32 %v2606, %v2818
        %v3187 = vmax.f32 %v2535, %v2820
        %v3188 = vmax.f32 %v2607, %v2822
        %v3189 = vmax.f32 %v2608, %v2824
        %v3190 = vmax.f32 %v2609, %v2826
        %v3191 = vmax.f32 %v2536, %v2828
        %v3192 = vmax.f32 %v2610, %v2830
        %v3193 = vmax.f32 %v2611, %v2832
        %v3194 = vmax.f32 %v2612, %v2834
        %v3195 = vmax.f32 %v2537, %v2836
        %v3196 = vmax.f32 %v2613, %v2838
        %v3197 = vmax.f32 %v2614, %v2840
        %v3198 = vmax.f32 %v2615, %v2842
        %v3199 = vmax.f32 %v2538, %v2844
        %v3200 = vmax.f32 %v2616, %v2846
        %v3201 = vmax.f32 %v2617, %v2848
        %v3202 = vmax.f32 %v2618, %v2850
        %v3203 = vmax.f32 %v2539, %v2852
        %v3204 = vmax.f32 %v2619, %v2854
        %v3205 = vmax.f32 %v2620, %v2856
        %v3206 = vmax.f32 %v2621, %v2858
        %v3207 = vmax.f32 %v2540, %v2860
        %v3208 = vmax.f32 %v2622, %v2862
        %v3209 = vmax.f32 %v2623, %v2864
        %v3210 = vmax.f32 %v2624, %v2866
        %v3211 = vmax.f32 %v2541, %v2868
        %v3212 = vmax.f32 %v2625, %v2870
        %v3213 = vmax.f32 %v2626, %v2872
        %v3214 = vmax.f32 %v2627, %v2874
        %v3215 = vmax.f32 %v2542, %v2876
        %v3216 = vmax.f32 %v2628, %v2878
        %v3217 = vmax.f32 %v2629, %v2880
        %v3218 = vmax.f32 %v2630, %v2882
        %v3219 = vmax.f32 %v2543, %v2884
        %v3220 = vmax.f32 %v2631, %v2886
        %v3221 = vmax.f32 %v2632, %v2888
        %v3222 = vmax.f32 %v2633, %v2890
        %v3223 = vmax.f32 %v2544, %v2892
        %v3224 = vmax.f32 %v2634, %v2894
        %v3225 = vmax.f32 %v2635, %v2896
        %v3226 = vmax.f32 %v2636, %v2898
        %v3227 = vmax.f32 %v2545, %v2900
        %v3228 = vmax.f32 %v2637, %v2902
        %v3229 = vmax.f32 %v2638, %v2904
        %v3230 = vmax.f32 %v2639, %v2906
        %v3231 = vmax.f32 %v2546, %v2908
        %v3232 = vmax.f32 %v2640, %v2910
        %v3233 = vmax.f32 %v2641, %v2912
        %v3234 = vmax.f32 %v2642, %v2914
        %v3235 = vmax.f32 %v2547, %v2916
        %v3236 = vmax.f32 %v2643, %v2918
        %v3237 = vmax.f32 %v2644, %v2920
        %v3238 = vmax.f32 %v2645, %v2922
        %v3239 = vmax.f32 %v2548, %v2924
        %v3240 = vmax.f32 %v2646, %v2926
        %v3241 = vmax.f32 %v2647, %v2928
        %v3242 = vmax.f32 %v2648, %v2930
        %v3243 = vmax.f32 %v2549, %v2932
        %v3244 = vmax.f32 %v2649, %v2934
        %v3245 = vmax.f32 %v2650, %v2936
        %v3246 = vmax.f32 %v2651, %v2938
        %v3247 = vmax.f32 %v2550, %v2940
        %v3248 = vmax.f32 %v2652, %v2942
        %v3249 = vmax.f32 %v2653, %v2944
        %v3250 = vmax.f32 %v2654, %v2946
        %v3251 = vmax.f32 %v2551, %v2948
        %v3252 = vmax.f32 %v2655, %v2950
        %v3253 = vmax.f32 %v2656, %v2952
        %v3254 = vmax.f32 %v2657, %v2954
        %v3255 = vmax.f32 %v2552, %v2956
        %v3256 = vmax.f32 %v2658, %v2958
        %v3257 = vmax.f32 %v2659, %v2960
        %v3258 = vmax.f32 %v2660, %v2962
        %v3259 = vmax.f32 %v2553, %v2964
        %v3260 = vmax.f32 %v2661, %v2966
        %v3261 = vmax.f32 %v2662, %v2968
        %v3262 = vmax.f32 %v2663, %v2970
        %v3263 = vmax.f32 %v2554, %v2972
        %v3264 = vmax.f32 %v2664, %v2974
        %v3265 = vmax.f32 %v2665, %v2976
        %v3266 = vmax.f32 %v2666, %v2978
        %v3267 = vmax.f32 %v2555, %v2980
        %v3268 = vmax.f32 %v2667, %v2982
        %v3269 = vmax.f32 %v2668, %v2984
        %v3270 = vmax.f32 %v2669, %v2986
        %v3271 = vmax.f32 %v2556, %v2988
        %v3272 = vmax.f32 %v2670, %v2990
        %v3273 = vmax.f32 %v2671, %v2992
        %v3274 = vmax.f32 %v2672, %v2994
        %v3275 = vmax.f32 %v2557, %v2996
        %v3276 = vmax.f32 %v2673, %v2998
        %v3277 = vmax.f32 %v2674, %v3000
        %v3278 = vmax.f32 %v2675, %v3002
        %v3279 = vmax.f32 %v2558, %v3004
        %v3280 = vmax.f32 %v2676, %v3006
        %v3281 = vmax.f32 %v2677, %v3008
        %v3282 = vmax.f32 %v2678, %v3010
        %v3283 = vmax.f32 %v2559, %v3012
        %v3284 = vmax.f32 %v2679, %v3014
        %v3285 = vmax.f32 %v2680, %v3016
        %v3286 = vmax.f32 %v2681, %v3018
        %v3287 = vmax.f32 %v2560, %v3020
        %v3288 = vmax.f32 %v2682, %v3022
        %v3289 = vmax.f32 %v2683, %v3024
        %v3290 = vmax.f32 %v2684, %v3026
        %v3291 = vmax.f32 %v2561, %v3028
        %v3292 = vmax.f32 %v2685, %v3030
        %v3293 = vmax.f32 %v2686, %v3032
        %v3294 = vmax.f32 %v2687, %v3034
        %v3295 = vmax.f32 %v2562, %v3036
        %v3296 = vmax.f32 %v2688, %v3038
        %v3297 = vmax.f32 %v2689, %v3040
        %v3298 = vmax.f32 %v2690, %v3042
        %v3299 = vmax.f32 %v3171, %v3179
        %v3300 = vmax.f32 %v3172, %v3180
        %v3301 = vmax.f32 %v3173, %v3181
        %v3302 = vmax.f32 %v3174, %v3182
        %v3303 = vmax.f32 %v3175, %v3183
        %v3304 = vmax.f32 %v3176, %v3184
        %v3305 = vmax.f32 %v3177, %v3185
        %v3306 = vmax.f32 %v3178, %v3186
        %v3307 = vmax.f32 %v3187, %v3195
        %v3308 = vmax.f32 %v3188, %v3196
        %v3309 = vmax.f32 %v3189, %v3197
        %v3310 = vmax.f32 %v3190, %v3198
        %v3311 = vmax.f32 %v3191, %v3199
        %v3312 = vmax.f32 %v3192, %v3200
        %v3313 = vmax.f32 %v3193, %v3201
        %v3314 = vmax.f32 %v3194, %v3202
        %v3315 = vmax.f32 %v3203, %v3211
        %v3316 = vmax.f32 %v3204, %v3212
        %v3317 = vmax.f32 %v3205, %v3213
        %v3318 = vmax.f32 %v3206, %v3214
        %v3319 = vmax.f32 %v3207, %v3215
        %v3320 = vmax.f32 %v3208, %v3216
        %v3321 = vmax.f32 %v3209, %v3217
        %v3322 = vmax.f32 %v3210, %v3218
        %v3323 = vmax.f32 %v3219, %v3227
        %v3324 = vmax.f32 %v3220, %v3228
        %v3325 = vmax.f32 %v3221, %v3229
        %v3326 = vmax.f32 %v3222, %v3230
        %v3327 = vmax.f32 %v3223, %v3231
        %v3328 = vmax.f32 %v3224, %v3232
        %v3329 = vmax.f32 %v3225, %v3233
        %v3330 = vmax.f32 %v3226, %v3234
        %v3331 = vmax.f32 %v3235, %v3243
        %v3332 = vmax.f32 %v3236, %v3244
        %v3333 = vmax.f32 %v3237, %v3245
        %v3334 = vmax.f32 %v3238, %v3246
        %v3335 = vmax.f32 %v3239, %v3247
        %v3336 = vmax.f32 %v3240, %v3248
        %v3337 = vmax.f32 %v3241, %v3249
        %v3338 = vmax.f32 %v3242, %v3250
        %v3339 = vmax.f32 %v3251, %v3259
        %v3340 = vmax.f32 %v3252, %v3260
        %v3341 = vmax.f32 %v3253, %v3261
        %v3342 = vmax.f32 %v3254, %v3262
        %v3343 = vmax.f32 %v3255, %v3263
        %v3344 = vmax.f32 %v3256, %v3264
        %v3345 = vmax.f32 %v3257, %v3265
        %v3346 = vmax.f32 %v3258, %v3266
        %v3347 = vmax.f32 %v3267, %v3275
        %v3348 = vmax.f32 %v3268, %v3276
        %v3349 = vmax.f32 %v3269, %v3277
        %v3350 = vmax.f32 %v3270, %v3278
        %v3351 = vmax.f32 %v3271, %v3279
        %v3352 = vmax.f32 %v3272, %v3280
        %v3353 = vmax.f32 %v3273, %v3281
        %v3354 = vmax.f32 %v3274, %v3282
        %v3355 = vmax.f32 %v3283, %v3291
        %v3356 = vmax.f32 %v3284, %v3292
        %v3357 = vmax.f32 %v3285, %v3293
        %v3358 = vmax.f32 %v3286, %v3294
        %v3359 = vmax.f32 %v3287, %v3295
        %v3360 = vmax.f32 %v3288, %v3296
        %v3361 = vmax.f32 %v3289, %v3297
        %v3362 = vmax.f32 %v3290, %v3298
        %v3427 = vperm.slane %v3299, 0
        %v3428 = vperm.slane %v3300, 0
        %v3429 = vperm.slane %v3301, 0
        %v3430 = vperm.slane %v3302, 0
        %v3431 = vperm.slane %v3303, 0
        %v3432 = vperm.slane %v3304, 0
        %v3433 = vperm.slane %v3305, 0
        %v3434 = vperm.slane %v3306, 0
        %v3435 = vperm.slane %v3307, 0
        %v3436 = vperm.slane %v3308, 0
        %v3437 = vperm.slane %v3309, 0
        %v3438 = vperm.slane %v3310, 0
        %v3439 = vperm.slane %v3311, 0
        %v3440 = vperm.slane %v3312, 0
        %v3441 = vperm.slane %v3313, 0
        %v3442 = vperm.slane %v3314, 0
        %v3443 = vperm.slane %v3315, 0
        %v3444 = vperm.slane %v3316, 0
        %v3445 = vperm.slane %v3317, 0
        %v3446 = vperm.slane %v3318, 0
        %v3447 = vperm.slane %v3319, 0
        %v3448 = vperm.slane %v3320, 0
        %v3449 = vperm.slane %v3321, 0
        %v3450 = vperm.slane %v3322, 0
        %v3451 = vperm.slane %v3323, 0
        %v3452 = vperm.slane %v3324, 0
        %v3453 = vperm.slane %v3325, 0
        %v3454 = vperm.slane %v3326, 0
        %v3455 = vperm.slane %v3327, 0
        %v3456 = vperm.slane %v3328, 0
        %v3457 = vperm.slane %v3329, 0
        %v3458 = vperm.slane %v3330, 0
        %v3459 = vperm.slane %v3331, 0
        %v3460 = vperm.slane %v3332, 0
        %v3461 = vperm.slane %v3333, 0
        %v3462 = vperm.slane %v3334, 0
        %v3463 = vperm.slane %v3335, 0
        %v3464 = vperm.slane %v3336, 0
        %v3465 = vperm.slane %v3337, 0
        %v3466 = vperm.slane %v3338, 0
        %v3467 = vperm.slane %v3339, 0
        %v3468 = vperm.slane %v3340, 0
        %v3469 = vperm.slane %v3341, 0
        %v3470 = vperm.slane %v3342, 0
        %v3471 = vperm.slane %v3343, 0
        %v3472 = vperm.slane %v3344, 0
        %v3473 = vperm.slane %v3345, 0
        %v3474 = vperm.slane %v3346, 0
        %v3475 = vperm.slane %v3347, 0
        %v3476 = vperm.slane %v3348, 0
        %v3477 = vperm.slane %v3349, 0
        %v3478 = vperm.slane %v3350, 0
        %v3479 = vperm.slane %v3351, 0
        %v3480 = vperm.slane %v3352, 0
        %v3481 = vperm.slane %v3353, 0
        %v3482 = vperm.slane %v3354, 0
        %v3483 = vperm.slane %v3355, 0
        %v3484 = vperm.slane %v3356, 0
        %v3485 = vperm.slane %v3357, 0
        %v3486 = vperm.slane %v3358, 0
        %v3487 = vperm.slane %v3359, 0
        %v3488 = vperm.slane %v3360, 0
        %v3489 = vperm.slane %v3361, 0
        %v3490 = vperm.slane %v3362, 0
        %vm3491 = vcmask 1041409
        %v3492 = vsel %vm3491, %v3428, %v3427
        %vm3493 = vcmask 1042434
        %v3494 = vsel %vm3493, %v3429, %v3492
        %vm3495 = vcmask 1043459
        %v3496 = vsel %vm3495, %v3430, %v3494
        %vm3497 = vcmask 1044484
        %v3498 = vsel %vm3497, %v3431, %v3496
        %vm3499 = vcmask 1045509
        %v3500 = vsel %vm3499, %v3432, %v3498
        %vm3501 = vcmask 1046534
        %v3502 = vsel %vm3501, %v3433, %v3500
        %vm3503 = vcmask 1047559
        %v3504 = vsel %vm3503, %v3434, %v3502
        %v3505 = vsel %vm3491, %v3436, %v3435
        %v3506 = vsel %vm3493, %v3437, %v3505
        %v3507 = vsel %vm3495, %v3438, %v3506
        %v3508 = vsel %vm3497, %v3439, %v3507
        %v3509 = vsel %vm3499, %v3440, %v3508
        %v3510 = vsel %vm3501, %v3441, %v3509
        %v3511 = vsel %vm3503, %v3442, %v3510
        %v3512 = vsel %vm3491, %v3444, %v3443
        %v3513 = vsel %vm3493, %v3445, %v3512
        %v3514 = vsel %vm3495, %v3446, %v3513
        %v3515 = vsel %vm3497, %v3447, %v3514
        %v3516 = vsel %vm3499, %v3448, %v3515
        %v3517 = vsel %vm3501, %v3449, %v3516
        %v3518 = vsel %vm3503, %v3450, %v3517
        %v3519 = vsel %vm3491, %v3452, %v3451
        %v3520 = vsel %vm3493, %v3453, %v3519
        %v3521 = vsel %vm3495, %v3454, %v3520
        %v3522 = vsel %vm3497, %v3455, %v3521
        %v3523 = vsel %vm3499, %v3456, %v3522
        %v3524 = vsel %vm3501, %v3457, %v3523
        %v3525 = vsel %vm3503, %v3458, %v3524
        %v3526 = vsel %vm3491, %v3460, %v3459
        %v3527 = vsel %vm3493, %v3461, %v3526
        %v3528 = vsel %vm3495, %v3462, %v3527
        %v3529 = vsel %vm3497, %v3463, %v3528
        %v3530 = vsel %vm3499, %v3464, %v3529
        %v3531 = vsel %vm3501, %v3465, %v3530
        %v3532 = vsel %vm3503, %v3466, %v3531
        %v3533 = vsel %vm3491, %v3468, %v3467
        %v3534 = vsel %vm3493, %v3469, %v3533
        %v3535 = vsel %vm3495, %v3470, %v3534
        %v3536 = vsel %vm3497, %v3471, %v3535
        %v3537 = vsel %vm3499, %v3472, %v3536
        %v3538 = vsel %vm3501, %v3473, %v3537
        %v3539 = vsel %vm3503, %v3474, %v3538
        %v3540 = vsel %vm3491, %v3476, %v3475
        %v3541 = vsel %vm3493, %v3477, %v3540
        %v3542 = vsel %vm3495, %v3478, %v3541
        %v3543 = vsel %vm3497, %v3479, %v3542
        %v3544 = vsel %vm3499, %v3480, %v3543
        %v3545 = vsel %vm3501, %v3481, %v3544
        %v3546 = vsel %vm3503, %v3482, %v3545
        %v3547 = vsel %vm3491, %v3484, %v3483
        %v3548 = vsel %vm3493, %v3485, %v3547
        %v3549 = vsel %vm3495, %v3486, %v3548
        %v3550 = vsel %vm3497, %v3487, %v3549
        %v3551 = vsel %vm3499, %v3488, %v3550
        %v3552 = vsel %vm3501, %v3489, %v3551
        %v3553 = vsel %vm3503, %v3490, %v3552
        %vm3562 = vcmask 64512
        %3563 = vst.msk [vmem:[%s163] sm:$0xff] %vm3562, %v3504
        %3564 = vst.msk [vmem:[%s163 + $0x8] sm:$0xff] %vm3562, %v3511
        %3565 = vst.msk [vmem:[%s163 + $0x10] sm:$0xff] %vm3562, %v3518
        %3566 = vst.msk [vmem:[%s163 + $0x18] sm:$0xff] %vm3562, %v3525
        %3567 = vst.msk [vmem:[%s163 + $0x20] sm:$0xff] %vm3562, %v3532
        %3568 = vst.msk [vmem:[%s163 + $0x28] sm:$0xff] %vm3562, %v3539
        %3569 = vst.msk [vmem:[%s163 + $0x30] sm:$0xff] %vm3562, %v3546
        %3570 = vst.msk [vmem:[%s163 + $0x38] sm:$0xff] %vm3562, %v3553
        %s3571 = sand.u32 %s93, 1
        %s3572 = scalar_lea.sflag [#allocation5], %s3571
        %s3573 = sand.u32 %s93, 1
        %s3574 = smul.addr %s3573, 64
        %s3575 = scalar_lea.vmem [#allocation4], %s3574
        // Predicated region
        $region33: #{tpu_custom_call.1} parent=31 // pred_check
          %p3576 = pneg %p103
        $region34: #{tpu_custom_call.1} parent=31 // pred_check_branch
          %3578 = sbr.rel (%p3576) target = $region36
        $region35: #{tpu_custom_call.1} parent=31 // pred_region
          %3580 = vsyncadd %s3572, 0
          %s3581 = smul.addr %s17, 8
          %s3582 = smul.addr %s3581, 8
          %s3583 = scalar_lea.hbm %s3, %s3582
          %s3584 = sshll.u32 %s3575, 4
          %s3585 = int_to_ptr.vmem [resolvable:$true] %s3584
          %s3586 = sshll.u32 %s3583, 4
          %s3587 = int_to_ptr.hbm [resolvable:$true] %s3586
          %3592 = dma.vmem_to_hbm [thread:$0]  %s3585, 1024, %s3587, %s3572, 128, 128, 8
        $region36: #{tpu_custom_call.1} parent=31 // pred_fallthru
          _
      $region32: #{tpu_custom_call.1} parent=5 // pred_fallthru
        _
      %p3593 = scmp.le.s32.totalorder 2, %s12
      // Predicated region
      $region37: #{tpu_custom_call.1} parent=5 // pred_check
        %p3594 = pneg %p3593
      $region38: #{tpu_custom_call.1} parent=5 // pred_check_branch
        %3596 = sbr.rel (%p3594) target = $region40
      $region39: #{tpu_custom_call.1} parent=5 // pred_region
        %s3597 = ssub.s32 %s12, 2
        // Predicated region
        $region41: #{tpu_custom_call.1} parent=39 // pred_check
          %p3598 = pneg %p109
        $region42: #{tpu_custom_call.1} parent=39 // pred_check_branch
          %3600 = sbr.rel (%p3598) target = $region44
        $region43: #{tpu_custom_call.1} parent=39 // pred_region
          %s3601 = sand.u32 %s94, 1
          %s3602 = scalar_lea.sflag [#allocation5], %s3601
          %s3603 = sand.u32 %s94, 1
          %s3604 = smul.addr %s3603, 64
          %s3605 = scalar_lea.vmem [#allocation4], %s3604
          %3607 = dma.done %s3602, 1024
        $region44: #{tpu_custom_call.1} parent=39 // pred_fallthru
          _
      $region40: #{tpu_custom_call.1} parent=5 // pred_fallthru
        _
    $region6: #{tpu_custom_call.1} parent=1 // loop_footer
      %s16 = sadd.s32 1, %s12
    $region7: #{tpu_custom_call.1} parent=1 // loop_footer_branch
      %11 = sbr.rel target = $region3
    $region8: #{tpu_custom_call.1} parent=1 // loop_exit
      _
    %3608 = vsyncpa [#allocation5], 1
    %s3609 = scalar_lea.sflag [#allocation5], 1
    %3610 = vsyncpa %s3609, 1

</llo_original>
